<compile_context>
chip_gen: v6e
topology: v6e:2x2x1
jax: 0.10.0
libtpu: 0.0.40
codegen_flags: <defaults>
</compile_context>

<pallas_src>
import functools

import jax
import jax.numpy as jnp
from jax.experimental import pallas as pl
from jax.experimental.pallas import tpu as pltpu

INPUT_SIZE = 1296
HIDDEN_0 = 512
HIDDEN_1 = 256
NUM_CLASSES = 16

OUT_PAD = 128   # round_up(16, 128): lane-dense output slab (unmasked vst)


def _round_up(x, m):
    return ((x + m - 1) // m) * m


def _mlp_kernel(x_ref, w0_ref, b0_ref, w1_ref, b1_ref, w2_ref, b2_ref, o_ref):
    # Cast x f32 -> bf16 in-kernel (saves a whole wrapper-side pad+cast pass over HBM).
    x = x_ref[...].astype(jnp.bfloat16)
    # fc_0 + ReLU   (dropout_0 is identity in eval mode)
    h0 = jnp.dot(x, w0_ref[...], preferred_element_type=jnp.float32)
    h0 = jnp.maximum(h0 + b0_ref[...], 0.0)
    # fc_1 + ReLU   (dropout_1 is identity in eval mode)
    h1 = jnp.dot(h0.astype(jnp.bfloat16), w1_ref[...],
                 preferred_element_type=jnp.float32)
    h1 = jnp.maximum(h1 + b1_ref[...], 0.0)
    # fc_2 (output columns >= NUM_CLASSES are zero-padded weights -> sliced off outside)
    out = jnp.dot(h1.astype(jnp.bfloat16), w2_ref[...],
                  preferred_element_type=jnp.float32)
    o_ref[...] = (out + b2_ref[...]).astype(o_ref.dtype)


def _resident(arr):
    """Full-array BlockSpec: same block for every grid step (weights/biases)."""
    nd = arr.ndim
    return pl.BlockSpec(arr.shape, lambda i, _nd=nd: (0,) * _nd)


@functools.partial(jax.jit, static_argnames=("batch_tile",))
def mlp_forward(x, kparams, *, batch_tile=256):
    """x: (B, INPUT_SIZE) float32. kparams: output of prepare_params()."""
    w0, b0, w1, b1, w2, b2 = (kparams["w0"], kparams["b0"], kparams["w1"],
                              kparams["b1"], kparams["w2"], kparams["b2"])
    B = x.shape[0]

    # Batch tile: multiple of 8 (f32 sublane); shrink for tiny batches.
    tb = min(batch_tile, _round_up(max(B, 1), 8))
    B_pad = _round_up(B, tb)
    if B_pad != B:
        # Fallback only for ragged batches; demo shapes never hit this branch.
        x = jnp.pad(x, ((0, B_pad - B), (0, 0)))

    grid = (B_pad // tb,)

    # Only shard the batch axis across v7x's two TensorCores when the batch is large
    # enough to amortize the duplicated resident-weight DMA (one copy per core).
    batch_sem = "parallel" if B_pad >= 2048 else "arbitrary"

    # Advisory cost for XLA's scheduler around the custom call.
    flops = 2 * B_pad * (INPUT_SIZE * HIDDEN_0
                         + HIDDEN_0 * HIDDEN_1
                         + HIDDEN_1 * NUM_CLASSES)
    weight_bytes = (w0.size * 2 + w1.size * 2 + w2.size * 2
                    + b0.size * 4 + b1.size * 4 + b2.size * 4)
    bytes_accessed = B_pad * INPUT_SIZE * 4 + weight_bytes + B_pad * OUT_PAD * 4

    out = pl.pallas_call(
        _mlp_kernel,
        out_shape=jax.ShapeDtypeStruct((B_pad, OUT_PAD), jnp.float32),
        grid_spec=pltpu.PrefetchScalarGridSpec(
            num_scalar_prefetch=0,
            grid=grid,
            in_specs=[
                # x batch tile; last dim == full array dim (1296) is legal unpadded.
                pl.BlockSpec((tb, INPUT_SIZE), lambda i: (i, 0)),
                _resident(w0), _resident(b0),
                _resident(w1), _resident(b1),
                _resident(w2), _resident(b2),
            ],
            out_specs=pl.BlockSpec((tb, OUT_PAD), lambda i: (i, 0)),
        ),
        compiler_params=pltpu.CompilerParams(
            dimension_semantics=(batch_sem,)),
        cost_estimate=pl.CostEstimate(
            flops=flops, transcendentals=0, bytes_accessed=bytes_accessed),
    )(x, w0, b0, w1, b1, w2, b2)

    return out[:B, :NUM_CLASSES]


def init_params(key):
    """Deterministic synthetic params, stored pre-transposed as (in, out), fp32."""
    k0, k1, k2, k3, k4, k5 = jax.random.split(key, 6)

    def uniform_like_torch(k, fan_in, shape):
        bound = 1.0 / jnp.sqrt(fan_in)
        return jax.random.uniform(k, shape, jnp.float32, -bound, bound)

    return {
        # fc_0: (1296 -> 512)
        "w0": uniform_like_torch(k0, INPUT_SIZE, (INPUT_SIZE, HIDDEN_0)),
        "b0": uniform_like_torch(k1, INPUT_SIZE, (1, HIDDEN_0)),
        # fc_1: (512 -> 256)
        "w1": uniform_like_torch(k2, HIDDEN_0, (HIDDEN_0, HIDDEN_1)),
        "b1": uniform_like_torch(k3, HIDDEN_0, (1, HIDDEN_1)),
        # fc_2: (256 -> 16)
        "w2": uniform_like_torch(k4, HIDDEN_1, (HIDDEN_1, NUM_CLASSES)),
        "b2": uniform_like_torch(k5, HIDDEN_1, (1, NUM_CLASSES)),
    }


def prepare_params(params):
    """Cast params once for the kernel (bf16 weights, f32 biases).

    Only fc_2's output dim is padded (16 -> 128) for a lane-dense output slab;
    the fc_0 K dim (1296) is left unpadded (full-dim BlockSpec handles it).
    """
    w0 = params["w0"].astype(jnp.bfloat16)
    b0 = params["b0"].astype(jnp.float32)
    w1 = params["w1"].astype(jnp.bfloat16)
    b1 = params["b1"].astype(jnp.float32)
    w2 = jnp.pad(params["w2"],
                 ((0, 0), (0, OUT_PAD - NUM_CLASSES))).astype(jnp.bfloat16)
    b2 = jnp.pad(params["b2"],
                 ((0, 0), (0, OUT_PAD - NUM_CLASSES))).astype(jnp.float32)
    return {"w0": w0, "b0": b0, "w1": w1, "b1": b1, "w2": w2, "b2": b2}


def reference_forward(x, params):
    h0 = jnp.maximum(x @ params["w0"] + params["b0"], 0.0)
    h1 = jnp.maximum(h0 @ params["w1"] + params["b1"], 0.0)
    return h1 @ params["w2"] + params["b2"]


if __name__ == "__main__":
    key = jax.random.PRNGKey(0)
    kp, kx1, kx2 = jax.random.split(key, 3)
    params = init_params(kp)
    kparams = prepare_params(params)

    # Main case: B=512 -> two grid steps of 256 rows (second x-tile DMA overlaps
    # step-1 compute). Batch axis is "arbitrary" at this size (no duplicated
    # weight DMA on v7x).
    B = 512
    x = jax.random.normal(kx1, (B, INPUT_SIZE), jnp.float32)
    out = jax.block_until_ready(mlp_forward(x, kparams))
    ref = reference_forward(x, params)
    assert out.shape == (B, NUM_CLASSES)
    assert jnp.allclose(out, ref, atol=3e-2, rtol=3e-2), float(
        jnp.max(jnp.abs(out - ref)))

    # Small batch: exercises the tiny-tile path (tb=8, grid=1, no padding).
    Bs = 8
    xs = jax.random.normal(kx2, (Bs, INPUT_SIZE), jnp.float32)
    outs = jax.block_until_ready(mlp_forward(xs, kparams))
    refs = reference_forward(xs, params)
    assert outs.shape == (Bs, NUM_CLASSES)
    assert jnp.allclose(outs, refs, atol=3e-2, rtol=3e-2), float(
        jnp.max(jnp.abs(outs - refs)))

    print("KERNEL_OK")
</pallas_src>

<mosaic_0001>
module attributes {stable_mosaic.version = 11 : i64} {
  func.func @_mlp_kernel(%arg0: i32, %arg1: memref<256x1296xf32, #tpu.memory_space<vmem>>, %arg2: memref<1296x512xbf16, #tpu.memory_space<vmem>>, %arg3: memref<1x512xf32, #tpu.memory_space<vmem>>, %arg4: memref<512x256xbf16, #tpu.memory_space<vmem>>, %arg5: memref<1x256xf32, #tpu.memory_space<vmem>>, %arg6: memref<256x128xbf16, #tpu.memory_space<vmem>>, %arg7: memref<1x128xf32, #tpu.memory_space<vmem>>, %arg8: memref<256x128xf32, #tpu.memory_space<vmem>>) attributes {dimension_semantics = [#tpu.dimension_semantics<arbitrary>], iteration_bounds = array<i64: 2>, scalar_prefetch = 0 : i64, scratch_operands = 0 : i64, tpu.core_type = #tpu.core_type<tc>, window_params = [{transform_indices = @transform_0, window_bounds = array<i64: 256, 1296>}, {pipeline_mode = #tpu.pipeline_mode<synchronous>, transform_indices = @transform_1, window_bounds = array<i64: 1296, 512>}, {pipeline_mode = #tpu.pipeline_mode<synchronous>, transform_indices = @transform_2, window_bounds = array<i64: 1, 512>}, {pipeline_mode = #tpu.pipeline_mode<synchronous>, transform_indices = @transform_3, window_bounds = array<i64: 512, 256>}, {pipeline_mode = #tpu.pipeline_mode<synchronous>, transform_indices = @transform_4, window_bounds = array<i64: 1, 256>}, {pipeline_mode = #tpu.pipeline_mode<synchronous>, transform_indices = @transform_5, window_bounds = array<i64: 256, 128>}, {pipeline_mode = #tpu.pipeline_mode<synchronous>, transform_indices = @transform_6, window_bounds = array<i64: 1, 128>}, {transform_indices = @transform_7, window_bounds = array<i64: 256, 128>}]} {
    %c0 = arith.constant 0 : index
    %c0_0 = arith.constant 0 : index
    %0 = vector.load %arg1[%c0, %c0_0] : memref<256x1296xf32, #tpu.memory_space<vmem>>, vector<256x1296xf32>
    %1 = arith.truncf %0 : vector<256x1296xf32> to vector<256x1296xbf16>
    %c0_1 = arith.constant 0 : index
    %c0_2 = arith.constant 0 : index
    %2 = vector.load %arg2[%c0_1, %c0_2] : memref<1296x512xbf16, #tpu.memory_space<vmem>>, vector<1296x512xbf16>
    %cst = arith.constant dense<0.000000e+00> : vector<256x512xf32>
    %3 = tpu.matmul %1, %2, %cst {dimension_numbers = #tpu.dot_dimension_numbers<[1], [0], [0], [1], [0, 0, 1, 1], [], []>} : vector<256x1296xbf16>, vector<1296x512xbf16>, vector<256x512xf32> -> vector<256x512xf32>
    %c0_3 = arith.constant 0 : index
    %c0_4 = arith.constant 0 : index
    %4 = vector.load %arg3[%c0_3, %c0_4] : memref<1x512xf32, #tpu.memory_space<vmem>>, vector<1x512xf32>
    %5 = vector.broadcast %4 : vector<1x512xf32> to vector<256x512xf32>
    %6 = arith.addf %3, %5 : vector<256x512xf32>
    %cst_5 = arith.constant 0.000000e+00 : f32
    %7 = vector.broadcast %cst_5 : f32 to vector<256x512xf32>
    %8 = arith.maximumf %6, %7 : vector<256x512xf32>
    %9 = arith.truncf %8 : vector<256x512xf32> to vector<256x512xbf16>
    %c0_6 = arith.constant 0 : index
    %c0_7 = arith.constant 0 : index
    %10 = vector.load %arg4[%c0_6, %c0_7] : memref<512x256xbf16, #tpu.memory_space<vmem>>, vector<512x256xbf16>
    %cst_8 = arith.constant dense<0.000000e+00> : vector<256x256xf32>
    %11 = tpu.matmul %9, %10, %cst_8 {dimension_numbers = #tpu.dot_dimension_numbers<[1], [0], [0], [1], [0, 0, 1, 1], [], []>} : vector<256x512xbf16>, vector<512x256xbf16>, vector<256x256xf32> -> vector<256x256xf32>
    %c0_9 = arith.constant 0 : index
    %c0_10 = arith.constant 0 : index
    %12 = vector.load %arg5[%c0_9, %c0_10] : memref<1x256xf32, #tpu.memory_space<vmem>>, vector<1x256xf32>
    %13 = vector.broadcast %12 : vector<1x256xf32> to vector<256x256xf32>
    %14 = arith.addf %11, %13 : vector<256x256xf32>
    %cst_11 = arith.constant 0.000000e+00 : f32
    %15 = vector.broadcast %cst_11 : f32 to vector<256x256xf32>
    %16 = arith.maximumf %14, %15 : vector<256x256xf32>
    %17 = arith.truncf %16 : vector<256x256xf32> to vector<256x256xbf16>
    %c0_12 = arith.constant 0 : index
    %c0_13 = arith.constant 0 : index
    %18 = vector.load %arg6[%c0_12, %c0_13] : memref<256x128xbf16, #tpu.memory_space<vmem>>, vector<256x128xbf16>
    %cst_14 = arith.constant dense<0.000000e+00> : vector<256x128xf32>
    %19 = tpu.matmul %17, %18, %cst_14 {dimension_numbers = #tpu.dot_dimension_numbers<[1], [0], [0], [1], [0, 0, 1, 1], [], []>} : vector<256x256xbf16>, vector<256x128xbf16>, vector<256x128xf32> -> vector<256x128xf32>
    %c0_15 = arith.constant 0 : index
    %c0_16 = arith.constant 0 : index
    %20 = vector.load %arg7[%c0_15, %c0_16] : memref<1x128xf32, #tpu.memory_space<vmem>>, vector<1x128xf32>
    %21 = vector.broadcast %20 : vector<1x128xf32> to vector<256x128xf32>
    %22 = arith.addf %19, %21 : vector<256x128xf32>
    %c0_17 = arith.constant 0 : index
    %c0_18 = arith.constant 0 : index
    %23 = vector.load %arg8[%c0_17, %c0_18] : memref<256x128xf32, #tpu.memory_space<vmem>>, vector<256x128xf32>
    tpu.vector_store %arg8[%c0_17, %c0_18], %22 {strides = array<i32>} : memref<256x128xf32, #tpu.memory_space<vmem>>, vector<256x128xf32>,
    return
  }
  func.func @transform_0(%arg0: i32) -> (i32, i32) {
    %c0_i32 = arith.constant 0 : i32
    %c0_i32_0 = arith.constant 0 : i32
    return %arg0, %c0_i32 : i32, i32
  }
  func.func @transform_1(%arg0: i32) -> (i32, i32) {
    %c0_i32 = arith.constant 0 : i32
    %c0_i32_0 = arith.constant 0 : i32
    %c0_i32_1 = arith.constant 0 : i32
    return %c0_i32, %c0_i32_0 : i32, i32
  }
  func.func @transform_2(%arg0: i32) -> (i32, i32) {
    %c0_i32 = arith.constant 0 : i32
    %c0_i32_0 = arith.constant 0 : i32
    %c0_i32_1 = arith.constant 0 : i32
    return %c0_i32, %c0_i32_0 : i32, i32
  }
  func.func @transform_3(%arg0: i32) -> (i32, i32) {
    %c0_i32 = arith.constant 0 : i32
    %c0_i32_0 = arith.constant 0 : i32
    %c0_i32_1 = arith.constant 0 : i32
    return %c0_i32, %c0_i32_0 : i32, i32
  }
  func.func @transform_4(%arg0: i32) -> (i32, i32) {
    %c0_i32 = arith.constant 0 : i32
    %c0_i32_0 = arith.constant 0 : i32
    %c0_i32_1 = arith.constant 0 : i32
    return %c0_i32, %c0_i32_0 : i32, i32
  }
  func.func @transform_5(%arg0: i32) -> (i32, i32) {
    %c0_i32 = arith.constant 0 : i32
    %c0_i32_0 = arith.constant 0 : i32
    %c0_i32_1 = arith.constant 0 : i32
    return %c0_i32, %c0_i32_0 : i32, i32
  }
  func.func @transform_6(%arg0: i32) -> (i32, i32) {
    %c0_i32 = arith.constant 0 : i32
    %c0_i32_0 = arith.constant 0 : i32
    %c0_i32_1 = arith.constant 0 : i32
    return %c0_i32, %c0_i32_0 : i32, i32
  }
  func.func @transform_7(%arg0: i32) -> (i32, i32) {
    %c0_i32 = arith.constant 0 : i32
    %c0_i32_0 = arith.constant 0 : i32
    return %arg0, %c0_i32 : i32, i32
  }
}

</mosaic_0001>

<llo_original>
// kernel: mlp_forward.1
$region0: #{mlp_forward.1}
  #allocation0 [shape = 'u32[]', space=smem, size = 0x4, offset = 0x4, fixed_abs, tag = 'smem constant byte address 0x4 - core index']
  #allocation1 [shape = 'u32[144,128]{1,0:T(1,128)}', space=vmem, size = 0x12000, scoped, tag = 'internal scratch']
  %s0 = inlined_call_operand.vmem [shape: f32[512,1296], index: 0, kind: input, shape index: {}]
  %s1 = inlined_call_operand.vmem [shape: bf16[1296,512], index: 1, kind: input, shape index: {}]
  %s2 = inlined_call_operand.vmem [shape: f32[1,512], index: 2, kind: input, shape index: {}]
  %s3 = inlined_call_operand.vmem [shape: bf16[512,256], index: 3, kind: input, shape index: {}]
  %s4 = inlined_call_operand.vmem [shape: f32[1,256], index: 4, kind: input, shape index: {}]
  %s5 = inlined_call_operand.vmem [shape: bf16[256,128], index: 5, kind: input, shape index: {}]
  %s6 = inlined_call_operand.vmem [shape: f32[1,128], index: 6, kind: input, shape index: {}]
  %s7 = inlined_call_operand.vmem [shape: f32[512,128], index: 7, kind: output, shape index: {}]
  %s8 = sld [smem:[#allocation0]]
  $region61: #{mlp_forward.1} parent=0
    _
  %s10 = ssub.s32 1, %s8
  %s11 = scalar_select 0, %s10, %s8
  loop: start=0, step=1, limit=4
  $region2: #{mlp_forward.1} parent=0 // loop_pre_header
    _
  $region3: #{mlp_forward.1} parent=0 // loop_header
    %s13 = sphi 0, %s17
    %p14 = scmp.ge.s32.totalorder %s13, 4
    %s23 = sphi 0, %s25
    %s26 = sphi 0, %s23
    %s27 = sphi 0, %s26
    %s43 = sphi 0, %s27
    %s47 = sphi 0, %s47
    %s49 = sphi 0, %s47
    %s50 = sphi 0, %s49
    %s64 = sphi 0, %s50
    %s68 = sphi 0, %s68
    %s70 = sphi 0, %s68
    %s71 = sphi 0, %s70
    %s85 = sphi 0, %s71
    %s89 = sphi 0, %s89
    %s91 = sphi 0, %s89
    %s92 = sphi 0, %s91
    %s106 = sphi 0, %s92
    %s110 = sphi 0, %s110
    %s112 = sphi 0, %s110
    %s113 = sphi 0, %s112
    %s127 = sphi 0, %s113
    %s131 = sphi 0, %s131
    %s133 = sphi 0, %s131
    %s134 = sphi 0, %s133
    %s148 = sphi 0, %s134
    %s152 = sphi 0, %s152
    %s154 = sphi 0, %s152
    %s155 = sphi 0, %s154
    %s169 = sphi 0, %s155
    %s175 = sphi 0, %s177
    %s178 = sphi 0, %s175
    %s179 = sphi 0, %s178
    %s195 = sphi 0, %s179
  $region4: #{mlp_forward.1} parent=0 // loop_header_branch
    %16 = sbr.rel (%p14) target = $region8
  $region5: #{mlp_forward.1} parent=0 // loop_body
    %s18 = ssub.s32 %s13, 1
    %s19 = ssub.s32 %s13, 2
    %s20 = sadd.s32 %s13, 1
    %s21 = ssub.s32 %s13, %s20
    %p22 = scmp.eq.s32.totalorder %s21, 0
    %s24 = sadd.s32 %s23, 1
    %s25 = scalar_select %p22, %s23, %s24
    %p28 = pneg %p22
    %p29 = scmp.eq.s32.totalorder %s13, 1
    %p30 = por %p28, %p29
    %p31 = scmp.ne.s32.totalorder %s23, %s26
    %p32 = scmp.eq.s32.totalorder %s13, 0
    %p33 = por %p31, %p32
    %p34 = scmp.ne.s32.totalorder %s23, %s26
    %p35 = scmp.eq.s32.totalorder %s18, 1
    %p36 = por %p34, %p35
    %p37 = scmp.ne.s32.totalorder %s26, %s27
    %p38 = scmp.eq.s32.totalorder %s18, 0
    %p39 = por %p37, %p38
    %p40 = scmp.ne.s32.totalorder %s26, %s27
    %p41 = scmp.eq.s32.totalorder %s19, 1
    %p42 = por %p40, %p41
    %p44 = scmp.ne.s32.totalorder %s27, %s43
    %p45 = scmp.eq.s32.totalorder %s19, 0
    %p46 = por %p44, %p45
    %s48 = sadd.s32 %s47, 1
    %p51 = scmp.eq.s32.totalorder %s13, 1
    %p52 = scmp.ne.s32.totalorder %s47, %s49
    %p53 = scmp.eq.s32.totalorder %s13, 0
    %p54 = por %p52, %p53
    %p55 = scmp.ne.s32.totalorder %s47, %s49
    %p56 = scmp.eq.s32.totalorder %s18, 1
    %p57 = por %p55, %p56
    %p58 = scmp.ne.s32.totalorder %s49, %s50
    %p59 = scmp.eq.s32.totalorder %s18, 0
    %p60 = por %p58, %p59
    %p61 = scmp.ne.s32.totalorder %s49, %s50
    %p62 = scmp.eq.s32.totalorder %s19, 1
    %p63 = por %p61, %p62
    %p65 = scmp.ne.s32.totalorder %s50, %s64
    %p66 = scmp.eq.s32.totalorder %s19, 0
    %p67 = por %p65, %p66
    %s69 = sadd.s32 %s68, 1
    %p72 = scmp.eq.s32.totalorder %s13, 1
    %p73 = scmp.ne.s32.totalorder %s68, %s70
    %p74 = scmp.eq.s32.totalorder %s13, 0
    %p75 = por %p73, %p74
    %p76 = scmp.ne.s32.totalorder %s68, %s70
    %p77 = scmp.eq.s32.totalorder %s18, 1
    %p78 = por %p76, %p77
    %p79 = scmp.ne.s32.totalorder %s70, %s71
    %p80 = scmp.eq.s32.totalorder %s18, 0
    %p81 = por %p79, %p80
    %p82 = scmp.ne.s32.totalorder %s70, %s71
    %p83 = scmp.eq.s32.totalorder %s19, 1
    %p84 = por %p82, %p83
    %p86 = scmp.ne.s32.totalorder %s71, %s85
    %p87 = scmp.eq.s32.totalorder %s19, 0
    %p88 = por %p86, %p87
    %s90 = sadd.s32 %s89, 1
    %p93 = scmp.eq.s32.totalorder %s13, 1
    %p94 = scmp.ne.s32.totalorder %s89, %s91
    %p95 = scmp.eq.s32.totalorder %s13, 0
    %p96 = por %p94, %p95
    %p97 = scmp.ne.s32.totalorder %s89, %s91
    %p98 = scmp.eq.s32.totalorder %s18, 1
    %p99 = por %p97, %p98
    %p100 = scmp.ne.s32.totalorder %s91, %s92
    %p101 = scmp.eq.s32.totalorder %s18, 0
    %p102 = por %p100, %p101
    %p103 = scmp.ne.s32.totalorder %s91, %s92
    %p104 = scmp.eq.s32.totalorder %s19, 1
    %p105 = por %p103, %p104
    %p107 = scmp.ne.s32.totalorder %s92, %s106
    %p108 = scmp.eq.s32.totalorder %s19, 0
    %p109 = por %p107, %p108
    %s111 = sadd.s32 %s110, 1
    %p114 = scmp.eq.s32.totalorder %s13, 1
    %p115 = scmp.ne.s32.totalorder %s110, %s112
    %p116 = scmp.eq.s32.totalorder %s13, 0
    %p117 = por %p115, %p116
    %p118 = scmp.ne.s32.totalorder %s110, %s112
    %p119 = scmp.eq.s32.totalorder %s18, 1
    %p120 = por %p118, %p119
    %p121 = scmp.ne.s32.totalorder %s112, %s113
    %p122 = scmp.eq.s32.totalorder %s18, 0
    %p123 = por %p121, %p122
    %p124 = scmp.ne.s32.totalorder %s112, %s113
    %p125 = scmp.eq.s32.totalorder %s19, 1
    %p126 = por %p124, %p125
    %p128 = scmp.ne.s32.totalorder %s113, %s127
    %p129 = scmp.eq.s32.totalorder %s19, 0
    %p130 = por %p128, %p129
    %s132 = sadd.s32 %s131, 1
    %p135 = scmp.eq.s32.totalorder %s13, 1
    %p136 = scmp.ne.s32.totalorder %s131, %s133
    %p137 = scmp.eq.s32.totalorder %s13, 0
    %p138 = por %p136, %p137
    %p139 = scmp.ne.s32.totalorder %s131, %s133
    %p140 = scmp.eq.s32.totalorder %s18, 1
    %p141 = por %p139, %p140
    %p142 = scmp.ne.s32.totalorder %s133, %s134
    %p143 = scmp.eq.s32.totalorder %s18, 0
    %p144 = por %p142, %p143
    %p145 = scmp.ne.s32.totalorder %s133, %s134
    %p146 = scmp.eq.s32.totalorder %s19, 1
    %p147 = por %p145, %p146
    %p149 = scmp.ne.s32.totalorder %s134, %s148
    %p150 = scmp.eq.s32.totalorder %s19, 0
    %p151 = por %p149, %p150
    %s153 = sadd.s32 %s152, 1
    %p156 = scmp.eq.s32.totalorder %s13, 1
    %p157 = scmp.ne.s32.totalorder %s152, %s154
    %p158 = scmp.eq.s32.totalorder %s13, 0
    %p159 = por %p157, %p158
    %p160 = scmp.ne.s32.totalorder %s152, %s154
    %p161 = scmp.eq.s32.totalorder %s18, 1
    %p162 = por %p160, %p161
    %p163 = scmp.ne.s32.totalorder %s154, %s155
    %p164 = scmp.eq.s32.totalorder %s18, 0
    %p165 = por %p163, %p164
    %p166 = scmp.ne.s32.totalorder %s154, %s155
    %p167 = scmp.eq.s32.totalorder %s19, 1
    %p168 = por %p166, %p167
    %p170 = scmp.ne.s32.totalorder %s155, %s169
    %p171 = scmp.eq.s32.totalorder %s19, 0
    %p172 = por %p170, %p171
    %s173 = ssub.s32 %s13, %s20
    %p174 = scmp.eq.s32.totalorder %s173, 0
    %s176 = sadd.s32 %s175, 1
    %s177 = scalar_select %p174, %s175, %s176
    %p180 = pneg %p174
    %p181 = scmp.eq.s32.totalorder %s13, 1
    %p182 = por %p180, %p181
    %p183 = scmp.ne.s32.totalorder %s175, %s178
    %p184 = scmp.eq.s32.totalorder %s13, 0
    %p185 = por %p183, %p184
    %p186 = scmp.ne.s32.totalorder %s175, %s178
    %p187 = scmp.eq.s32.totalorder %s18, 1
    %p188 = por %p186, %p187
    %p189 = scmp.ne.s32.totalorder %s178, %s179
    %p190 = scmp.eq.s32.totalorder %s18, 0
    %p191 = por %p189, %p190
    %p192 = scmp.ne.s32.totalorder %s178, %s179
    %p193 = scmp.eq.s32.totalorder %s19, 1
    %p194 = por %p192, %p193
    %p196 = scmp.ne.s32.totalorder %s179, %s195
    %p197 = scmp.eq.s32.totalorder %s19, 0
    %p198 = por %p196, %p197
    %p199 = scmp.le.s32.totalorder 1, %s13
    %p200 = scmp.lt.s32.totalorder %s13, 3
    %p201 = pnand %p199, %p200
    %p202 = pneg %p201
    // Predicated region
    $region9: #{mlp_forward.1} parent=5 // pred_check
      _
    $region10: #{mlp_forward.1} parent=5 // pred_check_branch
      %204 = sbr.rel (%p201) target = $region12
    $region11: #{mlp_forward.1} parent=5 // pred_region
      %s205 = ssub.s32 %s13, 1
      // Predicated region
      $region13: #{mlp_forward.1} parent=11 // pred_check
        %p206 = pneg %p60
      $region14: #{mlp_forward.1} parent=11 // pred_check_branch
        %208 = sbr.rel (%p206) target = $region16
      $region15: #{mlp_forward.1} parent=11 // pred_region
        _
      $region16: #{mlp_forward.1} parent=11 // pred_fallthru
        _
      // Predicated region
      $region17: #{mlp_forward.1} parent=11 // pred_check
        %p209 = pneg %p81
      $region18: #{mlp_forward.1} parent=11 // pred_check_branch
        %211 = sbr.rel (%p209) target = $region20
      $region19: #{mlp_forward.1} parent=11 // pred_region
        _
      $region20: #{mlp_forward.1} parent=11 // pred_fallthru
        _
      // Predicated region
      $region21: #{mlp_forward.1} parent=11 // pred_check
        %p212 = pneg %p102
      $region22: #{mlp_forward.1} parent=11 // pred_check_branch
        %214 = sbr.rel (%p212) target = $region24
      $region23: #{mlp_forward.1} parent=11 // pred_region
        _
      $region24: #{mlp_forward.1} parent=11 // pred_fallthru
        _
      // Predicated region
      $region25: #{mlp_forward.1} parent=11 // pred_check
        %p215 = pneg %p123
      $region26: #{mlp_forward.1} parent=11 // pred_check_branch
        %217 = sbr.rel (%p215) target = $region28
      $region27: #{mlp_forward.1} parent=11 // pred_region
        _
      $region28: #{mlp_forward.1} parent=11 // pred_fallthru
        _
      // Predicated region
      $region29: #{mlp_forward.1} parent=11 // pred_check
        %p218 = pneg %p144
      $region30: #{mlp_forward.1} parent=11 // pred_check_branch
        %220 = sbr.rel (%p218) target = $region32
      $region31: #{mlp_forward.1} parent=11 // pred_region
        _
      $region32: #{mlp_forward.1} parent=11 // pred_fallthru
        _
      // Predicated region
      $region33: #{mlp_forward.1} parent=11 // pred_check
        %p221 = pneg %p165
      $region34: #{mlp_forward.1} parent=11 // pred_check_branch
        %223 = sbr.rel (%p221) target = $region36
      $region35: #{mlp_forward.1} parent=11 // pred_region
        _
      $region36: #{mlp_forward.1} parent=11 // pred_fallthru
        _
    $region12: #{mlp_forward.1} parent=5 // pred_fallthru
      _
    %p224 = scmp.lt.s32.totalorder %s13, 2
    // Predicated region
    $region37: #{mlp_forward.1} parent=5 // pred_check
      %p225 = pneg %p224
    $region38: #{mlp_forward.1} parent=5 // pred_check_branch
      %227 = sbr.rel (%p225) target = $region40
    $region39: #{mlp_forward.1} parent=5 // pred_region
      // Predicated region
      $region41: #{mlp_forward.1} parent=39 // pred_check
        %p228 = pneg %p33
      $region42: #{mlp_forward.1} parent=39 // pred_check_branch
        %230 = sbr.rel (%p228) target = $region44
      $region43: #{mlp_forward.1} parent=39 // pred_region
        %s231 = smul.u32 32, %s13
        %p232 = scmp.lt.s32.totalorder %s231, 63
        %s233 = scalar_select %p232, %s231, 63
        %s234 = smul.addr %s233, 11
        %s235 = smul.addr %s234, 8
        %s236 = scalar_lea.vmem %s0, %s235
        %s237 = smul.u32 32, %s13
      $region44: #{mlp_forward.1} parent=39 // pred_fallthru
        _
    $region40: #{mlp_forward.1} parent=5 // pred_fallthru
      _
    %p238 = scmp.le.s32.totalorder 1, %s13
    %p239 = scmp.lt.s32.totalorder %s13, 3
    %p240 = pnand %p238, %p239
    %p241 = pneg %p240
    // Predicated region
    $region45: #{mlp_forward.1} parent=5 // pred_check
      _
    $region46: #{mlp_forward.1} parent=5 // pred_check_branch
      %243 = sbr.rel (%p240) target = $region48
    $region47: #{mlp_forward.1} parent=5 // pred_region
      %s244 = ssub.s32 %s13, 1
      %s245 = smul.u32 32, %s18
      %p246 = scmp.lt.s32.totalorder %s245, 63
      %s247 = scalar_select %p246, %s245, 63
      %s248 = smul.addr %s247, 11
      %s249 = smul.addr %s248, 8
      %s250 = scalar_lea.vmem %s0, %s249
      %p251 = pneg %p39
      %p252 = pneg %p36
      %p253 = pneg %p60
      %p254 = pneg %p57
      %p255 = pneg %p81
      %p256 = pneg %p78
      %p257 = pneg %p102
      %p258 = pneg %p99
      %p259 = pneg %p123
      %p260 = pneg %p120
      %p261 = pneg %p144
      %p262 = pneg %p141
      %p263 = pneg %p165
      %p264 = pneg %p162
      %p265 = pneg %p191
      %p266 = pneg %p188
      %s267 = smul.u32 32, %s18
      %p268 = scmp.lt.s32.totalorder %s267, 63
      %s269 = scalar_select %p268, %s267, 63
      %s270 = smul.addr %s269, 8
      %s271 = scalar_lea.vmem %s7, %s270
      %s272 = smul.u32 32, %s18
      %p273 = scmp.lt.s32.totalorder %s272, 63
      %s274 = scalar_select %p273, %s272, 63
      %s275 = smul.addr %s274, 11
      %s276 = smul.addr %s275, 8
      %s277 = scalar_lea.vmem %s0, %s276
      %s278 = smul.u32 32, %s18
      %s279 = smul.u32 32, %s18
      %p280 = scmp.lt.s32.totalorder %s279, 63
      %s281 = scalar_select %p280, %s279, 63
      %s282 = smul.addr %s281, 8
      %s283 = scalar_lea.vmem %s7, %s282
      %s284 = smul.u32 32, %s18
      %v286 = vld [vmem:[%s277] sm:$0xff]
      %v287 = vld [vmem:[%s277 + $0x8] sm:$0xff]
      %v288 = vld [vmem:[%s277 + $0x10] sm:$0xff]
      %v289 = vld [vmem:[%s277 + $0x18] sm:$0xff]
      %v290 = vld [vmem:[%s277 + $0x20] sm:$0xff]
      %v291 = vld [vmem:[%s277 + $0x28] sm:$0xff]
      %v292 = vld [vmem:[%s277 + $0x30] sm:$0xff]
      %v293 = vld [vmem:[%s277 + $0x38] sm:$0xff]
      %v294 = vld [vmem:[%s277 + $0x40] sm:$0xff]
      %v295 = vld [vmem:[%s277 + $0x48] sm:$0xff]
      %v296 = vld [vmem:[%s277 + $0x50] sm:$0xff]
      %v297 = vld [vmem:[%s277 + $0x58] sm:$0xff]
      %v298 = vld [vmem:[%s277 + $0x60] sm:$0xff]
      %v299 = vld [vmem:[%s277 + $0x68] sm:$0xff]
      %v300 = vld [vmem:[%s277 + $0x70] sm:$0xff]
      %v301 = vld [vmem:[%s277 + $0x78] sm:$0xff]
      %v302 = vld [vmem:[%s277 + $0x80] sm:$0xff]
      %v303 = vld [vmem:[%s277 + $0x88] sm:$0xff]
      %v304 = vld [vmem:[%s277 + $0x90] sm:$0xff]
      %v305 = vld [vmem:[%s277 + $0x98] sm:$0xff]
      %v306 = vld [vmem:[%s277 + $0xa0] sm:$0xff]
      %v307 = vld [vmem:[%s277 + $0xa8] sm:$0xff]
      %v308 = vld [vmem:[%s277 + $0xb0] sm:$0xff]
      %v309 = vld [vmem:[%s277 + $0xb8] sm:$0xff]
      %v310 = vld [vmem:[%s277 + $0xc0] sm:$0xff]
      %v311 = vld [vmem:[%s277 + $0xc8] sm:$0xff]
      %v312 = vld [vmem:[%s277 + $0xd0] sm:$0xff]
      %v313 = vld [vmem:[%s277 + $0xd8] sm:$0xff]
      %v314 = vld [vmem:[%s277 + $0xe0] sm:$0xff]
      %v315 = vld [vmem:[%s277 + $0xe8] sm:$0xff]
      %v316 = vld [vmem:[%s277 + $0xf0] sm:$0xff]
      %v317 = vld [vmem:[%s277 + $0xf8] sm:$0xff]
      %v318 = vld [vmem:[%s277 + $0x100] sm:$0xff]
      %v319 = vld [vmem:[%s277 + $0x108] sm:$0xff]
      %v320 = vld [vmem:[%s277 + $0x110] sm:$0xff]
      %v321 = vld [vmem:[%s277 + $0x118] sm:$0xff]
      %v322 = vld [vmem:[%s277 + $0x120] sm:$0xff]
      %v323 = vld [vmem:[%s277 + $0x128] sm:$0xff]
      %v324 = vld [vmem:[%s277 + $0x130] sm:$0xff]
      %v325 = vld [vmem:[%s277 + $0x138] sm:$0xff]
      %v326 = vld [vmem:[%s277 + $0x140] sm:$0xff]
      %v327 = vld [vmem:[%s277 + $0x148] sm:$0xff]
      %v328 = vld [vmem:[%s277 + $0x150] sm:$0xff]
      %v329 = vld [vmem:[%s277 + $0x158] sm:$0xff]
      %v330 = vld [vmem:[%s277 + $0x160] sm:$0xff]
      %v331 = vld [vmem:[%s277 + $0x168] sm:$0xff]
      %v332 = vld [vmem:[%s277 + $0x170] sm:$0xff]
      %v333 = vld [vmem:[%s277 + $0x178] sm:$0xff]
      %v334 = vld [vmem:[%s277 + $0x180] sm:$0xff]
      %v335 = vld [vmem:[%s277 + $0x188] sm:$0xff]
      %v336 = vld [vmem:[%s277 + $0x190] sm:$0xff]
      %v337 = vld [vmem:[%s277 + $0x198] sm:$0xff]
      %v338 = vld [vmem:[%s277 + $0x1a0] sm:$0xff]
      %v339 = vld [vmem:[%s277 + $0x1a8] sm:$0xff]
      %v340 = vld [vmem:[%s277 + $0x1b0] sm:$0xff]
      %v341 = vld [vmem:[%s277 + $0x1b8] sm:$0xff]
      %v342 = vld [vmem:[%s277 + $0x1c0] sm:$0xff]
      %v343 = vld [vmem:[%s277 + $0x1c8] sm:$0xff]
      %v344 = vld [vmem:[%s277 + $0x1d0] sm:$0xff]
      %v345 = vld [vmem:[%s277 + $0x1d8] sm:$0xff]
      %v346 = vld [vmem:[%s277 + $0x1e0] sm:$0xff]
      %v347 = vld [vmem:[%s277 + $0x1e8] sm:$0xff]
      %v348 = vld [vmem:[%s277 + $0x1f0] sm:$0xff]
      %v349 = vld [vmem:[%s277 + $0x1f8] sm:$0xff]
      %v350 = vld [vmem:[%s277 + $0x200] sm:$0xff]
      %v351 = vld [vmem:[%s277 + $0x208] sm:$0xff]
      %v352 = vld [vmem:[%s277 + $0x210] sm:$0xff]
      %v353 = vld [vmem:[%s277 + $0x218] sm:$0xff]
      %v354 = vld [vmem:[%s277 + $0x220] sm:$0xff]
      %v355 = vld [vmem:[%s277 + $0x228] sm:$0xff]
      %v356 = vld [vmem:[%s277 + $0x230] sm:$0xff]
      %v357 = vld [vmem:[%s277 + $0x238] sm:$0xff]
      %v358 = vld [vmem:[%s277 + $0x240] sm:$0xff]
      %v359 = vld [vmem:[%s277 + $0x248] sm:$0xff]
      %v360 = vld [vmem:[%s277 + $0x250] sm:$0xff]
      %v361 = vld [vmem:[%s277 + $0x258] sm:$0xff]
      %v362 = vld [vmem:[%s277 + $0x260] sm:$0xff]
      %v363 = vld [vmem:[%s277 + $0x268] sm:$0xff]
      %v364 = vld [vmem:[%s277 + $0x270] sm:$0xff]
      %v365 = vld [vmem:[%s277 + $0x278] sm:$0xff]
      %v366 = vld [vmem:[%s277 + $0x280] sm:$0xff]
      %v367 = vld [vmem:[%s277 + $0x288] sm:$0xff]
      %v368 = vld [vmem:[%s277 + $0x290] sm:$0xff]
      %v369 = vld [vmem:[%s277 + $0x298] sm:$0xff]
      %v370 = vld [vmem:[%s277 + $0x2a0] sm:$0xff]
      %v371 = vld [vmem:[%s277 + $0x2a8] sm:$0xff]
      %v372 = vld [vmem:[%s277 + $0x2b0] sm:$0xff]
      %v373 = vld [vmem:[%s277 + $0x2b8] sm:$0xff]
      %v374 = vld [vmem:[%s277 + $0x2c0] sm:$0xff]
      %v375 = vld [vmem:[%s277 + $0x2c8] sm:$0xff]
      %v376 = vld [vmem:[%s277 + $0x2d0] sm:$0xff]
      %v377 = vld [vmem:[%s277 + $0x2d8] sm:$0xff]
      %v378 = vld [vmem:[%s277 + $0x2e0] sm:$0xff]
      %v379 = vld [vmem:[%s277 + $0x2e8] sm:$0xff]
      %v380 = vld [vmem:[%s277 + $0x2f0] sm:$0xff]
      %v381 = vld [vmem:[%s277 + $0x2f8] sm:$0xff]
      %v382 = vld [vmem:[%s277 + $0x300] sm:$0xff]
      %v383 = vld [vmem:[%s277 + $0x308] sm:$0xff]
      %v384 = vld [vmem:[%s277 + $0x310] sm:$0xff]
      %v385 = vld [vmem:[%s277 + $0x318] sm:$0xff]
      %v386 = vld [vmem:[%s277 + $0x320] sm:$0xff]
      %v387 = vld [vmem:[%s277 + $0x328] sm:$0xff]
      %v388 = vld [vmem:[%s277 + $0x330] sm:$0xff]
      %v389 = vld [vmem:[%s277 + $0x338] sm:$0xff]
      %v390 = vld [vmem:[%s277 + $0x340] sm:$0xff]
      %v391 = vld [vmem:[%s277 + $0x348] sm:$0xff]
      %v392 = vld [vmem:[%s277 + $0x350] sm:$0xff]
      %v393 = vld [vmem:[%s277 + $0x358] sm:$0xff]
      %v394 = vld [vmem:[%s277 + $0x360] sm:$0xff]
      %v395 = vld [vmem:[%s277 + $0x368] sm:$0xff]
      %v396 = vld [vmem:[%s277 + $0x370] sm:$0xff]
      %v397 = vld [vmem:[%s277 + $0x378] sm:$0xff]
      %v398 = vld [vmem:[%s277 + $0x380] sm:$0xff]
      %v399 = vld [vmem:[%s277 + $0x388] sm:$0xff]
      %v400 = vld [vmem:[%s277 + $0x390] sm:$0xff]
      %v401 = vld [vmem:[%s277 + $0x398] sm:$0xff]
      %v402 = vld [vmem:[%s277 + $0x3a0] sm:$0xff]
      %v403 = vld [vmem:[%s277 + $0x3a8] sm:$0xff]
      %v404 = vld [vmem:[%s277 + $0x3b0] sm:$0xff]
      %v405 = vld [vmem:[%s277 + $0x3b8] sm:$0xff]
      %v406 = vld [vmem:[%s277 + $0x3c0] sm:$0xff]
      %v407 = vld [vmem:[%s277 + $0x3c8] sm:$0xff]
      %v408 = vld [vmem:[%s277 + $0x3d0] sm:$0xff]
      %v409 = vld [vmem:[%s277 + $0x3d8] sm:$0xff]
      %v410 = vld [vmem:[%s277 + $0x3e0] sm:$0xff]
      %v411 = vld [vmem:[%s277 + $0x3e8] sm:$0xff]
      %v412 = vld [vmem:[%s277 + $0x3f0] sm:$0xff]
      %v413 = vld [vmem:[%s277 + $0x3f8] sm:$0xff]
      %v414 = vld [vmem:[%s277 + $0x400] sm:$0xff]
      %v415 = vld [vmem:[%s277 + $0x408] sm:$0xff]
      %v416 = vld [vmem:[%s277 + $0x410] sm:$0xff]
      %v417 = vld [vmem:[%s277 + $0x418] sm:$0xff]
      %v418 = vld [vmem:[%s277 + $0x420] sm:$0xff]
      %v419 = vld [vmem:[%s277 + $0x428] sm:$0xff]
      %v420 = vld [vmem:[%s277 + $0x430] sm:$0xff]
      %v421 = vld [vmem:[%s277 + $0x438] sm:$0xff]
      %v422 = vld [vmem:[%s277 + $0x440] sm:$0xff]
      %v423 = vld [vmem:[%s277 + $0x448] sm:$0xff]
      %v424 = vld [vmem:[%s277 + $0x450] sm:$0xff]
      %v425 = vld [vmem:[%s277 + $0x458] sm:$0xff]
      %v426 = vld [vmem:[%s277 + $0x460] sm:$0xff]
      %v427 = vld [vmem:[%s277 + $0x468] sm:$0xff]
      %v428 = vld [vmem:[%s277 + $0x470] sm:$0xff]
      %v429 = vld [vmem:[%s277 + $0x478] sm:$0xff]
      %v430 = vld [vmem:[%s277 + $0x480] sm:$0xff]
      %v431 = vld [vmem:[%s277 + $0x488] sm:$0xff]
      %v432 = vld [vmem:[%s277 + $0x490] sm:$0xff]
      %v433 = vld [vmem:[%s277 + $0x498] sm:$0xff]
      %v434 = vld [vmem:[%s277 + $0x4a0] sm:$0xff]
      %v435 = vld [vmem:[%s277 + $0x4a8] sm:$0xff]
      %v436 = vld [vmem:[%s277 + $0x4b0] sm:$0xff]
      %v437 = vld [vmem:[%s277 + $0x4b8] sm:$0xff]
      %v438 = vld [vmem:[%s277 + $0x4c0] sm:$0xff]
      %v439 = vld [vmem:[%s277 + $0x4c8] sm:$0xff]
      %v440 = vld [vmem:[%s277 + $0x4d0] sm:$0xff]
      %v441 = vld [vmem:[%s277 + $0x4d8] sm:$0xff]
      %v442 = vld [vmem:[%s277 + $0x4e0] sm:$0xff]
      %v443 = vld [vmem:[%s277 + $0x4e8] sm:$0xff]
      %v444 = vld [vmem:[%s277 + $0x4f0] sm:$0xff]
      %v445 = vld [vmem:[%s277 + $0x4f8] sm:$0xff]
      %v446 = vld [vmem:[%s277 + $0x500] sm:$0xff]
      %v447 = vld [vmem:[%s277 + $0x508] sm:$0xff]
      %v448 = vld [vmem:[%s277 + $0x510] sm:$0xff]
      %v449 = vld [vmem:[%s277 + $0x518] sm:$0xff]
      %v450 = vld [vmem:[%s277 + $0x520] sm:$0xff]
      %v451 = vld [vmem:[%s277 + $0x528] sm:$0xff]
      %v452 = vld [vmem:[%s277 + $0x530] sm:$0xff]
      %v453 = vld [vmem:[%s277 + $0x538] sm:$0xff]
      %v454 = vld [vmem:[%s277 + $0x540] sm:$0xff]
      %v455 = vld [vmem:[%s277 + $0x548] sm:$0xff]
      %v456 = vld [vmem:[%s277 + $0x550] sm:$0xff]
      %v457 = vld [vmem:[%s277 + $0x558] sm:$0xff]
      %v458 = vld [vmem:[%s277 + $0x560] sm:$0xff]
      %v459 = vld [vmem:[%s277 + $0x568] sm:$0xff]
      %v460 = vld [vmem:[%s277 + $0x570] sm:$0xff]
      %v461 = vld [vmem:[%s277 + $0x578] sm:$0xff]
      %v462 = vld [vmem:[%s277 + $0x580] sm:$0xff]
      %v463 = vld [vmem:[%s277 + $0x588] sm:$0xff]
      %v464 = vld [vmem:[%s277 + $0x590] sm:$0xff]
      %v465 = vld [vmem:[%s277 + $0x598] sm:$0xff]
      %v466 = vld [vmem:[%s277 + $0x5a0] sm:$0xff]
      %v467 = vld [vmem:[%s277 + $0x5a8] sm:$0xff]
      %v468 = vld [vmem:[%s277 + $0x5b0] sm:$0xff]
      %v469 = vld [vmem:[%s277 + $0x5b8] sm:$0xff]
      %v470 = vld [vmem:[%s277 + $0x5c0] sm:$0xff]
      %v471 = vld [vmem:[%s277 + $0x5c8] sm:$0xff]
      %v472 = vld [vmem:[%s277 + $0x5d0] sm:$0xff]
      %v473 = vld [vmem:[%s277 + $0x5d8] sm:$0xff]
      %v474 = vld [vmem:[%s277 + $0x5e0] sm:$0xff]
      %v475 = vld [vmem:[%s277 + $0x5e8] sm:$0xff]
      %v476 = vld [vmem:[%s277 + $0x5f0] sm:$0xff]
      %v477 = vld [vmem:[%s277 + $0x5f8] sm:$0xff]
      %v478 = vld [vmem:[%s277 + $0x600] sm:$0xff]
      %v479 = vld [vmem:[%s277 + $0x608] sm:$0xff]
      %v480 = vld [vmem:[%s277 + $0x610] sm:$0xff]
      %v481 = vld [vmem:[%s277 + $0x618] sm:$0xff]
      %v482 = vld [vmem:[%s277 + $0x620] sm:$0xff]
      %v483 = vld [vmem:[%s277 + $0x628] sm:$0xff]
      %v484 = vld [vmem:[%s277 + $0x630] sm:$0xff]
      %v485 = vld [vmem:[%s277 + $0x638] sm:$0xff]
      %v486 = vld [vmem:[%s277 + $0x640] sm:$0xff]
      %v487 = vld [vmem:[%s277 + $0x648] sm:$0xff]
      %v488 = vld [vmem:[%s277 + $0x650] sm:$0xff]
      %v489 = vld [vmem:[%s277 + $0x658] sm:$0xff]
      %v490 = vld [vmem:[%s277 + $0x660] sm:$0xff]
      %v491 = vld [vmem:[%s277 + $0x668] sm:$0xff]
      %v492 = vld [vmem:[%s277 + $0x670] sm:$0xff]
      %v493 = vld [vmem:[%s277 + $0x678] sm:$0xff]
      %v494 = vld [vmem:[%s277 + $0x680] sm:$0xff]
      %v495 = vld [vmem:[%s277 + $0x688] sm:$0xff]
      %v496 = vld [vmem:[%s277 + $0x690] sm:$0xff]
      %v497 = vld [vmem:[%s277 + $0x698] sm:$0xff]
      %v498 = vld [vmem:[%s277 + $0x6a0] sm:$0xff]
      %v499 = vld [vmem:[%s277 + $0x6a8] sm:$0xff]
      %v500 = vld [vmem:[%s277 + $0x6b0] sm:$0xff]
      %v501 = vld [vmem:[%s277 + $0x6b8] sm:$0xff]
      %v502 = vld [vmem:[%s277 + $0x6c0] sm:$0xff]
      %v503 = vld [vmem:[%s277 + $0x6c8] sm:$0xff]
      %v504 = vld [vmem:[%s277 + $0x6d0] sm:$0xff]
      %v505 = vld [vmem:[%s277 + $0x6d8] sm:$0xff]
      %v506 = vld [vmem:[%s277 + $0x6e0] sm:$0xff]
      %v507 = vld [vmem:[%s277 + $0x6e8] sm:$0xff]
      %v508 = vld [vmem:[%s277 + $0x6f0] sm:$0xff]
      %v509 = vld [vmem:[%s277 + $0x6f8] sm:$0xff]
      %v510 = vld [vmem:[%s277 + $0x700] sm:$0xff]
      %v511 = vld [vmem:[%s277 + $0x708] sm:$0xff]
      %v512 = vld [vmem:[%s277 + $0x710] sm:$0xff]
      %v513 = vld [vmem:[%s277 + $0x718] sm:$0xff]
      %v514 = vld [vmem:[%s277 + $0x720] sm:$0xff]
      %v515 = vld [vmem:[%s277 + $0x728] sm:$0xff]
      %v516 = vld [vmem:[%s277 + $0x730] sm:$0xff]
      %v517 = vld [vmem:[%s277 + $0x738] sm:$0xff]
      %v518 = vld [vmem:[%s277 + $0x740] sm:$0xff]
      %v519 = vld [vmem:[%s277 + $0x748] sm:$0xff]
      %v520 = vld [vmem:[%s277 + $0x750] sm:$0xff]
      %v521 = vld [vmem:[%s277 + $0x758] sm:$0xff]
      %v522 = vld [vmem:[%s277 + $0x760] sm:$0xff]
      %v523 = vld [vmem:[%s277 + $0x768] sm:$0xff]
      %v524 = vld [vmem:[%s277 + $0x770] sm:$0xff]
      %v525 = vld [vmem:[%s277 + $0x778] sm:$0xff]
      %v526 = vld [vmem:[%s277 + $0x780] sm:$0xff]
      %v527 = vld [vmem:[%s277 + $0x788] sm:$0xff]
      %v528 = vld [vmem:[%s277 + $0x790] sm:$0xff]
      %v529 = vld [vmem:[%s277 + $0x798] sm:$0xff]
      %v530 = vld [vmem:[%s277 + $0x7a0] sm:$0xff]
      %v531 = vld [vmem:[%s277 + $0x7a8] sm:$0xff]
      %v532 = vld [vmem:[%s277 + $0x7b0] sm:$0xff]
      %v533 = vld [vmem:[%s277 + $0x7b8] sm:$0xff]
      %v534 = vld [vmem:[%s277 + $0x7c0] sm:$0xff]
      %v535 = vld [vmem:[%s277 + $0x7c8] sm:$0xff]
      %v536 = vld [vmem:[%s277 + $0x7d0] sm:$0xff]
      %v537 = vld [vmem:[%s277 + $0x7d8] sm:$0xff]
      %v538 = vld [vmem:[%s277 + $0x7e0] sm:$0xff]
      %v539 = vld [vmem:[%s277 + $0x7e8] sm:$0xff]
      %v540 = vld [vmem:[%s277 + $0x7f0] sm:$0xff]
      %v541 = vld [vmem:[%s277 + $0x7f8] sm:$0xff]
      %v542 = vld [vmem:[%s277 + $0x800] sm:$0xff]
      %v543 = vld [vmem:[%s277 + $0x808] sm:$0xff]
      %v544 = vld [vmem:[%s277 + $0x810] sm:$0xff]
      %v545 = vld [vmem:[%s277 + $0x818] sm:$0xff]
      %v546 = vld [vmem:[%s277 + $0x820] sm:$0xff]
      %v547 = vld [vmem:[%s277 + $0x828] sm:$0xff]
      %v548 = vld [vmem:[%s277 + $0x830] sm:$0xff]
      %v549 = vld [vmem:[%s277 + $0x838] sm:$0xff]
      %v550 = vld [vmem:[%s277 + $0x840] sm:$0xff]
      %v551 = vld [vmem:[%s277 + $0x848] sm:$0xff]
      %v552 = vld [vmem:[%s277 + $0x850] sm:$0xff]
      %v553 = vld [vmem:[%s277 + $0x858] sm:$0xff]
      %v554 = vld [vmem:[%s277 + $0x860] sm:$0xff]
      %v555 = vld [vmem:[%s277 + $0x868] sm:$0xff]
      %v556 = vld [vmem:[%s277 + $0x870] sm:$0xff]
      %v557 = vld [vmem:[%s277 + $0x878] sm:$0xff]
      %v558 = vld [vmem:[%s277 + $0x880] sm:$0xff]
      %v559 = vld [vmem:[%s277 + $0x888] sm:$0xff]
      %v560 = vld [vmem:[%s277 + $0x890] sm:$0xff]
      %v561 = vld [vmem:[%s277 + $0x898] sm:$0xff]
      %v562 = vld [vmem:[%s277 + $0x8a0] sm:$0xff]
      %v563 = vld [vmem:[%s277 + $0x8a8] sm:$0xff]
      %v564 = vld [vmem:[%s277 + $0x8b0] sm:$0xff]
      %v565 = vld [vmem:[%s277 + $0x8b8] sm:$0xff]
      %v566 = vld [vmem:[%s277 + $0x8c0] sm:$0xff]
      %v567 = vld [vmem:[%s277 + $0x8c8] sm:$0xff]
      %v568 = vld [vmem:[%s277 + $0x8d0] sm:$0xff]
      %v569 = vld [vmem:[%s277 + $0x8d8] sm:$0xff]
      %v570 = vld [vmem:[%s277 + $0x8e0] sm:$0xff]
      %v571 = vld [vmem:[%s277 + $0x8e8] sm:$0xff]
      %v572 = vld [vmem:[%s277 + $0x8f0] sm:$0xff]
      %v573 = vld [vmem:[%s277 + $0x8f8] sm:$0xff]
      %v574 = vld [vmem:[%s277 + $0x900] sm:$0xff]
      %v575 = vld [vmem:[%s277 + $0x908] sm:$0xff]
      %v576 = vld [vmem:[%s277 + $0x910] sm:$0xff]
      %v577 = vld [vmem:[%s277 + $0x918] sm:$0xff]
      %v578 = vld [vmem:[%s277 + $0x920] sm:$0xff]
      %v579 = vld [vmem:[%s277 + $0x928] sm:$0xff]
      %v580 = vld [vmem:[%s277 + $0x930] sm:$0xff]
      %v581 = vld [vmem:[%s277 + $0x938] sm:$0xff]
      %v582 = vld [vmem:[%s277 + $0x940] sm:$0xff]
      %v583 = vld [vmem:[%s277 + $0x948] sm:$0xff]
      %v584 = vld [vmem:[%s277 + $0x950] sm:$0xff]
      %v585 = vld [vmem:[%s277 + $0x958] sm:$0xff]
      %v586 = vld [vmem:[%s277 + $0x960] sm:$0xff]
      %v587 = vld [vmem:[%s277 + $0x968] sm:$0xff]
      %v588 = vld [vmem:[%s277 + $0x970] sm:$0xff]
      %v589 = vld [vmem:[%s277 + $0x978] sm:$0xff]
      %v590 = vld [vmem:[%s277 + $0x980] sm:$0xff]
      %v591 = vld [vmem:[%s277 + $0x988] sm:$0xff]
      %v592 = vld [vmem:[%s277 + $0x990] sm:$0xff]
      %v593 = vld [vmem:[%s277 + $0x998] sm:$0xff]
      %v594 = vld [vmem:[%s277 + $0x9a0] sm:$0xff]
      %v595 = vld [vmem:[%s277 + $0x9a8] sm:$0xff]
      %v596 = vld [vmem:[%s277 + $0x9b0] sm:$0xff]
      %v597 = vld [vmem:[%s277 + $0x9b8] sm:$0xff]
      %v598 = vld [vmem:[%s277 + $0x9c0] sm:$0xff]
      %v599 = vld [vmem:[%s277 + $0x9c8] sm:$0xff]
      %v600 = vld [vmem:[%s277 + $0x9d0] sm:$0xff]
      %v601 = vld [vmem:[%s277 + $0x9d8] sm:$0xff]
      %v602 = vld [vmem:[%s277 + $0x9e0] sm:$0xff]
      %v603 = vld [vmem:[%s277 + $0x9e8] sm:$0xff]
      %v604 = vld [vmem:[%s277 + $0x9f0] sm:$0xff]
      %v605 = vld [vmem:[%s277 + $0x9f8] sm:$0xff]
      %v606 = vld [vmem:[%s277 + $0xa00] sm:$0xff]
      %v607 = vld [vmem:[%s277 + $0xa08] sm:$0xff]
      %v608 = vld [vmem:[%s277 + $0xa10] sm:$0xff]
      %v609 = vld [vmem:[%s277 + $0xa18] sm:$0xff]
      %v610 = vld [vmem:[%s277 + $0xa20] sm:$0xff]
      %v611 = vld [vmem:[%s277 + $0xa28] sm:$0xff]
      %v612 = vld [vmem:[%s277 + $0xa30] sm:$0xff]
      %v613 = vld [vmem:[%s277 + $0xa38] sm:$0xff]
      %v614 = vld [vmem:[%s277 + $0xa40] sm:$0xff]
      %v615 = vld [vmem:[%s277 + $0xa48] sm:$0xff]
      %v616 = vld [vmem:[%s277 + $0xa50] sm:$0xff]
      %v617 = vld [vmem:[%s277 + $0xa58] sm:$0xff]
      %v618 = vld [vmem:[%s277 + $0xa60] sm:$0xff]
      %v619 = vld [vmem:[%s277 + $0xa68] sm:$0xff]
      %v620 = vld [vmem:[%s277 + $0xa70] sm:$0xff]
      %v621 = vld [vmem:[%s277 + $0xa78] sm:$0xff]
      %v622 = vld [vmem:[%s277 + $0xa80] sm:$0xff]
      %v623 = vld [vmem:[%s277 + $0xa88] sm:$0xff]
      %v624 = vld [vmem:[%s277 + $0xa90] sm:$0xff]
      %v625 = vld [vmem:[%s277 + $0xa98] sm:$0xff]
      %v626 = vld [vmem:[%s277 + $0xaa0] sm:$0xff]
      %v627 = vld [vmem:[%s277 + $0xaa8] sm:$0xff]
      %v628 = vld [vmem:[%s277 + $0xab0] sm:$0xff]
      %v629 = vld [vmem:[%s277 + $0xab8] sm:$0xff]
      %v630 = vld [vmem:[%s277 + $0xac0] sm:$0xff]
      %v631 = vld [vmem:[%s277 + $0xac8] sm:$0xff]
      %v632 = vld [vmem:[%s277 + $0xad0] sm:$0xff]
      %v633 = vld [vmem:[%s277 + $0xad8] sm:$0xff]
      %v634 = vld [vmem:[%s277 + $0xae0] sm:$0xff]
      %v635 = vld [vmem:[%s277 + $0xae8] sm:$0xff]
      %v636 = vld [vmem:[%s277 + $0xaf0] sm:$0xff]
      %v637 = vld [vmem:[%s277 + $0xaf8] sm:$0xff]
      %v638 = vpack.c.bf16 %v297, %v286
      %v639 = vpack.c.bf16 %v298, %v287
      %v640 = vpack.c.bf16 %v299, %v288
      %v641 = vpack.c.bf16 %v300, %v289
      %v642 = vpack.c.bf16 %v301, %v290
      %v643 = vpack.c.bf16 %v302, %v291
      %v644 = vpack.c.bf16 %v303, %v292
      %v645 = vpack.c.bf16 %v304, %v293
      %v646 = vpack.c.bf16 %v305, %v294
      %v647 = vpack.c.bf16 %v306, %v295
      %v648 = vpack.c.bf16 %v307, %v296
      %v649 = vpack.c.bf16 %v319, %v308
      %v650 = vpack.c.bf16 %v320, %v309
      %v651 = vpack.c.bf16 %v321, %v310
      %v652 = vpack.c.bf16 %v322, %v311
      %v653 = vpack.c.bf16 %v323, %v312
      %v654 = vpack.c.bf16 %v324, %v313
      %v655 = vpack.c.bf16 %v325, %v314
      %v656 = vpack.c.bf16 %v326, %v315
      %v657 = vpack.c.bf16 %v327, %v316
      %v658 = vpack.c.bf16 %v328, %v317
      %v659 = vpack.c.bf16 %v329, %v318
      %v660 = vpack.c.bf16 %v341, %v330
      %v661 = vpack.c.bf16 %v342, %v331
      %v662 = vpack.c.bf16 %v343, %v332
      %v663 = vpack.c.bf16 %v344, %v333
      %v664 = vpack.c.bf16 %v345, %v334
      %v665 = vpack.c.bf16 %v346, %v335
      %v666 = vpack.c.bf16 %v347, %v336
      %v667 = vpack.c.bf16 %v348, %v337
      %v668 = vpack.c.bf16 %v349, %v338
      %v669 = vpack.c.bf16 %v350, %v339
      %v670 = vpack.c.bf16 %v351, %v340
      %v671 = vpack.c.bf16 %v363, %v352
      %v672 = vpack.c.bf16 %v364, %v353
      %v673 = vpack.c.bf16 %v365, %v354
      %v674 = vpack.c.bf16 %v366, %v355
      %v675 = vpack.c.bf16 %v367, %v356
      %v676 = vpack.c.bf16 %v368, %v357
      %v677 = vpack.c.bf16 %v369, %v358
      %v678 = vpack.c.bf16 %v370, %v359
      %v679 = vpack.c.bf16 %v371, %v360
      %v680 = vpack.c.bf16 %v372, %v361
      %v681 = vpack.c.bf16 %v373, %v362
      %v682 = vpack.c.bf16 %v385, %v374
      %v683 = vpack.c.bf16 %v386, %v375
      %v684 = vpack.c.bf16 %v387, %v376
      %v685 = vpack.c.bf16 %v388, %v377
      %v686 = vpack.c.bf16 %v389, %v378
      %v687 = vpack.c.bf16 %v390, %v379
      %v688 = vpack.c.bf16 %v391, %v380
      %v689 = vpack.c.bf16 %v392, %v381
      %v690 = vpack.c.bf16 %v393, %v382
      %v691 = vpack.c.bf16 %v394, %v383
      %v692 = vpack.c.bf16 %v395, %v384
      %v693 = vpack.c.bf16 %v407, %v396
      %v694 = vpack.c.bf16 %v408, %v397
      %v695 = vpack.c.bf16 %v409, %v398
      %v696 = vpack.c.bf16 %v410, %v399
      %v697 = vpack.c.bf16 %v411, %v400
      %v698 = vpack.c.bf16 %v412, %v401
      %v699 = vpack.c.bf16 %v413, %v402
      %v700 = vpack.c.bf16 %v414, %v403
      %v701 = vpack.c.bf16 %v415, %v404
      %v702 = vpack.c.bf16 %v416, %v405
      %v703 = vpack.c.bf16 %v417, %v406
      %v704 = vpack.c.bf16 %v429, %v418
      %v705 = vpack.c.bf16 %v430, %v419
      %v706 = vpack.c.bf16 %v431, %v420
      %v707 = vpack.c.bf16 %v432, %v421
      %v708 = vpack.c.bf16 %v433, %v422
      %v709 = vpack.c.bf16 %v434, %v423
      %v710 = vpack.c.bf16 %v435, %v424
      %v711 = vpack.c.bf16 %v436, %v425
      %v712 = vpack.c.bf16 %v437, %v426
      %v713 = vpack.c.bf16 %v438, %v427
      %v714 = vpack.c.bf16 %v439, %v428
      %v715 = vpack.c.bf16 %v451, %v440
      %v716 = vpack.c.bf16 %v452, %v441
      %v717 = vpack.c.bf16 %v453, %v442
      %v718 = vpack.c.bf16 %v454, %v443
      %v719 = vpack.c.bf16 %v455, %v444
      %v720 = vpack.c.bf16 %v456, %v445
      %v721 = vpack.c.bf16 %v457, %v446
      %v722 = vpack.c.bf16 %v458, %v447
      %v723 = vpack.c.bf16 %v459, %v448
      %v724 = vpack.c.bf16 %v460, %v449
      %v725 = vpack.c.bf16 %v461, %v450
      %v726 = vpack.c.bf16 %v473, %v462
      %v727 = vpack.c.bf16 %v474, %v463
      %v728 = vpack.c.bf16 %v475, %v464
      %v729 = vpack.c.bf16 %v476, %v465
      %v730 = vpack.c.bf16 %v477, %v466
      %v731 = vpack.c.bf16 %v478, %v467
      %v732 = vpack.c.bf16 %v479, %v468
      %v733 = vpack.c.bf16 %v480, %v469
      %v734 = vpack.c.bf16 %v481, %v470
      %v735 = vpack.c.bf16 %v482, %v471
      %v736 = vpack.c.bf16 %v483, %v472
      %v737 = vpack.c.bf16 %v495, %v484
      %v738 = vpack.c.bf16 %v496, %v485
      %v739 = vpack.c.bf16 %v497, %v486
      %v740 = vpack.c.bf16 %v498, %v487
      %v741 = vpack.c.bf16 %v499, %v488
      %v742 = vpack.c.bf16 %v500, %v489
      %v743 = vpack.c.bf16 %v501, %v490
      %v744 = vpack.c.bf16 %v502, %v491
      %v745 = vpack.c.bf16 %v503, %v492
      %v746 = vpack.c.bf16 %v504, %v493
      %v747 = vpack.c.bf16 %v505, %v494
      %v748 = vpack.c.bf16 %v517, %v506
      %v749 = vpack.c.bf16 %v518, %v507
      %v750 = vpack.c.bf16 %v519, %v508
      %v751 = vpack.c.bf16 %v520, %v509
      %v752 = vpack.c.bf16 %v521, %v510
      %v753 = vpack.c.bf16 %v522, %v511
      %v754 = vpack.c.bf16 %v523, %v512
      %v755 = vpack.c.bf16 %v524, %v513
      %v756 = vpack.c.bf16 %v525, %v514
      %v757 = vpack.c.bf16 %v526, %v515
      %v758 = vpack.c.bf16 %v527, %v516
      %v759 = vpack.c.bf16 %v539, %v528
      %v760 = vpack.c.bf16 %v540, %v529
      %v761 = vpack.c.bf16 %v541, %v530
      %v762 = vpack.c.bf16 %v542, %v531
      %v763 = vpack.c.bf16 %v543, %v532
      %v764 = vpack.c.bf16 %v544, %v533
      %v765 = vpack.c.bf16 %v545, %v534
      %v766 = vpack.c.bf16 %v546, %v535
      %v767 = vpack.c.bf16 %v547, %v536
      %v768 = vpack.c.bf16 %v548, %v537
      %v769 = vpack.c.bf16 %v549, %v538
      %v770 = vpack.c.bf16 %v561, %v550
      %v771 = vpack.c.bf16 %v562, %v551
      %v772 = vpack.c.bf16 %v563, %v552
      %v773 = vpack.c.bf16 %v564, %v553
      %v774 = vpack.c.bf16 %v565, %v554
      %v775 = vpack.c.bf16 %v566, %v555
      %v776 = vpack.c.bf16 %v567, %v556
      %v777 = vpack.c.bf16 %v568, %v557
      %v778 = vpack.c.bf16 %v569, %v558
      %v779 = vpack.c.bf16 %v570, %v559
      %v780 = vpack.c.bf16 %v571, %v560
      %v781 = vpack.c.bf16 %v583, %v572
      %v782 = vpack.c.bf16 %v584, %v573
      %v783 = vpack.c.bf16 %v585, %v574
      %v784 = vpack.c.bf16 %v586, %v575
      %v785 = vpack.c.bf16 %v587, %v576
      %v786 = vpack.c.bf16 %v588, %v577
      %v787 = vpack.c.bf16 %v589, %v578
      %v788 = vpack.c.bf16 %v590, %v579
      %v789 = vpack.c.bf16 %v591, %v580
      %v790 = vpack.c.bf16 %v592, %v581
      %v791 = vpack.c.bf16 %v593, %v582
      %v792 = vpack.c.bf16 %v605, %v594
      %v793 = vpack.c.bf16 %v606, %v595
      %v794 = vpack.c.bf16 %v607, %v596
      %v795 = vpack.c.bf16 %v608, %v597
      %v796 = vpack.c.bf16 %v609, %v598
      %v797 = vpack.c.bf16 %v610, %v599
      %v798 = vpack.c.bf16 %v611, %v600
      %v799 = vpack.c.bf16 %v612, %v601
      %v800 = vpack.c.bf16 %v613, %v602
      %v801 = vpack.c.bf16 %v614, %v603
      %v802 = vpack.c.bf16 %v615, %v604
      %v803 = vpack.c.bf16 %v627, %v616
      %v804 = vpack.c.bf16 %v628, %v617
      %v805 = vpack.c.bf16 %v629, %v618
      %v806 = vpack.c.bf16 %v630, %v619
      %v807 = vpack.c.bf16 %v631, %v620
      %v808 = vpack.c.bf16 %v632, %v621
      %v809 = vpack.c.bf16 %v633, %v622
      %v810 = vpack.c.bf16 %v634, %v623
      %v811 = vpack.c.bf16 %v635, %v624
      %v812 = vpack.c.bf16 %v636, %v625
      %v813 = vpack.c.bf16 %v637, %v626
      %v814 = vld [vmem:[%s1] sm:$0xff]
      %v815 = vld [vmem:[%s1 + $0x8] sm:$0xff]
      %v816 = vld [vmem:[%s1 + $0x10] sm:$0xff]
      %v817 = vld [vmem:[%s1 + $0x18] sm:$0xff]
      %v818 = vld [vmem:[%s1 + $0x20] sm:$0xff]
      %v819 = vld [vmem:[%s1 + $0x28] sm:$0xff]
      %v820 = vld [vmem:[%s1 + $0x30] sm:$0xff]
      %v821 = vld [vmem:[%s1 + $0x38] sm:$0xff]
      %v822 = vld [vmem:[%s1 + $0x40] sm:$0xff]
      %v823 = vld [vmem:[%s1 + $0x48] sm:$0xff]
      %v824 = vld [vmem:[%s1 + $0x50] sm:$0xff]
      %v825 = vld [vmem:[%s1 + $0x58] sm:$0xff]
      %v826 = vld [vmem:[%s1 + $0x60] sm:$0xff]
      %v827 = vld [vmem:[%s1 + $0x68] sm:$0xff]
      %v828 = vld [vmem:[%s1 + $0x70] sm:$0xff]
      %v829 = vld [vmem:[%s1 + $0x78] sm:$0xff]
      %v830 = vld [vmem:[%s1 + $0x80] sm:$0xff]
      %v831 = vld [vmem:[%s1 + $0x88] sm:$0xff]
      %v832 = vld [vmem:[%s1 + $0x90] sm:$0xff]
      %v833 = vld [vmem:[%s1 + $0x98] sm:$0xff]
      %v834 = vld [vmem:[%s1 + $0xa0] sm:$0xff]
      %v835 = vld [vmem:[%s1 + $0xa8] sm:$0xff]
      %v836 = vld [vmem:[%s1 + $0xb0] sm:$0xff]
      %v837 = vld [vmem:[%s1 + $0xb8] sm:$0xff]
      %v838 = vld [vmem:[%s1 + $0xc0] sm:$0xff]
      %v839 = vld [vmem:[%s1 + $0xc8] sm:$0xff]
      %v840 = vld [vmem:[%s1 + $0xd0] sm:$0xff]
      %v841 = vld [vmem:[%s1 + $0xd8] sm:$0xff]
      %v842 = vld [vmem:[%s1 + $0xe0] sm:$0xff]
      %v843 = vld [vmem:[%s1 + $0xe8] sm:$0xff]
      %v844 = vld [vmem:[%s1 + $0xf0] sm:$0xff]
      %v845 = vld [vmem:[%s1 + $0xf8] sm:$0xff]
      %v846 = vld [vmem:[%s1 + $0x100] sm:$0xff]
      %v847 = vld [vmem:[%s1 + $0x108] sm:$0xff]
      %v848 = vld [vmem:[%s1 + $0x110] sm:$0xff]
      %v849 = vld [vmem:[%s1 + $0x118] sm:$0xff]
      %v850 = vld [vmem:[%s1 + $0x120] sm:$0xff]
      %v851 = vld [vmem:[%s1 + $0x128] sm:$0xff]
      %v852 = vld [vmem:[%s1 + $0x130] sm:$0xff]
      %v853 = vld [vmem:[%s1 + $0x138] sm:$0xff]
      %v854 = vld [vmem:[%s1 + $0x140] sm:$0xff]
      %v855 = vld [vmem:[%s1 + $0x148] sm:$0xff]
      %v856 = vld [vmem:[%s1 + $0x150] sm:$0xff]
      %v857 = vld [vmem:[%s1 + $0x158] sm:$0xff]
      %v858 = vld [vmem:[%s1 + $0x160] sm:$0xff]
      %v859 = vld [vmem:[%s1 + $0x168] sm:$0xff]
      %v860 = vld [vmem:[%s1 + $0x170] sm:$0xff]
      %v861 = vld [vmem:[%s1 + $0x178] sm:$0xff]
      %v862 = vld [vmem:[%s1 + $0x180] sm:$0xff]
      %v863 = vld [vmem:[%s1 + $0x188] sm:$0xff]
      %v864 = vld [vmem:[%s1 + $0x190] sm:$0xff]
      %v865 = vld [vmem:[%s1 + $0x198] sm:$0xff]
      %v866 = vld [vmem:[%s1 + $0x1a0] sm:$0xff]
      %v867 = vld [vmem:[%s1 + $0x1a8] sm:$0xff]
      %v868 = vld [vmem:[%s1 + $0x1b0] sm:$0xff]
      %v869 = vld [vmem:[%s1 + $0x1b8] sm:$0xff]
      %v870 = vld [vmem:[%s1 + $0x1c0] sm:$0xff]
      %v871 = vld [vmem:[%s1 + $0x1c8] sm:$0xff]
      %v872 = vld [vmem:[%s1 + $0x1d0] sm:$0xff]
      %v873 = vld [vmem:[%s1 + $0x1d8] sm:$0xff]
      %v874 = vld [vmem:[%s1 + $0x1e0] sm:$0xff]
      %v875 = vld [vmem:[%s1 + $0x1e8] sm:$0xff]
      %v876 = vld [vmem:[%s1 + $0x1f0] sm:$0xff]
      %v877 = vld [vmem:[%s1 + $0x1f8] sm:$0xff]
      %v878 = vld [vmem:[%s1 + $0x200] sm:$0xff]
      %v879 = vld [vmem:[%s1 + $0x208] sm:$0xff]
      %v880 = vld [vmem:[%s1 + $0x210] sm:$0xff]
      %v881 = vld [vmem:[%s1 + $0x218] sm:$0xff]
      %v882 = vld [vmem:[%s1 + $0x220] sm:$0xff]
      %v883 = vld [vmem:[%s1 + $0x228] sm:$0xff]
      %v884 = vld [vmem:[%s1 + $0x230] sm:$0xff]
      %v885 = vld [vmem:[%s1 + $0x238] sm:$0xff]
      %v886 = vld [vmem:[%s1 + $0x240] sm:$0xff]
      %v887 = vld [vmem:[%s1 + $0x248] sm:$0xff]
      %v888 = vld [vmem:[%s1 + $0x250] sm:$0xff]
      %v889 = vld [vmem:[%s1 + $0x258] sm:$0xff]
      %v890 = vld [vmem:[%s1 + $0x260] sm:$0xff]
      %v891 = vld [vmem:[%s1 + $0x268] sm:$0xff]
      %v892 = vld [vmem:[%s1 + $0x270] sm:$0xff]
      %v893 = vld [vmem:[%s1 + $0x278] sm:$0xff]
      %v894 = vld [vmem:[%s1 + $0x280] sm:$0xff]
      %v895 = vld [vmem:[%s1 + $0x288] sm:$0xff]
      %v896 = vld [vmem:[%s1 + $0x290] sm:$0xff]
      %v897 = vld [vmem:[%s1 + $0x298] sm:$0xff]
      %v898 = vld [vmem:[%s1 + $0x2a0] sm:$0xff]
      %v899 = vld [vmem:[%s1 + $0x2a8] sm:$0xff]
      %v900 = vld [vmem:[%s1 + $0x2b0] sm:$0xff]
      %v901 = vld [vmem:[%s1 + $0x2b8] sm:$0xff]
      %v902 = vld [vmem:[%s1 + $0x2c0] sm:$0xff]
      %v903 = vld [vmem:[%s1 + $0x2c8] sm:$0xff]
      %v904 = vld [vmem:[%s1 + $0x2d0] sm:$0xff]
      %v905 = vld [vmem:[%s1 + $0x2d8] sm:$0xff]
      %v906 = vld [vmem:[%s1 + $0x2e0] sm:$0xff]
      %v907 = vld [vmem:[%s1 + $0x2e8] sm:$0xff]
      %v908 = vld [vmem:[%s1 + $0x2f0] sm:$0xff]
      %v909 = vld [vmem:[%s1 + $0x2f8] sm:$0xff]
      %v910 = vld [vmem:[%s1 + $0x300] sm:$0xff]
      %v911 = vld [vmem:[%s1 + $0x308] sm:$0xff]
      %v912 = vld [vmem:[%s1 + $0x310] sm:$0xff]
      %v913 = vld [vmem:[%s1 + $0x318] sm:$0xff]
      %v914 = vld [vmem:[%s1 + $0x320] sm:$0xff]
      %v915 = vld [vmem:[%s1 + $0x328] sm:$0xff]
      %v916 = vld [vmem:[%s1 + $0x330] sm:$0xff]
      %v917 = vld [vmem:[%s1 + $0x338] sm:$0xff]
      %v918 = vld [vmem:[%s1 + $0x340] sm:$0xff]
      %v919 = vld [vmem:[%s1 + $0x348] sm:$0xff]
      %v920 = vld [vmem:[%s1 + $0x350] sm:$0xff]
      %v921 = vld [vmem:[%s1 + $0x358] sm:$0xff]
      %v922 = vld [vmem:[%s1 + $0x360] sm:$0xff]
      %v923 = vld [vmem:[%s1 + $0x368] sm:$0xff]
      %v924 = vld [vmem:[%s1 + $0x370] sm:$0xff]
      %v925 = vld [vmem:[%s1 + $0x378] sm:$0xff]
      %v926 = vld [vmem:[%s1 + $0x380] sm:$0xff]
      %v927 = vld [vmem:[%s1 + $0x388] sm:$0xff]
      %v928 = vld [vmem:[%s1 + $0x390] sm:$0xff]
      %v929 = vld [vmem:[%s1 + $0x398] sm:$0xff]
      %v930 = vld [vmem:[%s1 + $0x3a0] sm:$0xff]
      %v931 = vld [vmem:[%s1 + $0x3a8] sm:$0xff]
      %v932 = vld [vmem:[%s1 + $0x3b0] sm:$0xff]
      %v933 = vld [vmem:[%s1 + $0x3b8] sm:$0xff]
      %v934 = vld [vmem:[%s1 + $0x3c0] sm:$0xff]
      %v935 = vld [vmem:[%s1 + $0x3c8] sm:$0xff]
      %v936 = vld [vmem:[%s1 + $0x3d0] sm:$0xff]
      %v937 = vld [vmem:[%s1 + $0x3d8] sm:$0xff]
      %v938 = vld [vmem:[%s1 + $0x3e0] sm:$0xff]
      %v939 = vld [vmem:[%s1 + $0x3e8] sm:$0xff]
      %v940 = vld [vmem:[%s1 + $0x3f0] sm:$0xff]
      %v941 = vld [vmem:[%s1 + $0x3f8] sm:$0xff]
      %v942 = vld [vmem:[%s1 + $0x400] sm:$0xff]
      %v943 = vld [vmem:[%s1 + $0x408] sm:$0xff]
      %v944 = vld [vmem:[%s1 + $0x410] sm:$0xff]
      %v945 = vld [vmem:[%s1 + $0x418] sm:$0xff]
      %v946 = vld [vmem:[%s1 + $0x420] sm:$0xff]
      %v947 = vld [vmem:[%s1 + $0x428] sm:$0xff]
      %v948 = vld [vmem:[%s1 + $0x430] sm:$0xff]
      %v949 = vld [vmem:[%s1 + $0x438] sm:$0xff]
      %v950 = vld [vmem:[%s1 + $0x440] sm:$0xff]
      %v951 = vld [vmem:[%s1 + $0x448] sm:$0xff]
      %v952 = vld [vmem:[%s1 + $0x450] sm:$0xff]
      %v953 = vld [vmem:[%s1 + $0x458] sm:$0xff]
      %v954 = vld [vmem:[%s1 + $0x460] sm:$0xff]
      %v955 = vld [vmem:[%s1 + $0x468] sm:$0xff]
      %v956 = vld [vmem:[%s1 + $0x470] sm:$0xff]
      %v957 = vld [vmem:[%s1 + $0x478] sm:$0xff]
      %v958 = vld [vmem:[%s1 + $0x480] sm:$0xff]
      %v959 = vld [vmem:[%s1 + $0x488] sm:$0xff]
      %v960 = vld [vmem:[%s1 + $0x490] sm:$0xff]
      %v961 = vld [vmem:[%s1 + $0x498] sm:$0xff]
      %v962 = vld [vmem:[%s1 + $0x4a0] sm:$0xff]
      %v963 = vld [vmem:[%s1 + $0x4a8] sm:$0xff]
      %v964 = vld [vmem:[%s1 + $0x4b0] sm:$0xff]
      %v965 = vld [vmem:[%s1 + $0x4b8] sm:$0xff]
      %v966 = vld [vmem:[%s1 + $0x4c0] sm:$0xff]
      %v967 = vld [vmem:[%s1 + $0x4c8] sm:$0xff]
      %v968 = vld [vmem:[%s1 + $0x4d0] sm:$0xff]
      %v969 = vld [vmem:[%s1 + $0x4d8] sm:$0xff]
      %v970 = vld [vmem:[%s1 + $0x4e0] sm:$0xff]
      %v971 = vld [vmem:[%s1 + $0x4e8] sm:$0xff]
      %v972 = vld [vmem:[%s1 + $0x4f0] sm:$0xff]
      %v973 = vld [vmem:[%s1 + $0x4f8] sm:$0xff]
      %v974 = vld [vmem:[%s1 + $0x500] sm:$0xff]
      %v975 = vld [vmem:[%s1 + $0x508] sm:$0xff]
      %v976 = vld [vmem:[%s1 + $0x510] sm:$0xff]
      %v977 = vld [vmem:[%s1 + $0x518] sm:$0xff]
      %v978 = vld [vmem:[%s1 + $0x520] sm:$0xff]
      %v979 = vld [vmem:[%s1 + $0x528] sm:$0xff]
      %v980 = vld [vmem:[%s1 + $0x530] sm:$0xff]
      %v981 = vld [vmem:[%s1 + $0x538] sm:$0xff]
      %v982 = vld [vmem:[%s1 + $0x540] sm:$0xff]
      %v983 = vld [vmem:[%s1 + $0x548] sm:$0xff]
      %v984 = vld [vmem:[%s1 + $0x550] sm:$0xff]
      %v985 = vld [vmem:[%s1 + $0x558] sm:$0xff]
      %v986 = vld [vmem:[%s1 + $0x560] sm:$0xff]
      %v987 = vld [vmem:[%s1 + $0x568] sm:$0xff]
      %v988 = vld [vmem:[%s1 + $0x570] sm:$0xff]
      %v989 = vld [vmem:[%s1 + $0x578] sm:$0xff]
      %v990 = vld [vmem:[%s1 + $0x580] sm:$0xff]
      %v991 = vld [vmem:[%s1 + $0x588] sm:$0xff]
      %v992 = vld [vmem:[%s1 + $0x590] sm:$0xff]
      %v993 = vld [vmem:[%s1 + $0x598] sm:$0xff]
      %v994 = vld [vmem:[%s1 + $0x5a0] sm:$0xff]
      %v995 = vld [vmem:[%s1 + $0x5a8] sm:$0xff]
      %v996 = vld [vmem:[%s1 + $0x5b0] sm:$0xff]
      %v997 = vld [vmem:[%s1 + $0x5b8] sm:$0xff]
      %v998 = vld [vmem:[%s1 + $0x5c0] sm:$0xff]
      %v999 = vld [vmem:[%s1 + $0x5c8] sm:$0xff]
      %v1000 = vld [vmem:[%s1 + $0x5d0] sm:$0xff]
      %v1001 = vld [vmem:[%s1 + $0x5d8] sm:$0xff]
      %v1002 = vld [vmem:[%s1 + $0x5e0] sm:$0xff]
      %v1003 = vld [vmem:[%s1 + $0x5e8] sm:$0xff]
      %v1004 = vld [vmem:[%s1 + $0x5f0] sm:$0xff]
      %v1005 = vld [vmem:[%s1 + $0x5f8] sm:$0xff]
      %v1006 = vld [vmem:[%s1 + $0x600] sm:$0xff]
      %v1007 = vld [vmem:[%s1 + $0x608] sm:$0xff]
      %v1008 = vld [vmem:[%s1 + $0x610] sm:$0xff]
      %v1009 = vld [vmem:[%s1 + $0x618] sm:$0xff]
      %v1010 = vld [vmem:[%s1 + $0x620] sm:$0xff]
      %v1011 = vld [vmem:[%s1 + $0x628] sm:$0xff]
      %v1012 = vld [vmem:[%s1 + $0x630] sm:$0xff]
      %v1013 = vld [vmem:[%s1 + $0x638] sm:$0xff]
      %v1014 = vld [vmem:[%s1 + $0x640] sm:$0xff]
      %v1015 = vld [vmem:[%s1 + $0x648] sm:$0xff]
      %v1016 = vld [vmem:[%s1 + $0x650] sm:$0xff]
      %v1017 = vld [vmem:[%s1 + $0x658] sm:$0xff]
      %v1018 = vld [vmem:[%s1 + $0x660] sm:$0xff]
      %v1019 = vld [vmem:[%s1 + $0x668] sm:$0xff]
      %v1020 = vld [vmem:[%s1 + $0x670] sm:$0xff]
      %v1021 = vld [vmem:[%s1 + $0x678] sm:$0xff]
      %v1022 = vld [vmem:[%s1 + $0x680] sm:$0xff]
      %v1023 = vld [vmem:[%s1 + $0x688] sm:$0xff]
      %v1024 = vld [vmem:[%s1 + $0x690] sm:$0xff]
      %v1025 = vld [vmem:[%s1 + $0x698] sm:$0xff]
      %v1026 = vld [vmem:[%s1 + $0x6a0] sm:$0xff]
      %v1027 = vld [vmem:[%s1 + $0x6a8] sm:$0xff]
      %v1028 = vld [vmem:[%s1 + $0x6b0] sm:$0xff]
      %v1029 = vld [vmem:[%s1 + $0x6b8] sm:$0xff]
      %v1030 = vld [vmem:[%s1 + $0x6c0] sm:$0xff]
      %v1031 = vld [vmem:[%s1 + $0x6c8] sm:$0xff]
      %v1032 = vld [vmem:[%s1 + $0x6d0] sm:$0xff]
      %v1033 = vld [vmem:[%s1 + $0x6d8] sm:$0xff]
      %v1034 = vld [vmem:[%s1 + $0x6e0] sm:$0xff]
      %v1035 = vld [vmem:[%s1 + $0x6e8] sm:$0xff]
      %v1036 = vld [vmem:[%s1 + $0x6f0] sm:$0xff]
      %v1037 = vld [vmem:[%s1 + $0x6f8] sm:$0xff]
      %v1038 = vld [vmem:[%s1 + $0x700] sm:$0xff]
      %v1039 = vld [vmem:[%s1 + $0x708] sm:$0xff]
      %v1040 = vld [vmem:[%s1 + $0x710] sm:$0xff]
      %v1041 = vld [vmem:[%s1 + $0x718] sm:$0xff]
      %v1042 = vld [vmem:[%s1 + $0x720] sm:$0xff]
      %v1043 = vld [vmem:[%s1 + $0x728] sm:$0xff]
      %v1044 = vld [vmem:[%s1 + $0x730] sm:$0xff]
      %v1045 = vld [vmem:[%s1 + $0x738] sm:$0xff]
      %v1046 = vld [vmem:[%s1 + $0x740] sm:$0xff]
      %v1047 = vld [vmem:[%s1 + $0x748] sm:$0xff]
      %v1048 = vld [vmem:[%s1 + $0x750] sm:$0xff]
      %v1049 = vld [vmem:[%s1 + $0x758] sm:$0xff]
      %v1050 = vld [vmem:[%s1 + $0x760] sm:$0xff]
      %v1051 = vld [vmem:[%s1 + $0x768] sm:$0xff]
      %v1052 = vld [vmem:[%s1 + $0x770] sm:$0xff]
      %v1053 = vld [vmem:[%s1 + $0x778] sm:$0xff]
      %v1054 = vld [vmem:[%s1 + $0x780] sm:$0xff]
      %v1055 = vld [vmem:[%s1 + $0x788] sm:$0xff]
      %v1056 = vld [vmem:[%s1 + $0x790] sm:$0xff]
      %v1057 = vld [vmem:[%s1 + $0x798] sm:$0xff]
      %v1058 = vld [vmem:[%s1 + $0x7a0] sm:$0xff]
      %v1059 = vld [vmem:[%s1 + $0x7a8] sm:$0xff]
      %v1060 = vld [vmem:[%s1 + $0x7b0] sm:$0xff]
      %v1061 = vld [vmem:[%s1 + $0x7b8] sm:$0xff]
      %v1062 = vld [vmem:[%s1 + $0x7c0] sm:$0xff]
      %v1063 = vld [vmem:[%s1 + $0x7c8] sm:$0xff]
      %v1064 = vld [vmem:[%s1 + $0x7d0] sm:$0xff]
      %v1065 = vld [vmem:[%s1 + $0x7d8] sm:$0xff]
      %v1066 = vld [vmem:[%s1 + $0x7e0] sm:$0xff]
      %v1067 = vld [vmem:[%s1 + $0x7e8] sm:$0xff]
      %v1068 = vld [vmem:[%s1 + $0x7f0] sm:$0xff]
      %v1069 = vld [vmem:[%s1 + $0x7f8] sm:$0xff]
      %v1070 = vld [vmem:[%s1 + $0x800] sm:$0xff]
      %v1071 = vld [vmem:[%s1 + $0x808] sm:$0xff]
      %v1072 = vld [vmem:[%s1 + $0x810] sm:$0xff]
      %v1073 = vld [vmem:[%s1 + $0x818] sm:$0xff]
      %v1074 = vld [vmem:[%s1 + $0x820] sm:$0xff]
      %v1075 = vld [vmem:[%s1 + $0x828] sm:$0xff]
      %v1076 = vld [vmem:[%s1 + $0x830] sm:$0xff]
      %v1077 = vld [vmem:[%s1 + $0x838] sm:$0xff]
      %v1078 = vld [vmem:[%s1 + $0x840] sm:$0xff]
      %v1079 = vld [vmem:[%s1 + $0x848] sm:$0xff]
      %v1080 = vld [vmem:[%s1 + $0x850] sm:$0xff]
      %v1081 = vld [vmem:[%s1 + $0x858] sm:$0xff]
      %v1082 = vld [vmem:[%s1 + $0x860] sm:$0xff]
      %v1083 = vld [vmem:[%s1 + $0x868] sm:$0xff]
      %v1084 = vld [vmem:[%s1 + $0x870] sm:$0xff]
      %v1085 = vld [vmem:[%s1 + $0x878] sm:$0xff]
      %v1086 = vld [vmem:[%s1 + $0x880] sm:$0xff]
      %v1087 = vld [vmem:[%s1 + $0x888] sm:$0xff]
      %v1088 = vld [vmem:[%s1 + $0x890] sm:$0xff]
      %v1089 = vld [vmem:[%s1 + $0x898] sm:$0xff]
      %v1090 = vld [vmem:[%s1 + $0x8a0] sm:$0xff]
      %v1091 = vld [vmem:[%s1 + $0x8a8] sm:$0xff]
      %v1092 = vld [vmem:[%s1 + $0x8b0] sm:$0xff]
      %v1093 = vld [vmem:[%s1 + $0x8b8] sm:$0xff]
      %v1094 = vld [vmem:[%s1 + $0x8c0] sm:$0xff]
      %v1095 = vld [vmem:[%s1 + $0x8c8] sm:$0xff]
      %v1096 = vld [vmem:[%s1 + $0x8d0] sm:$0xff]
      %v1097 = vld [vmem:[%s1 + $0x8d8] sm:$0xff]
      %v1098 = vld [vmem:[%s1 + $0x8e0] sm:$0xff]
      %v1099 = vld [vmem:[%s1 + $0x8e8] sm:$0xff]
      %v1100 = vld [vmem:[%s1 + $0x8f0] sm:$0xff]
      %v1101 = vld [vmem:[%s1 + $0x8f8] sm:$0xff]
      %v1102 = vld [vmem:[%s1 + $0x900] sm:$0xff]
      %v1103 = vld [vmem:[%s1 + $0x908] sm:$0xff]
      %v1104 = vld [vmem:[%s1 + $0x910] sm:$0xff]
      %v1105 = vld [vmem:[%s1 + $0x918] sm:$0xff]
      %v1106 = vld [vmem:[%s1 + $0x920] sm:$0xff]
      %v1107 = vld [vmem:[%s1 + $0x928] sm:$0xff]
      %v1108 = vld [vmem:[%s1 + $0x930] sm:$0xff]
      %v1109 = vld [vmem:[%s1 + $0x938] sm:$0xff]
      %v1110 = vld [vmem:[%s1 + $0x940] sm:$0xff]
      %v1111 = vld [vmem:[%s1 + $0x948] sm:$0xff]
      %v1112 = vld [vmem:[%s1 + $0x950] sm:$0xff]
      %v1113 = vld [vmem:[%s1 + $0x958] sm:$0xff]
      %v1114 = vld [vmem:[%s1 + $0x960] sm:$0xff]
      %v1115 = vld [vmem:[%s1 + $0x968] sm:$0xff]
      %v1116 = vld [vmem:[%s1 + $0x970] sm:$0xff]
      %v1117 = vld [vmem:[%s1 + $0x978] sm:$0xff]
      %v1118 = vld [vmem:[%s1 + $0x980] sm:$0xff]
      %v1119 = vld [vmem:[%s1 + $0x988] sm:$0xff]
      %v1120 = vld [vmem:[%s1 + $0x990] sm:$0xff]
      %v1121 = vld [vmem:[%s1 + $0x998] sm:$0xff]
      %v1122 = vld [vmem:[%s1 + $0x9a0] sm:$0xff]
      %v1123 = vld [vmem:[%s1 + $0x9a8] sm:$0xff]
      %v1124 = vld [vmem:[%s1 + $0x9b0] sm:$0xff]
      %v1125 = vld [vmem:[%s1 + $0x9b8] sm:$0xff]
      %v1126 = vld [vmem:[%s1 + $0x9c0] sm:$0xff]
      %v1127 = vld [vmem:[%s1 + $0x9c8] sm:$0xff]
      %v1128 = vld [vmem:[%s1 + $0x9d0] sm:$0xff]
      %v1129 = vld [vmem:[%s1 + $0x9d8] sm:$0xff]
      %v1130 = vld [vmem:[%s1 + $0x9e0] sm:$0xff]
      %v1131 = vld [vmem:[%s1 + $0x9e8] sm:$0xff]
      %v1132 = vld [vmem:[%s1 + $0x9f0] sm:$0xff]
      %v1133 = vld [vmem:[%s1 + $0x9f8] sm:$0xff]
      %v1134 = vld [vmem:[%s1 + $0xa00] sm:$0xff]
      %v1135 = vld [vmem:[%s1 + $0xa08] sm:$0xff]
      %v1136 = vld [vmem:[%s1 + $0xa10] sm:$0xff]
      %v1137 = vld [vmem:[%s1 + $0xa18] sm:$0xff]
      %v1138 = vld [vmem:[%s2] sm:$0xf]
      %v1140 = vlaneseq
      %v1141 = vshrl.u32 %v1140, 7
      %v1142 = vsub.s32 0, %v1141
      %v1143 = vrot.slane %v1138, %v1142
      %v1144 = vlaneseq
      %v1145 = vshrl.u32 %v1144, 7
      %v1146 = vsub.s32 1, %v1145
      %v1147 = vrot.slane %v1138, %v1146
      %v1148 = vlaneseq
      %v1149 = vshrl.u32 %v1148, 7
      %v1150 = vsub.s32 2, %v1149
      %v1151 = vrot.slane %v1138, %v1150
      %v1152 = vlaneseq
      %v1153 = vshrl.u32 %v1152, 7
      %v1154 = vsub.s32 3, %v1153
      %v1155 = vrot.slane %v1138, %v1154
      %v1484 = vunpack.c.l.b16 %v814
      %v1485 = vunpack.c.h.b16 %v814
      %v1486 = vunpack.c.l.b16 %v815
      %v1487 = vunpack.c.h.b16 %v815
      %v1488 = vunpack.c.l.b16 %v816
      %v1489 = vunpack.c.h.b16 %v816
      %v1490 = vunpack.c.l.b16 %v817
      %v1491 = vunpack.c.h.b16 %v817
      %v1492 = vunpack.c.l.b16 %v818
      %v1493 = vunpack.c.h.b16 %v818
      %v1494 = vunpack.c.l.b16 %v819
      %v1495 = vunpack.c.h.b16 %v819
      %v1496 = vunpack.c.l.b16 %v820
      %v1497 = vunpack.c.h.b16 %v820
      %v1498 = vunpack.c.l.b16 %v821
      %v1499 = vunpack.c.h.b16 %v821
      %v1500 = vunpack.c.l.b16 %v822
      %v1501 = vunpack.c.h.b16 %v822
      %v1502 = vunpack.c.l.b16 %v823
      %v1503 = vunpack.c.h.b16 %v823
      %v1504 = vunpack.c.l.b16 %v824
      %v1505 = vunpack.c.h.b16 %v824
      %v1506 = vunpack.c.l.b16 %v825
      %v1507 = vunpack.c.h.b16 %v825
      %v1508 = vunpack.c.l.b16 %v826
      %v1509 = vunpack.c.h.b16 %v826
      %v1510 = vunpack.c.l.b16 %v827
      %v1511 = vunpack.c.h.b16 %v827
      %v1512 = vunpack.c.l.b16 %v828
      %v1513 = vunpack.c.h.b16 %v828
      %v1514 = vunpack.c.l.b16 %v829
      %v1515 = vunpack.c.h.b16 %v829
      %v1516 = vunpack.c.l.b16 %v830
      %v1517 = vunpack.c.h.b16 %v830
      %v1518 = vunpack.c.l.b16 %v831
      %v1519 = vunpack.c.h.b16 %v831
      %v1520 = vunpack.c.l.b16 %v832
      %v1521 = vunpack.c.h.b16 %v832
      %v1522 = vunpack.c.l.b16 %v833
      %v1523 = vunpack.c.h.b16 %v833
      %v1524 = vunpack.c.l.b16 %v834
      %v1525 = vunpack.c.h.b16 %v834
      %v1526 = vunpack.c.l.b16 %v835
      %v1527 = vunpack.c.h.b16 %v835
      %v1528 = vunpack.c.l.b16 %v836
      %v1529 = vunpack.c.h.b16 %v836
      %v1530 = vunpack.c.l.b16 %v837
      %v1531 = vunpack.c.h.b16 %v837
      %v1532 = vunpack.c.l.b16 %v838
      %v1533 = vunpack.c.h.b16 %v838
      %v1534 = vunpack.c.l.b16 %v839
      %v1535 = vunpack.c.h.b16 %v839
      %v1536 = vunpack.c.l.b16 %v840
      %v1537 = vunpack.c.h.b16 %v840
      %v1538 = vunpack.c.l.b16 %v841
      %v1539 = vunpack.c.h.b16 %v841
      %v1540 = vunpack.c.l.b16 %v842
      %v1541 = vunpack.c.h.b16 %v842
      %v1542 = vunpack.c.l.b16 %v843
      %v1543 = vunpack.c.h.b16 %v843
      %v1544 = vunpack.c.l.b16 %v844
      %v1545 = vunpack.c.h.b16 %v844
      %v1546 = vunpack.c.l.b16 %v845
      %v1547 = vunpack.c.h.b16 %v845
      %v1548 = vunpack.c.l.b16 %v846
      %v1549 = vunpack.c.h.b16 %v846
      %v1550 = vunpack.c.l.b16 %v847
      %v1551 = vunpack.c.h.b16 %v847
      %v1552 = vunpack.c.l.b16 %v848
      %v1553 = vunpack.c.h.b16 %v848
      %v1554 = vunpack.c.l.b16 %v849
      %v1555 = vunpack.c.h.b16 %v849
      %v1556 = vunpack.c.l.b16 %v850
      %v1557 = vunpack.c.h.b16 %v850
      %v1558 = vunpack.c.l.b16 %v851
      %v1559 = vunpack.c.h.b16 %v851
      %v1560 = vunpack.c.l.b16 %v852
      %v1561 = vunpack.c.h.b16 %v852
      %v1562 = vunpack.c.l.b16 %v853
      %v1563 = vunpack.c.h.b16 %v853
      %v1564 = vunpack.c.l.b16 %v854
      %v1565 = vunpack.c.h.b16 %v854
      %v1566 = vunpack.c.l.b16 %v855
      %v1567 = vunpack.c.h.b16 %v855
      %v1568 = vunpack.c.l.b16 %v856
      %v1569 = vunpack.c.h.b16 %v856
      %v1570 = vunpack.c.l.b16 %v857
      %v1571 = vunpack.c.h.b16 %v857
      %v1572 = vunpack.c.l.b16 %v858
      %v1573 = vunpack.c.h.b16 %v858
      %v1574 = vunpack.c.l.b16 %v859
      %v1575 = vunpack.c.h.b16 %v859
      %v1576 = vunpack.c.l.b16 %v860
      %v1577 = vunpack.c.h.b16 %v860
      %v1578 = vunpack.c.l.b16 %v861
      %v1579 = vunpack.c.h.b16 %v861
      %v1580 = vunpack.c.l.b16 %v862
      %v1581 = vunpack.c.h.b16 %v862
      %v1582 = vunpack.c.l.b16 %v863
      %v1583 = vunpack.c.h.b16 %v863
      %v1584 = vunpack.c.l.b16 %v864
      %v1585 = vunpack.c.h.b16 %v864
      %v1586 = vunpack.c.l.b16 %v865
      %v1587 = vunpack.c.h.b16 %v865
      %v1588 = vunpack.c.l.b16 %v866
      %v1589 = vunpack.c.h.b16 %v866
      %v1590 = vunpack.c.l.b16 %v867
      %v1591 = vunpack.c.h.b16 %v867
      %v1592 = vunpack.c.l.b16 %v868
      %v1593 = vunpack.c.h.b16 %v868
      %v1594 = vunpack.c.l.b16 %v869
      %v1595 = vunpack.c.h.b16 %v869
      %v1596 = vunpack.c.l.b16 %v870
      %v1597 = vunpack.c.h.b16 %v870
      %v1598 = vunpack.c.l.b16 %v871
      %v1599 = vunpack.c.h.b16 %v871
      %v1600 = vunpack.c.l.b16 %v872
      %v1601 = vunpack.c.h.b16 %v872
      %v1602 = vunpack.c.l.b16 %v873
      %v1603 = vunpack.c.h.b16 %v873
      %v1604 = vunpack.c.l.b16 %v874
      %v1605 = vunpack.c.h.b16 %v874
      %v1606 = vunpack.c.l.b16 %v875
      %v1607 = vunpack.c.h.b16 %v875
      %v1608 = vunpack.c.l.b16 %v876
      %v1609 = vunpack.c.h.b16 %v876
      %v1610 = vunpack.c.l.b16 %v877
      %v1611 = vunpack.c.h.b16 %v877
      %v1612 = vunpack.c.l.b16 %v878
      %v1613 = vunpack.c.h.b16 %v878
      %v1614 = vunpack.c.l.b16 %v879
      %v1615 = vunpack.c.h.b16 %v879
      %v1616 = vunpack.c.l.b16 %v880
      %v1617 = vunpack.c.h.b16 %v880
      %v1618 = vunpack.c.l.b16 %v881
      %v1619 = vunpack.c.h.b16 %v881
      %v1620 = vunpack.c.l.b16 %v882
      %v1621 = vunpack.c.h.b16 %v882
      %v1622 = vunpack.c.l.b16 %v883
      %v1623 = vunpack.c.h.b16 %v883
      %v1624 = vunpack.c.l.b16 %v884
      %v1625 = vunpack.c.h.b16 %v884
      %v1626 = vunpack.c.l.b16 %v885
      %v1627 = vunpack.c.h.b16 %v885
      %v1628 = vunpack.c.l.b16 %v886
      %v1629 = vunpack.c.h.b16 %v886
      %v1630 = vunpack.c.l.b16 %v887
      %v1631 = vunpack.c.h.b16 %v887
      %v1632 = vunpack.c.l.b16 %v888
      %v1633 = vunpack.c.h.b16 %v888
      %v1634 = vunpack.c.l.b16 %v889
      %v1635 = vunpack.c.h.b16 %v889
      %v1636 = vunpack.c.l.b16 %v890
      %v1637 = vunpack.c.h.b16 %v890
      %v1638 = vunpack.c.l.b16 %v891
      %v1639 = vunpack.c.h.b16 %v891
      %v1640 = vunpack.c.l.b16 %v892
      %v1641 = vunpack.c.h.b16 %v892
      %v1642 = vunpack.c.l.b16 %v893
      %v1643 = vunpack.c.h.b16 %v893
      %v1644 = vunpack.c.l.b16 %v894
      %v1645 = vunpack.c.h.b16 %v894
      %v1646 = vunpack.c.l.b16 %v895
      %v1647 = vunpack.c.h.b16 %v895
      %v1648 = vunpack.c.l.b16 %v896
      %v1649 = vunpack.c.h.b16 %v896
      %v1650 = vunpack.c.l.b16 %v897
      %v1651 = vunpack.c.h.b16 %v897
      %v1652 = vunpack.c.l.b16 %v898
      %v1653 = vunpack.c.h.b16 %v898
      %v1654 = vunpack.c.l.b16 %v899
      %v1655 = vunpack.c.h.b16 %v899
      %v1656 = vunpack.c.l.b16 %v900
      %v1657 = vunpack.c.h.b16 %v900
      %v1658 = vunpack.c.l.b16 %v901
      %v1659 = vunpack.c.h.b16 %v901
      %v1660 = vunpack.c.l.b16 %v902
      %v1661 = vunpack.c.h.b16 %v902
      %v1662 = vunpack.c.l.b16 %v903
      %v1663 = vunpack.c.h.b16 %v903
      %v1664 = vunpack.c.l.b16 %v904
      %v1665 = vunpack.c.h.b16 %v904
      %v1666 = vunpack.c.l.b16 %v905
      %v1667 = vunpack.c.h.b16 %v905
      %v1668 = vunpack.c.l.b16 %v906
      %v1669 = vunpack.c.h.b16 %v906
      %v1670 = vunpack.c.l.b16 %v907
      %v1671 = vunpack.c.h.b16 %v907
      %v1672 = vunpack.c.l.b16 %v908
      %v1673 = vunpack.c.h.b16 %v908
      %v1674 = vunpack.c.l.b16 %v909
      %v1675 = vunpack.c.h.b16 %v909
      %v1676 = vunpack.c.l.b16 %v910
      %v1677 = vunpack.c.h.b16 %v910
      %v1678 = vunpack.c.l.b16 %v911
      %v1679 = vunpack.c.h.b16 %v911
      %v1680 = vunpack.c.l.b16 %v912
      %v1681 = vunpack.c.h.b16 %v912
      %v1682 = vunpack.c.l.b16 %v913
      %v1683 = vunpack.c.h.b16 %v913
      %v1684 = vunpack.c.l.b16 %v914
      %v1685 = vunpack.c.h.b16 %v914
      %v1686 = vunpack.c.l.b16 %v915
      %v1687 = vunpack.c.h.b16 %v915
      %v1688 = vunpack.c.l.b16 %v916
      %v1689 = vunpack.c.h.b16 %v916
      %v1690 = vunpack.c.l.b16 %v917
      %v1691 = vunpack.c.h.b16 %v917
      %v1692 = vunpack.c.l.b16 %v918
      %v1693 = vunpack.c.h.b16 %v918
      %v1694 = vunpack.c.l.b16 %v919
      %v1695 = vunpack.c.h.b16 %v919
      %v1696 = vunpack.c.l.b16 %v920
      %v1697 = vunpack.c.h.b16 %v920
      %v1698 = vunpack.c.l.b16 %v921
      %v1699 = vunpack.c.h.b16 %v921
      %v1700 = vunpack.c.l.b16 %v922
      %v1701 = vunpack.c.h.b16 %v922
      %v1702 = vunpack.c.l.b16 %v923
      %v1703 = vunpack.c.h.b16 %v923
      %v1704 = vunpack.c.l.b16 %v924
      %v1705 = vunpack.c.h.b16 %v924
      %v1706 = vunpack.c.l.b16 %v925
      %v1707 = vunpack.c.h.b16 %v925
      %v1708 = vunpack.c.l.b16 %v926
      %v1709 = vunpack.c.h.b16 %v926
      %v1710 = vunpack.c.l.b16 %v927
      %v1711 = vunpack.c.h.b16 %v927
      %v1712 = vunpack.c.l.b16 %v928
      %v1713 = vunpack.c.h.b16 %v928
      %v1714 = vunpack.c.l.b16 %v929
      %v1715 = vunpack.c.h.b16 %v929
      %v1716 = vunpack.c.l.b16 %v930
      %v1717 = vunpack.c.h.b16 %v930
      %v1718 = vunpack.c.l.b16 %v931
      %v1719 = vunpack.c.h.b16 %v931
      %v1720 = vunpack.c.l.b16 %v932
      %v1721 = vunpack.c.h.b16 %v932
      %v1722 = vunpack.c.l.b16 %v933
      %v1723 = vunpack.c.h.b16 %v933
      %v1724 = vunpack.c.l.b16 %v934
      %v1725 = vunpack.c.h.b16 %v934
      %v1726 = vunpack.c.l.b16 %v935
      %v1727 = vunpack.c.h.b16 %v935
      %v1728 = vunpack.c.l.b16 %v936
      %v1729 = vunpack.c.h.b16 %v936
      %v1730 = vunpack.c.l.b16 %v937
      %v1731 = vunpack.c.h.b16 %v937
      %v1732 = vunpack.c.l.b16 %v938
      %v1733 = vunpack.c.h.b16 %v938
      %v1734 = vunpack.c.l.b16 %v939
      %v1735 = vunpack.c.h.b16 %v939
      %v1736 = vunpack.c.l.b16 %v940
      %v1737 = vunpack.c.h.b16 %v940
      %v1738 = vunpack.c.l.b16 %v941
      %v1739 = vunpack.c.h.b16 %v941
      %v1740 = vunpack.c.l.b16 %v942
      %v1741 = vunpack.c.h.b16 %v942
      %v1742 = vunpack.c.l.b16 %v943
      %v1743 = vunpack.c.h.b16 %v943
      %v1744 = vunpack.c.l.b16 %v944
      %v1745 = vunpack.c.h.b16 %v944
      %v1746 = vunpack.c.l.b16 %v945
      %v1747 = vunpack.c.h.b16 %v945
      %v1748 = vunpack.c.l.b16 %v946
      %v1749 = vunpack.c.h.b16 %v946
      %v1750 = vunpack.c.l.b16 %v947
      %v1751 = vunpack.c.h.b16 %v947
      %v1752 = vunpack.c.l.b16 %v948
      %v1753 = vunpack.c.h.b16 %v948
      %v1754 = vunpack.c.l.b16 %v949
      %v1755 = vunpack.c.h.b16 %v949
      %v1756 = vunpack.c.l.b16 %v950
      %v1757 = vunpack.c.h.b16 %v950
      %v1758 = vunpack.c.l.b16 %v951
      %v1759 = vunpack.c.h.b16 %v951
      %v1760 = vunpack.c.l.b16 %v952
      %v1761 = vunpack.c.h.b16 %v952
      %v1762 = vunpack.c.l.b16 %v953
      %v1763 = vunpack.c.h.b16 %v953
      %v1764 = vunpack.c.l.b16 %v954
      %v1765 = vunpack.c.h.b16 %v954
      %v1766 = vunpack.c.l.b16 %v955
      %v1767 = vunpack.c.h.b16 %v955
      %v1768 = vunpack.c.l.b16 %v956
      %v1769 = vunpack.c.h.b16 %v956
      %v1770 = vunpack.c.l.b16 %v957
      %v1771 = vunpack.c.h.b16 %v957
      %v1772 = vunpack.c.l.b16 %v958
      %v1773 = vunpack.c.h.b16 %v958
      %v1774 = vunpack.c.l.b16 %v959
      %v1775 = vunpack.c.h.b16 %v959
      %v1776 = vunpack.c.l.b16 %v960
      %v1777 = vunpack.c.h.b16 %v960
      %v1778 = vunpack.c.l.b16 %v961
      %v1779 = vunpack.c.h.b16 %v961
      %v1780 = vunpack.c.l.b16 %v962
      %v1781 = vunpack.c.h.b16 %v962
      %v1782 = vunpack.c.l.b16 %v963
      %v1783 = vunpack.c.h.b16 %v963
      %v1784 = vunpack.c.l.b16 %v964
      %v1785 = vunpack.c.h.b16 %v964
      %v1786 = vunpack.c.l.b16 %v965
      %v1787 = vunpack.c.h.b16 %v965
      %v1788 = vunpack.c.l.b16 %v966
      %v1789 = vunpack.c.h.b16 %v966
      %v1790 = vunpack.c.l.b16 %v967
      %v1791 = vunpack.c.h.b16 %v967
      %v1792 = vunpack.c.l.b16 %v968
      %v1793 = vunpack.c.h.b16 %v968
      %v1794 = vunpack.c.l.b16 %v969
      %v1795 = vunpack.c.h.b16 %v969
      %v1796 = vunpack.c.l.b16 %v970
      %v1797 = vunpack.c.h.b16 %v970
      %v1798 = vunpack.c.l.b16 %v971
      %v1799 = vunpack.c.h.b16 %v971
      %v1800 = vunpack.c.l.b16 %v972
      %v1801 = vunpack.c.h.b16 %v972
      %v1802 = vunpack.c.l.b16 %v973
      %v1803 = vunpack.c.h.b16 %v973
      %v1804 = vunpack.c.l.b16 %v974
      %v1805 = vunpack.c.h.b16 %v974
      %v1806 = vunpack.c.l.b16 %v975
      %v1807 = vunpack.c.h.b16 %v975
      %v1808 = vunpack.c.l.b16 %v976
      %v1809 = vunpack.c.h.b16 %v976
      %v1810 = vunpack.c.l.b16 %v977
      %v1811 = vunpack.c.h.b16 %v977
      %v1812 = vunpack.c.l.b16 %v978
      %v1813 = vunpack.c.h.b16 %v978
      %v1814 = vunpack.c.l.b16 %v979
      %v1815 = vunpack.c.h.b16 %v979
      %v1816 = vunpack.c.l.b16 %v980
      %v1817 = vunpack.c.h.b16 %v980
      %v1818 = vunpack.c.l.b16 %v981
      %v1819 = vunpack.c.h.b16 %v981
      %v1820 = vunpack.c.l.b16 %v982
      %v1821 = vunpack.c.h.b16 %v982
      %v1822 = vunpack.c.l.b16 %v983
      %v1823 = vunpack.c.h.b16 %v983
      %v1824 = vunpack.c.l.b16 %v984
      %v1825 = vunpack.c.h.b16 %v984
      %v1826 = vunpack.c.l.b16 %v985
      %v1827 = vunpack.c.h.b16 %v985
      %v1828 = vunpack.c.l.b16 %v986
      %v1829 = vunpack.c.h.b16 %v986
      %v1830 = vunpack.c.l.b16 %v987
      %v1831 = vunpack.c.h.b16 %v987
      %v1832 = vunpack.c.l.b16 %v988
      %v1833 = vunpack.c.h.b16 %v988
      %v1834 = vunpack.c.l.b16 %v989
      %v1835 = vunpack.c.h.b16 %v989
      %v1836 = vunpack.c.l.b16 %v990
      %v1837 = vunpack.c.h.b16 %v990
      %v1838 = vunpack.c.l.b16 %v991
      %v1839 = vunpack.c.h.b16 %v991
      %v1840 = vunpack.c.l.b16 %v992
      %v1841 = vunpack.c.h.b16 %v992
      %v1842 = vunpack.c.l.b16 %v993
      %v1843 = vunpack.c.h.b16 %v993
      %v1844 = vunpack.c.l.b16 %v994
      %v1845 = vunpack.c.h.b16 %v994
      %v1846 = vunpack.c.l.b16 %v995
      %v1847 = vunpack.c.h.b16 %v995
      %v1848 = vunpack.c.l.b16 %v996
      %v1849 = vunpack.c.h.b16 %v996
      %v1850 = vunpack.c.l.b16 %v997
      %v1851 = vunpack.c.h.b16 %v997
      %v1852 = vunpack.c.l.b16 %v998
      %v1853 = vunpack.c.h.b16 %v998
      %v1854 = vunpack.c.l.b16 %v999
      %v1855 = vunpack.c.h.b16 %v999
      %v1856 = vunpack.c.l.b16 %v1000
      %v1857 = vunpack.c.h.b16 %v1000
      %v1858 = vunpack.c.l.b16 %v1001
      %v1859 = vunpack.c.h.b16 %v1001
      %v1860 = vunpack.c.l.b16 %v1002
      %v1861 = vunpack.c.h.b16 %v1002
      %v1862 = vunpack.c.l.b16 %v1003
      %v1863 = vunpack.c.h.b16 %v1003
      %v1864 = vunpack.c.l.b16 %v1004
      %v1865 = vunpack.c.h.b16 %v1004
      %v1866 = vunpack.c.l.b16 %v1005
      %v1867 = vunpack.c.h.b16 %v1005
      %v1868 = vunpack.c.l.b16 %v1006
      %v1869 = vunpack.c.h.b16 %v1006
      %v1870 = vunpack.c.l.b16 %v1007
      %v1871 = vunpack.c.h.b16 %v1007
      %v1872 = vunpack.c.l.b16 %v1008
      %v1873 = vunpack.c.h.b16 %v1008
      %v1874 = vunpack.c.l.b16 %v1009
      %v1875 = vunpack.c.h.b16 %v1009
      %v1876 = vunpack.c.l.b16 %v1010
      %v1877 = vunpack.c.h.b16 %v1010
      %v1878 = vunpack.c.l.b16 %v1011
      %v1879 = vunpack.c.h.b16 %v1011
      %v1880 = vunpack.c.l.b16 %v1012
      %v1881 = vunpack.c.h.b16 %v1012
      %v1882 = vunpack.c.l.b16 %v1013
      %v1883 = vunpack.c.h.b16 %v1013
      %v1884 = vunpack.c.l.b16 %v1014
      %v1885 = vunpack.c.h.b16 %v1014
      %v1886 = vunpack.c.l.b16 %v1015
      %v1887 = vunpack.c.h.b16 %v1015
      %v1888 = vunpack.c.l.b16 %v1016
      %v1889 = vunpack.c.h.b16 %v1016
      %v1890 = vunpack.c.l.b16 %v1017
      %v1891 = vunpack.c.h.b16 %v1017
      %v1892 = vunpack.c.l.b16 %v1018
      %v1893 = vunpack.c.h.b16 %v1018
      %v1894 = vunpack.c.l.b16 %v1019
      %v1895 = vunpack.c.h.b16 %v1019
      %v1896 = vunpack.c.l.b16 %v1020
      %v1897 = vunpack.c.h.b16 %v1020
      %v1898 = vunpack.c.l.b16 %v1021
      %v1899 = vunpack.c.h.b16 %v1021
      %v1900 = vunpack.c.l.b16 %v1022
      %v1901 = vunpack.c.h.b16 %v1022
      %v1902 = vunpack.c.l.b16 %v1023
      %v1903 = vunpack.c.h.b16 %v1023
      %v1904 = vunpack.c.l.b16 %v1024
      %v1905 = vunpack.c.h.b16 %v1024
      %v1906 = vunpack.c.l.b16 %v1025
      %v1907 = vunpack.c.h.b16 %v1025
      %v1908 = vunpack.c.l.b16 %v1026
      %v1909 = vunpack.c.h.b16 %v1026
      %v1910 = vunpack.c.l.b16 %v1027
      %v1911 = vunpack.c.h.b16 %v1027
      %v1912 = vunpack.c.l.b16 %v1028
      %v1913 = vunpack.c.h.b16 %v1028
      %v1914 = vunpack.c.l.b16 %v1029
      %v1915 = vunpack.c.h.b16 %v1029
      %v1916 = vunpack.c.l.b16 %v1030
      %v1917 = vunpack.c.h.b16 %v1030
      %v1918 = vunpack.c.l.b16 %v1031
      %v1919 = vunpack.c.h.b16 %v1031
      %v1920 = vunpack.c.l.b16 %v1032
      %v1921 = vunpack.c.h.b16 %v1032
      %v1922 = vunpack.c.l.b16 %v1033
      %v1923 = vunpack.c.h.b16 %v1033
      %v1924 = vunpack.c.l.b16 %v1034
      %v1925 = vunpack.c.h.b16 %v1034
      %v1926 = vunpack.c.l.b16 %v1035
      %v1927 = vunpack.c.h.b16 %v1035
      %v1928 = vunpack.c.l.b16 %v1036
      %v1929 = vunpack.c.h.b16 %v1036
      %v1930 = vunpack.c.l.b16 %v1037
      %v1931 = vunpack.c.h.b16 %v1037
      %v1932 = vunpack.c.l.b16 %v1038
      %v1933 = vunpack.c.h.b16 %v1038
      %v1934 = vunpack.c.l.b16 %v1039
      %v1935 = vunpack.c.h.b16 %v1039
      %v1936 = vunpack.c.l.b16 %v1040
      %v1937 = vunpack.c.h.b16 %v1040
      %v1938 = vunpack.c.l.b16 %v1041
      %v1939 = vunpack.c.h.b16 %v1041
      %v1940 = vunpack.c.l.b16 %v1042
      %v1941 = vunpack.c.h.b16 %v1042
      %v1942 = vunpack.c.l.b16 %v1043
      %v1943 = vunpack.c.h.b16 %v1043
      %v1944 = vunpack.c.l.b16 %v1044
      %v1945 = vunpack.c.h.b16 %v1044
      %v1946 = vunpack.c.l.b16 %v1045
      %v1947 = vunpack.c.h.b16 %v1045
      %v1948 = vunpack.c.l.b16 %v1046
      %v1949 = vunpack.c.h.b16 %v1046
      %v1950 = vunpack.c.l.b16 %v1047
      %v1951 = vunpack.c.h.b16 %v1047
      %v1952 = vunpack.c.l.b16 %v1048
      %v1953 = vunpack.c.h.b16 %v1048
      %v1954 = vunpack.c.l.b16 %v1049
      %v1955 = vunpack.c.h.b16 %v1049
      %v1956 = vunpack.c.l.b16 %v1050
      %v1957 = vunpack.c.h.b16 %v1050
      %v1958 = vunpack.c.l.b16 %v1051
      %v1959 = vunpack.c.h.b16 %v1051
      %v1960 = vunpack.c.l.b16 %v1052
      %v1961 = vunpack.c.h.b16 %v1052
      %v1962 = vunpack.c.l.b16 %v1053
      %v1963 = vunpack.c.h.b16 %v1053
      %v1964 = vunpack.c.l.b16 %v1054
      %v1965 = vunpack.c.h.b16 %v1054
      %v1966 = vunpack.c.l.b16 %v1055
      %v1967 = vunpack.c.h.b16 %v1055
      %v1968 = vunpack.c.l.b16 %v1056
      %v1969 = vunpack.c.h.b16 %v1056
      %v1970 = vunpack.c.l.b16 %v1057
      %v1971 = vunpack.c.h.b16 %v1057
      %v1972 = vunpack.c.l.b16 %v1058
      %v1973 = vunpack.c.h.b16 %v1058
      %v1974 = vunpack.c.l.b16 %v1059
      %v1975 = vunpack.c.h.b16 %v1059
      %v1976 = vunpack.c.l.b16 %v1060
      %v1977 = vunpack.c.h.b16 %v1060
      %v1978 = vunpack.c.l.b16 %v1061
      %v1979 = vunpack.c.h.b16 %v1061
      %v1980 = vunpack.c.l.b16 %v1062
      %v1981 = vunpack.c.h.b16 %v1062
      %v1982 = vunpack.c.l.b16 %v1063
      %v1983 = vunpack.c.h.b16 %v1063
      %v1984 = vunpack.c.l.b16 %v1064
      %v1985 = vunpack.c.h.b16 %v1064
      %v1986 = vunpack.c.l.b16 %v1065
      %v1987 = vunpack.c.h.b16 %v1065
      %v1988 = vunpack.c.l.b16 %v1066
      %v1989 = vunpack.c.h.b16 %v1066
      %v1990 = vunpack.c.l.b16 %v1067
      %v1991 = vunpack.c.h.b16 %v1067
      %v1992 = vunpack.c.l.b16 %v1068
      %v1993 = vunpack.c.h.b16 %v1068
      %v1994 = vunpack.c.l.b16 %v1069
      %v1995 = vunpack.c.h.b16 %v1069
      %v1996 = vunpack.c.l.b16 %v1070
      %v1997 = vunpack.c.h.b16 %v1070
      %v1998 = vunpack.c.l.b16 %v1071
      %v1999 = vunpack.c.h.b16 %v1071
      %v2000 = vunpack.c.l.b16 %v1072
      %v2001 = vunpack.c.h.b16 %v1072
      %v2002 = vunpack.c.l.b16 %v1073
      %v2003 = vunpack.c.h.b16 %v1073
      %v2004 = vunpack.c.l.b16 %v1074
      %v2005 = vunpack.c.h.b16 %v1074
      %v2006 = vunpack.c.l.b16 %v1075
      %v2007 = vunpack.c.h.b16 %v1075
      %v2008 = vunpack.c.l.b16 %v1076
      %v2009 = vunpack.c.h.b16 %v1076
      %v2010 = vunpack.c.l.b16 %v1077
      %v2011 = vunpack.c.h.b16 %v1077
      %v2012 = vunpack.c.l.b16 %v1078
      %v2013 = vunpack.c.h.b16 %v1078
      %v2014 = vunpack.c.l.b16 %v1079
      %v2015 = vunpack.c.h.b16 %v1079
      %v2016 = vunpack.c.l.b16 %v1080
      %v2017 = vunpack.c.h.b16 %v1080
      %v2018 = vunpack.c.l.b16 %v1081
      %v2019 = vunpack.c.h.b16 %v1081
      %v2020 = vunpack.c.l.b16 %v1082
      %v2021 = vunpack.c.h.b16 %v1082
      %v2022 = vunpack.c.l.b16 %v1083
      %v2023 = vunpack.c.h.b16 %v1083
      %v2024 = vunpack.c.l.b16 %v1084
      %v2025 = vunpack.c.h.b16 %v1084
      %v2026 = vunpack.c.l.b16 %v1085
      %v2027 = vunpack.c.h.b16 %v1085
      %v2028 = vunpack.c.l.b16 %v1086
      %v2029 = vunpack.c.h.b16 %v1086
      %v2030 = vunpack.c.l.b16 %v1087
      %v2031 = vunpack.c.h.b16 %v1087
      %v2032 = vunpack.c.l.b16 %v1088
      %v2033 = vunpack.c.h.b16 %v1088
      %v2034 = vunpack.c.l.b16 %v1089
      %v2035 = vunpack.c.h.b16 %v1089
      %v2036 = vunpack.c.l.b16 %v1090
      %v2037 = vunpack.c.h.b16 %v1090
      %v2038 = vunpack.c.l.b16 %v1091
      %v2039 = vunpack.c.h.b16 %v1091
      %v2040 = vunpack.c.l.b16 %v1092
      %v2041 = vunpack.c.h.b16 %v1092
      %v2042 = vunpack.c.l.b16 %v1093
      %v2043 = vunpack.c.h.b16 %v1093
      %v2044 = vunpack.c.l.b16 %v1094
      %v2045 = vunpack.c.h.b16 %v1094
      %v2046 = vunpack.c.l.b16 %v1095
      %v2047 = vunpack.c.h.b16 %v1095
      %v2048 = vunpack.c.l.b16 %v1096
      %v2049 = vunpack.c.h.b16 %v1096
      %v2050 = vunpack.c.l.b16 %v1097
      %v2051 = vunpack.c.h.b16 %v1097
      %v2052 = vunpack.c.l.b16 %v1098
      %v2053 = vunpack.c.h.b16 %v1098
      %v2054 = vunpack.c.l.b16 %v1099
      %v2055 = vunpack.c.h.b16 %v1099
      %v2056 = vunpack.c.l.b16 %v1100
      %v2057 = vunpack.c.h.b16 %v1100
      %v2058 = vunpack.c.l.b16 %v1101
      %v2059 = vunpack.c.h.b16 %v1101
      %v2060 = vunpack.c.l.b16 %v1102
      %v2061 = vunpack.c.h.b16 %v1102
      %v2062 = vunpack.c.l.b16 %v1103
      %v2063 = vunpack.c.h.b16 %v1103
      %v2064 = vunpack.c.l.b16 %v1104
      %v2065 = vunpack.c.h.b16 %v1104
      %v2066 = vunpack.c.l.b16 %v1105
      %v2067 = vunpack.c.h.b16 %v1105
      %v2068 = vunpack.c.l.b16 %v1106
      %v2069 = vunpack.c.h.b16 %v1106
      %v2070 = vunpack.c.l.b16 %v1107
      %v2071 = vunpack.c.h.b16 %v1107
      %v2072 = vunpack.c.l.b16 %v1108
      %v2073 = vunpack.c.h.b16 %v1108
      %v2074 = vunpack.c.l.b16 %v1109
      %v2075 = vunpack.c.h.b16 %v1109
      %v2076 = vunpack.c.l.b16 %v1110
      %v2077 = vunpack.c.h.b16 %v1110
      %v2078 = vunpack.c.l.b16 %v1111
      %v2079 = vunpack.c.h.b16 %v1111
      %v2080 = vunpack.c.l.b16 %v1112
      %v2081 = vunpack.c.h.b16 %v1112
      %v2082 = vunpack.c.l.b16 %v1113
      %v2083 = vunpack.c.h.b16 %v1113
      %v2084 = vunpack.c.l.b16 %v1114
      %v2085 = vunpack.c.h.b16 %v1114
      %v2086 = vunpack.c.l.b16 %v1115
      %v2087 = vunpack.c.h.b16 %v1115
      %v2088 = vunpack.c.l.b16 %v1116
      %v2089 = vunpack.c.h.b16 %v1116
      %v2090 = vunpack.c.l.b16 %v1117
      %v2091 = vunpack.c.h.b16 %v1117
      %v2092 = vunpack.c.l.b16 %v1118
      %v2093 = vunpack.c.h.b16 %v1118
      %v2094 = vunpack.c.l.b16 %v1119
      %v2095 = vunpack.c.h.b16 %v1119
      %v2096 = vunpack.c.l.b16 %v1120
      %v2097 = vunpack.c.h.b16 %v1120
      %v2098 = vunpack.c.l.b16 %v1121
      %v2099 = vunpack.c.h.b16 %v1121
      %v2100 = vunpack.c.l.b16 %v1122
      %v2101 = vunpack.c.h.b16 %v1122
      %v2102 = vunpack.c.l.b16 %v1123
      %v2103 = vunpack.c.h.b16 %v1123
      %v2104 = vunpack.c.l.b16 %v1124
      %v2105 = vunpack.c.h.b16 %v1124
      %v2106 = vunpack.c.l.b16 %v1125
      %v2107 = vunpack.c.h.b16 %v1125
      %v2108 = vunpack.c.l.b16 %v1126
      %v2109 = vunpack.c.h.b16 %v1126
      %v2110 = vunpack.c.l.b16 %v1127
      %v2111 = vunpack.c.h.b16 %v1127
      %v2112 = vunpack.c.l.b16 %v1128
      %v2113 = vunpack.c.h.b16 %v1128
      %v2114 = vunpack.c.l.b16 %v1129
      %v2115 = vunpack.c.h.b16 %v1129
      %v2116 = vunpack.c.l.b16 %v1130
      %v2117 = vunpack.c.h.b16 %v1130
      %v2118 = vunpack.c.l.b16 %v1131
      %v2119 = vunpack.c.h.b16 %v1131
      %v2120 = vunpack.c.l.b16 %v1132
      %v2121 = vunpack.c.h.b16 %v1132
      %v2122 = vunpack.c.l.b16 %v1133
      %v2123 = vunpack.c.h.b16 %v1133
      %v2124 = vunpack.c.l.b16 %v1134
      %v2125 = vunpack.c.h.b16 %v1134
      %v2126 = vunpack.c.l.b16 %v1135
      %v2127 = vunpack.c.h.b16 %v1135
      %v2128 = vunpack.c.l.b16 %v1136
      %v2129 = vunpack.c.h.b16 %v1136
      %v2130 = vunpack.c.l.b16 %v1137
      %v2131 = vunpack.c.h.b16 %v1137
      %v2132 = vpack.c.b16 %v1488, %v1484
      %v2133 = vpack.c.b16 %v1489, %v1485
      %v2134 = vpack.c.b16 %v1490, %v1486
      %v2135 = vpack.c.b16 %v1491, %v1487
      %v2136 = vpack.c.b16 %v1496, %v1492
      %v2137 = vpack.c.b16 %v1497, %v1493
      %v2138 = vpack.c.b16 %v1498, %v1494
      %v2139 = vpack.c.b16 %v1499, %v1495
      %v2140 = vpack.c.b16 %v1504, %v1500
      %v2141 = vpack.c.b16 %v1505, %v1501
      %v2142 = vpack.c.b16 %v1506, %v1502
      %v2143 = vpack.c.b16 %v1507, %v1503
      %v2144 = vpack.c.b16 %v1512, %v1508
      %v2145 = vpack.c.b16 %v1513, %v1509
      %v2146 = vpack.c.b16 %v1514, %v1510
      %v2147 = vpack.c.b16 %v1515, %v1511
      %v2148 = vpack.c.b16 %v1520, %v1516
      %v2149 = vpack.c.b16 %v1521, %v1517
      %v2150 = vpack.c.b16 %v1522, %v1518
      %v2151 = vpack.c.b16 %v1523, %v1519
      %v2152 = vpack.c.b16 %v1528, %v1524
      %v2153 = vpack.c.b16 %v1529, %v1525
      %v2154 = vpack.c.b16 %v1530, %v1526
      %v2155 = vpack.c.b16 %v1531, %v1527
      %v2156 = vpack.c.b16 %v1536, %v1532
      %v2157 = vpack.c.b16 %v1537, %v1533
      %v2158 = vpack.c.b16 %v1538, %v1534
      %v2159 = vpack.c.b16 %v1539, %v1535
      %v2160 = vpack.c.b16 %v1544, %v1540
      %v2161 = vpack.c.b16 %v1545, %v1541
      %v2162 = vpack.c.b16 %v1546, %v1542
      %v2163 = vpack.c.b16 %v1547, %v1543
      %v2164 = vpack.c.b16 %v1552, %v1548
      %v2165 = vpack.c.b16 %v1553, %v1549
      %v2166 = vpack.c.b16 %v1554, %v1550
      %v2167 = vpack.c.b16 %v1555, %v1551
      %v2168 = vpack.c.b16 %v1560, %v1556
      %v2169 = vpack.c.b16 %v1561, %v1557
      %v2170 = vpack.c.b16 %v1562, %v1558
      %v2171 = vpack.c.b16 %v1563, %v1559
      %v2172 = vpack.c.b16 %v1568, %v1564
      %v2173 = vpack.c.b16 %v1569, %v1565
      %v2174 = vpack.c.b16 %v1570, %v1566
      %v2175 = vpack.c.b16 %v1571, %v1567
      %v2176 = vpack.c.b16 %v1576, %v1572
      %v2177 = vpack.c.b16 %v1577, %v1573
      %v2178 = vpack.c.b16 %v1578, %v1574
      %v2179 = vpack.c.b16 %v1579, %v1575
      %v2180 = vpack.c.b16 %v1584, %v1580
      %v2181 = vpack.c.b16 %v1585, %v1581
      %v2182 = vpack.c.b16 %v1586, %v1582
      %v2183 = vpack.c.b16 %v1587, %v1583
      %v2184 = vpack.c.b16 %v1592, %v1588
      %v2185 = vpack.c.b16 %v1593, %v1589
      %v2186 = vpack.c.b16 %v1594, %v1590
      %v2187 = vpack.c.b16 %v1595, %v1591
      %v2188 = vpack.c.b16 %v1600, %v1596
      %v2189 = vpack.c.b16 %v1601, %v1597
      %v2190 = vpack.c.b16 %v1602, %v1598
      %v2191 = vpack.c.b16 %v1603, %v1599
      %v2192 = vpack.c.b16 %v1608, %v1604
      %v2193 = vpack.c.b16 %v1609, %v1605
      %v2194 = vpack.c.b16 %v1610, %v1606
      %v2195 = vpack.c.b16 %v1611, %v1607
      %v2196 = vpack.c.b16 %v1616, %v1612
      %v2197 = vpack.c.b16 %v1617, %v1613
      %v2198 = vpack.c.b16 %v1618, %v1614
      %v2199 = vpack.c.b16 %v1619, %v1615
      %v2200 = vpack.c.b16 %v1624, %v1620
      %v2201 = vpack.c.b16 %v1625, %v1621
      %v2202 = vpack.c.b16 %v1626, %v1622
      %v2203 = vpack.c.b16 %v1627, %v1623
      %v2204 = vpack.c.b16 %v1632, %v1628
      %v2205 = vpack.c.b16 %v1633, %v1629
      %v2206 = vpack.c.b16 %v1634, %v1630
      %v2207 = vpack.c.b16 %v1635, %v1631
      %v2208 = vpack.c.b16 %v1640, %v1636
      %v2209 = vpack.c.b16 %v1641, %v1637
      %v2210 = vpack.c.b16 %v1642, %v1638
      %v2211 = vpack.c.b16 %v1643, %v1639
      %v2212 = vpack.c.b16 %v1648, %v1644
      %v2213 = vpack.c.b16 %v1649, %v1645
      %v2214 = vpack.c.b16 %v1650, %v1646
      %v2215 = vpack.c.b16 %v1651, %v1647
      %v2216 = vpack.c.b16 %v1656, %v1652
      %v2217 = vpack.c.b16 %v1657, %v1653
      %v2218 = vpack.c.b16 %v1658, %v1654
      %v2219 = vpack.c.b16 %v1659, %v1655
      %v2220 = vpack.c.b16 %v1664, %v1660
      %v2221 = vpack.c.b16 %v1665, %v1661
      %v2222 = vpack.c.b16 %v1666, %v1662
      %v2223 = vpack.c.b16 %v1667, %v1663
      %v2224 = vpack.c.b16 %v1672, %v1668
      %v2225 = vpack.c.b16 %v1673, %v1669
      %v2226 = vpack.c.b16 %v1674, %v1670
      %v2227 = vpack.c.b16 %v1675, %v1671
      %v2228 = vpack.c.b16 %v1680, %v1676
      %v2229 = vpack.c.b16 %v1681, %v1677
      %v2230 = vpack.c.b16 %v1682, %v1678
      %v2231 = vpack.c.b16 %v1683, %v1679
      %v2232 = vpack.c.b16 %v1688, %v1684
      %v2233 = vpack.c.b16 %v1689, %v1685
      %v2234 = vpack.c.b16 %v1690, %v1686
      %v2235 = vpack.c.b16 %v1691, %v1687
      %v2236 = vpack.c.b16 %v1696, %v1692
      %v2237 = vpack.c.b16 %v1697, %v1693
      %v2238 = vpack.c.b16 %v1698, %v1694
      %v2239 = vpack.c.b16 %v1699, %v1695
      %v2240 = vpack.c.b16 %v1704, %v1700
      %v2241 = vpack.c.b16 %v1705, %v1701
      %v2242 = vpack.c.b16 %v1706, %v1702
      %v2243 = vpack.c.b16 %v1707, %v1703
      %v2244 = vpack.c.b16 %v1712, %v1708
      %v2245 = vpack.c.b16 %v1713, %v1709
      %v2246 = vpack.c.b16 %v1714, %v1710
      %v2247 = vpack.c.b16 %v1715, %v1711
      %v2248 = vpack.c.b16 %v1720, %v1716
      %v2249 = vpack.c.b16 %v1721, %v1717
      %v2250 = vpack.c.b16 %v1722, %v1718
      %v2251 = vpack.c.b16 %v1723, %v1719
      %v2252 = vpack.c.b16 %v1728, %v1724
      %v2253 = vpack.c.b16 %v1729, %v1725
      %v2254 = vpack.c.b16 %v1730, %v1726
      %v2255 = vpack.c.b16 %v1731, %v1727
      %v2256 = vpack.c.b16 %v1736, %v1732
      %v2257 = vpack.c.b16 %v1737, %v1733
      %v2258 = vpack.c.b16 %v1738, %v1734
      %v2259 = vpack.c.b16 %v1739, %v1735
      %v2260 = vpack.c.b16 %v1744, %v1740
      %v2261 = vpack.c.b16 %v1745, %v1741
      %v2262 = vpack.c.b16 %v1746, %v1742
      %v2263 = vpack.c.b16 %v1747, %v1743
      %v2264 = vpack.c.b16 %v1752, %v1748
      %v2265 = vpack.c.b16 %v1753, %v1749
      %v2266 = vpack.c.b16 %v1754, %v1750
      %v2267 = vpack.c.b16 %v1755, %v1751
      %v2268 = vpack.c.b16 %v1760, %v1756
      %v2269 = vpack.c.b16 %v1761, %v1757
      %v2270 = vpack.c.b16 %v1762, %v1758
      %v2271 = vpack.c.b16 %v1763, %v1759
      %v2272 = vpack.c.b16 %v1768, %v1764
      %v2273 = vpack.c.b16 %v1769, %v1765
      %v2274 = vpack.c.b16 %v1770, %v1766
      %v2275 = vpack.c.b16 %v1771, %v1767
      %v2276 = vpack.c.b16 %v1776, %v1772
      %v2277 = vpack.c.b16 %v1777, %v1773
      %v2278 = vpack.c.b16 %v1778, %v1774
      %v2279 = vpack.c.b16 %v1779, %v1775
      %v2280 = vpack.c.b16 %v1784, %v1780
      %v2281 = vpack.c.b16 %v1785, %v1781
      %v2282 = vpack.c.b16 %v1786, %v1782
      %v2283 = vpack.c.b16 %v1787, %v1783
      %v2284 = vpack.c.b16 %v1792, %v1788
      %v2285 = vpack.c.b16 %v1793, %v1789
      %v2286 = vpack.c.b16 %v1794, %v1790
      %v2287 = vpack.c.b16 %v1795, %v1791
      %v2288 = vpack.c.b16 %v1800, %v1796
      %v2289 = vpack.c.b16 %v1801, %v1797
      %v2290 = vpack.c.b16 %v1802, %v1798
      %v2291 = vpack.c.b16 %v1803, %v1799
      %v2292 = vpack.c.b16 %v1808, %v1804
      %v2293 = vpack.c.b16 %v1809, %v1805
      %v2294 = vpack.c.b16 %v1810, %v1806
      %v2295 = vpack.c.b16 %v1811, %v1807
      %v2296 = vpack.c.b16 %v1816, %v1812
      %v2297 = vpack.c.b16 %v1817, %v1813
      %v2298 = vpack.c.b16 %v1818, %v1814
      %v2299 = vpack.c.b16 %v1819, %v1815
      %v2300 = vpack.c.b16 %v1824, %v1820
      %v2301 = vpack.c.b16 %v1825, %v1821
      %v2302 = vpack.c.b16 %v1826, %v1822
      %v2303 = vpack.c.b16 %v1827, %v1823
      %v2304 = vpack.c.b16 %v1832, %v1828
      %v2305 = vpack.c.b16 %v1833, %v1829
      %v2306 = vpack.c.b16 %v1834, %v1830
      %v2307 = vpack.c.b16 %v1835, %v1831
      %v2308 = vpack.c.b16 %v1840, %v1836
      %v2309 = vpack.c.b16 %v1841, %v1837
      %v2310 = vpack.c.b16 %v1842, %v1838
      %v2311 = vpack.c.b16 %v1843, %v1839
      %v2312 = vpack.c.b16 %v1848, %v1844
      %v2313 = vpack.c.b16 %v1849, %v1845
      %v2314 = vpack.c.b16 %v1850, %v1846
      %v2315 = vpack.c.b16 %v1851, %v1847
      %v2316 = vpack.c.b16 %v1856, %v1852
      %v2317 = vpack.c.b16 %v1857, %v1853
      %v2318 = vpack.c.b16 %v1858, %v1854
      %v2319 = vpack.c.b16 %v1859, %v1855
      %v2320 = vpack.c.b16 %v1864, %v1860
      %v2321 = vpack.c.b16 %v1865, %v1861
      %v2322 = vpack.c.b16 %v1866, %v1862
      %v2323 = vpack.c.b16 %v1867, %v1863
      %v2324 = vpack.c.b16 %v1872, %v1868
      %v2325 = vpack.c.b16 %v1873, %v1869
      %v2326 = vpack.c.b16 %v1874, %v1870
      %v2327 = vpack.c.b16 %v1875, %v1871
      %v2328 = vpack.c.b16 %v1880, %v1876
      %v2329 = vpack.c.b16 %v1881, %v1877
      %v2330 = vpack.c.b16 %v1882, %v1878
      %v2331 = vpack.c.b16 %v1883, %v1879
      %v2332 = vpack.c.b16 %v1888, %v1884
      %v2333 = vpack.c.b16 %v1889, %v1885
      %v2334 = vpack.c.b16 %v1890, %v1886
      %v2335 = vpack.c.b16 %v1891, %v1887
      %v2336 = vpack.c.b16 %v1896, %v1892
      %v2337 = vpack.c.b16 %v1897, %v1893
      %v2338 = vpack.c.b16 %v1898, %v1894
      %v2339 = vpack.c.b16 %v1899, %v1895
      %v2340 = vpack.c.b16 %v1904, %v1900
      %v2341 = vpack.c.b16 %v1905, %v1901
      %v2342 = vpack.c.b16 %v1906, %v1902
      %v2343 = vpack.c.b16 %v1907, %v1903
      %v2344 = vpack.c.b16 %v1912, %v1908
      %v2345 = vpack.c.b16 %v1913, %v1909
      %v2346 = vpack.c.b16 %v1914, %v1910
      %v2347 = vpack.c.b16 %v1915, %v1911
      %v2348 = vpack.c.b16 %v1920, %v1916
      %v2349 = vpack.c.b16 %v1921, %v1917
      %v2350 = vpack.c.b16 %v1922, %v1918
      %v2351 = vpack.c.b16 %v1923, %v1919
      %v2352 = vpack.c.b16 %v1928, %v1924
      %v2353 = vpack.c.b16 %v1929, %v1925
      %v2354 = vpack.c.b16 %v1930, %v1926
      %v2355 = vpack.c.b16 %v1931, %v1927
      %v2356 = vpack.c.b16 %v1936, %v1932
      %v2357 = vpack.c.b16 %v1937, %v1933
      %v2358 = vpack.c.b16 %v1938, %v1934
      %v2359 = vpack.c.b16 %v1939, %v1935
      %v2360 = vpack.c.b16 %v1944, %v1940
      %v2361 = vpack.c.b16 %v1945, %v1941
      %v2362 = vpack.c.b16 %v1946, %v1942
      %v2363 = vpack.c.b16 %v1947, %v1943
      %v2364 = vpack.c.b16 %v1952, %v1948
      %v2365 = vpack.c.b16 %v1953, %v1949
      %v2366 = vpack.c.b16 %v1954, %v1950
      %v2367 = vpack.c.b16 %v1955, %v1951
      %v2368 = vpack.c.b16 %v1960, %v1956
      %v2369 = vpack.c.b16 %v1961, %v1957
      %v2370 = vpack.c.b16 %v1962, %v1958
      %v2371 = vpack.c.b16 %v1963, %v1959
      %v2372 = vpack.c.b16 %v1968, %v1964
      %v2373 = vpack.c.b16 %v1969, %v1965
      %v2374 = vpack.c.b16 %v1970, %v1966
      %v2375 = vpack.c.b16 %v1971, %v1967
      %v2376 = vpack.c.b16 %v1976, %v1972
      %v2377 = vpack.c.b16 %v1977, %v1973
      %v2378 = vpack.c.b16 %v1978, %v1974
      %v2379 = vpack.c.b16 %v1979, %v1975
      %v2380 = vpack.c.b16 %v1984, %v1980
      %v2381 = vpack.c.b16 %v1985, %v1981
      %v2382 = vpack.c.b16 %v1986, %v1982
      %v2383 = vpack.c.b16 %v1987, %v1983
      %v2384 = vpack.c.b16 %v1992, %v1988
      %v2385 = vpack.c.b16 %v1993, %v1989
      %v2386 = vpack.c.b16 %v1994, %v1990
      %v2387 = vpack.c.b16 %v1995, %v1991
      %v2388 = vpack.c.b16 %v2000, %v1996
      %v2389 = vpack.c.b16 %v2001, %v1997
      %v2390 = vpack.c.b16 %v2002, %v1998
      %v2391 = vpack.c.b16 %v2003, %v1999
      %v2392 = vpack.c.b16 %v2008, %v2004
      %v2393 = vpack.c.b16 %v2009, %v2005
      %v2394 = vpack.c.b16 %v2010, %v2006
      %v2395 = vpack.c.b16 %v2011, %v2007
      %v2396 = vpack.c.b16 %v2016, %v2012
      %v2397 = vpack.c.b16 %v2017, %v2013
      %v2398 = vpack.c.b16 %v2018, %v2014
      %v2399 = vpack.c.b16 %v2019, %v2015
      %v2400 = vpack.c.b16 %v2024, %v2020
      %v2401 = vpack.c.b16 %v2025, %v2021
      %v2402 = vpack.c.b16 %v2026, %v2022
      %v2403 = vpack.c.b16 %v2027, %v2023
      %v2404 = vpack.c.b16 %v2032, %v2028
      %v2405 = vpack.c.b16 %v2033, %v2029
      %v2406 = vpack.c.b16 %v2034, %v2030
      %v2407 = vpack.c.b16 %v2035, %v2031
      %v2408 = vpack.c.b16 %v2040, %v2036
      %v2409 = vpack.c.b16 %v2041, %v2037
      %v2410 = vpack.c.b16 %v2042, %v2038
      %v2411 = vpack.c.b16 %v2043, %v2039
      %v2412 = vpack.c.b16 %v2048, %v2044
      %v2413 = vpack.c.b16 %v2049, %v2045
      %v2414 = vpack.c.b16 %v2050, %v2046
      %v2415 = vpack.c.b16 %v2051, %v2047
      %v2416 = vpack.c.b16 %v2056, %v2052
      %v2417 = vpack.c.b16 %v2057, %v2053
      %v2418 = vpack.c.b16 %v2058, %v2054
      %v2419 = vpack.c.b16 %v2059, %v2055
      %v2420 = vpack.c.b16 %v2064, %v2060
      %v2421 = vpack.c.b16 %v2065, %v2061
      %v2422 = vpack.c.b16 %v2066, %v2062
      %v2423 = vpack.c.b16 %v2067, %v2063
      %v2424 = vpack.c.b16 %v2072, %v2068
      %v2425 = vpack.c.b16 %v2073, %v2069
      %v2426 = vpack.c.b16 %v2074, %v2070
      %v2427 = vpack.c.b16 %v2075, %v2071
      %v2428 = vpack.c.b16 %v2080, %v2076
      %v2429 = vpack.c.b16 %v2081, %v2077
      %v2430 = vpack.c.b16 %v2082, %v2078
      %v2431 = vpack.c.b16 %v2083, %v2079
      %v2432 = vpack.c.b16 %v2088, %v2084
      %v2433 = vpack.c.b16 %v2089, %v2085
      %v2434 = vpack.c.b16 %v2090, %v2086
      %v2435 = vpack.c.b16 %v2091, %v2087
      %v2436 = vpack.c.b16 %v2096, %v2092
      %v2437 = vpack.c.b16 %v2097, %v2093
      %v2438 = vpack.c.b16 %v2098, %v2094
      %v2439 = vpack.c.b16 %v2099, %v2095
      %v2440 = vpack.c.b16 %v2104, %v2100
      %v2441 = vpack.c.b16 %v2105, %v2101
      %v2442 = vpack.c.b16 %v2106, %v2102
      %v2443 = vpack.c.b16 %v2107, %v2103
      %v2444 = vpack.c.b16 %v2112, %v2108
      %v2445 = vpack.c.b16 %v2113, %v2109
      %v2446 = vpack.c.b16 %v2114, %v2110
      %v2447 = vpack.c.b16 %v2115, %v2111
      %v2448 = vpack.c.b16 %v2120, %v2116
      %v2449 = vpack.c.b16 %v2121, %v2117
      %v2450 = vpack.c.b16 %v2122, %v2118
      %v2451 = vpack.c.b16 %v2123, %v2119
      %v2452 = vpack.c.b16 %v2128, %v2124
      %v2453 = vpack.c.b16 %v2129, %v2125
      %v2454 = vpack.c.b16 %v2130, %v2126
      %v2455 = vpack.c.b16 %v2131, %v2127
      %vm2780 = vcmask 130048
      %v2782 = vsel %vm2780, %v648, 0
      %v2785 = vsel %vm2780, %v659, 0
      %v2788 = vsel %vm2780, %v670, 0
      %v2791 = vsel %vm2780, %v681, 0
      %v2794 = vsel %vm2780, %v692, 0
      %v2797 = vsel %vm2780, %v703, 0
      %v2800 = vsel %vm2780, %v714, 0
      %v2803 = vsel %vm2780, %v725, 0
      %v2806 = vsel %vm2780, %v736, 0
      %v2809 = vsel %vm2780, %v747, 0
      %v2812 = vsel %vm2780, %v758, 0
      %v2815 = vsel %vm2780, %v769, 0
      %v2818 = vsel %vm2780, %v780, 0
      %v2821 = vsel %vm2780, %v791, 0
      %v2824 = vsel %vm2780, %v802, 0
      %v2827 = vsel %vm2780, %v813, 0
      %2829 = vmatprep.subr.bf16.mxu0 %v2161
      %2830 = vmatpush1.bf16.msra.mxu0 %v2160
      %2831 = vmatprep.subr.bf16.mxu0 %v2157
      %2832 = vmatpush1.bf16.msra.mxu0 %v2156
      %2833 = vmatprep.subr.bf16.mxu0 %v2153
      %2834 = vmatpush1.bf16.msra.mxu0 %v2152
      %2835 = vmatprep.subr.bf16.mxu0 %v2149
      %2836 = vmatpush1.bf16.msra.mxu0 %v2148
      %2837 = vmatprep.subr.bf16.mxu0 %v2145
      %2838 = vmatpush1.bf16.msra.mxu0 %v2144
      %2839 = vmatprep.subr.bf16.mxu0 %v2141
      %2840 = vmatpush1.bf16.msra.mxu0 %v2140
      %2841 = vmatprep.subr.bf16.mxu0 %v2137
      %2842 = vmatpush1.bf16.msra.mxu0 %v2136
      %2843 = vmatprep.subr.bf16.mxu0 %v2133
      %2844 = vmatpush1.bf16.msra.mxu0 %v2132
      %2845 = vmatprep.subr.bf16.mxu0 %v2193
      %2846 = vmatpush2.bf16.msra.mxu0 %v2192
      %2847 = vmatprep.subr.bf16.mxu0 %v2189
      %2848 = vmatpush2.bf16.msra.mxu0 %v2188
      %2849 = vmatprep.subr.bf16.mxu0 %v2185
      %2850 = vmatpush2.bf16.msra.mxu0 %v2184
      %2851 = vmatprep.subr.bf16.mxu0 %v2181
      %2852 = vmatpush2.bf16.msra.mxu0 %v2180
      %2853 = vmatprep.subr.bf16.mxu0 %v2177
      %2854 = vmatpush2.bf16.msra.mxu0 %v2176
      %2855 = vmatprep.subr.bf16.mxu0 %v2173
      %2856 = vmatpush2.bf16.msra.mxu0 %v2172
      %2857 = vmatprep.subr.bf16.mxu0 %v2169
      %2858 = vmatpush2.bf16.msra.mxu0 %v2168
      %2859 = vmatprep.subr.bf16.mxu0 %v2165
      %2860 = vmatpush2.bf16.msra.mxu0 %v2164
      %2861 = vmatprep.mubr.bf16.mxu0 %v639
      %2862 = vmatmul.mubr.bf16.gmra.mxu0 %v638
      %v2863 = vpop.f32.mrf.mxu0
      %v2864 = vadd.f32 %v1143, %v2863
      %v2865 = vpop.f32.mrf.mxu0
      %v2866 = vadd.f32 %v1147, %v2865
      %v2867 = vpop.f32.mrf.mxu0
      %v2868 = vadd.f32 %v1143, %v2867
      %v2869 = vpop.f32.mrf.mxu0
      %v2870 = vadd.f32 %v1147, %v2869
      %2871 = vmatprep.mubr.bf16.mxu0 %v650
      %2872 = vmatmul.mubr.bf16.gmra.mxu0 %v649
      %v2873 = vpop.f32.mrf.mxu0
      %v2874 = vadd.f32 %v1143, %v2873
      %v2875 = vpop.f32.mrf.mxu0
      %v2876 = vadd.f32 %v1147, %v2875
      %v2877 = vpop.f32.mrf.mxu0
      %v2878 = vadd.f32 %v1143, %v2877
      %v2879 = vpop.f32.mrf.mxu0
      %v2880 = vadd.f32 %v1147, %v2879
      %2881 = vmatprep.mubr.bf16.mxu0 %v661
      %2882 = vmatmul.mubr.bf16.gmra.mxu0 %v660
      %v2883 = vpop.f32.mrf.mxu0
      %v2884 = vadd.f32 %v1143, %v2883
      %v2885 = vpop.f32.mrf.mxu0
      %v2886 = vadd.f32 %v1147, %v2885
      %v2887 = vpop.f32.mrf.mxu0
      %v2888 = vadd.f32 %v1143, %v2887
      %v2889 = vpop.f32.mrf.mxu0
      %v2890 = vadd.f32 %v1147, %v2889
      %2891 = vmatprep.mubr.bf16.mxu0 %v672
      %2892 = vmatmul.mubr.bf16.gmra.mxu0 %v671
      %v2893 = vpop.f32.mrf.mxu0
      %v2894 = vadd.f32 %v1143, %v2893
      %v2895 = vpop.f32.mrf.mxu0
      %v2896 = vadd.f32 %v1147, %v2895
      %v2897 = vpop.f32.mrf.mxu0
      %v2898 = vadd.f32 %v1143, %v2897
      %v2899 = vpop.f32.mrf.mxu0
      %v2900 = vadd.f32 %v1147, %v2899
      %2901 = vmatprep.mubr.bf16.mxu0 %v683
      %2902 = vmatmul.mubr.bf16.gmra.mxu0 %v682
      %v2903 = vpop.f32.mrf.mxu0
      %v2904 = vadd.f32 %v1143, %v2903
      %v2905 = vpop.f32.mrf.mxu0
      %v2906 = vadd.f32 %v1147, %v2905
      %v2907 = vpop.f32.mrf.mxu0
      %v2908 = vadd.f32 %v1143, %v2907
      %v2909 = vpop.f32.mrf.mxu0
      %v2910 = vadd.f32 %v1147, %v2909
      %2911 = vmatprep.mubr.bf16.mxu0 %v694
      %2912 = vmatmul.mubr.bf16.gmra.mxu0 %v693
      %v2913 = vpop.f32.mrf.mxu0
      %v2914 = vadd.f32 %v1143, %v2913
      %v2915 = vpop.f32.mrf.mxu0
      %v2916 = vadd.f32 %v1147, %v2915
      %v2917 = vpop.f32.mrf.mxu0
      %v2918 = vadd.f32 %v1143, %v2917
      %v2919 = vpop.f32.mrf.mxu0
      %v2920 = vadd.f32 %v1147, %v2919
      %2921 = vmatprep.mubr.bf16.mxu0 %v705
      %2922 = vmatmul.mubr.bf16.gmra.mxu0 %v704
      %v2923 = vpop.f32.mrf.mxu0
      %v2924 = vadd.f32 %v1143, %v2923
      %v2925 = vpop.f32.mrf.mxu0
      %v2926 = vadd.f32 %v1147, %v2925
      %v2927 = vpop.f32.mrf.mxu0
      %v2928 = vadd.f32 %v1143, %v2927
      %v2929 = vpop.f32.mrf.mxu0
      %v2930 = vadd.f32 %v1147, %v2929
      %2931 = vmatprep.mubr.bf16.mxu0 %v716
      %2932 = vmatmul.mubr.bf16.gmra.mxu0 %v715
      %v2933 = vpop.f32.mrf.mxu0
      %v2934 = vadd.f32 %v1143, %v2933
      %v2935 = vpop.f32.mrf.mxu0
      %v2936 = vadd.f32 %v1147, %v2935
      %v2937 = vpop.f32.mrf.mxu0
      %v2938 = vadd.f32 %v1143, %v2937
      %v2939 = vpop.f32.mrf.mxu0
      %v2940 = vadd.f32 %v1147, %v2939
      %2941 = vmatprep.mubr.bf16.mxu0 %v727
      %2942 = vmatmul.mubr.bf16.gmra.mxu0 %v726
      %v2943 = vpop.f32.mrf.mxu0
      %v2944 = vadd.f32 %v1143, %v2943
      %v2945 = vpop.f32.mrf.mxu0
      %v2946 = vadd.f32 %v1147, %v2945
      %v2947 = vpop.f32.mrf.mxu0
      %v2948 = vadd.f32 %v1143, %v2947
      %v2949 = vpop.f32.mrf.mxu0
      %v2950 = vadd.f32 %v1147, %v2949
      %2951 = vmatprep.mubr.bf16.mxu0 %v738
      %2952 = vmatmul.mubr.bf16.gmra.mxu0 %v737
      %v2953 = vpop.f32.mrf.mxu0
      %v2954 = vadd.f32 %v1143, %v2953
      %v2955 = vpop.f32.mrf.mxu0
      %v2956 = vadd.f32 %v1147, %v2955
      %v2957 = vpop.f32.mrf.mxu0
      %v2958 = vadd.f32 %v1143, %v2957
      %v2959 = vpop.f32.mrf.mxu0
      %v2960 = vadd.f32 %v1147, %v2959
      %2961 = vmatprep.mubr.bf16.mxu0 %v749
      %2962 = vmatmul.mubr.bf16.gmra.mxu0 %v748
      %v2963 = vpop.f32.mrf.mxu0
      %v2964 = vadd.f32 %v1143, %v2963
      %v2965 = vpop.f32.mrf.mxu0
      %v2966 = vadd.f32 %v1147, %v2965
      %v2967 = vpop.f32.mrf.mxu0
      %v2968 = vadd.f32 %v1143, %v2967
      %v2969 = vpop.f32.mrf.mxu0
      %v2970 = vadd.f32 %v1147, %v2969
      %2971 = vmatprep.mubr.bf16.mxu0 %v760
      %2972 = vmatmul.mubr.bf16.gmra.mxu0 %v759
      %v2973 = vpop.f32.mrf.mxu0
      %v2974 = vadd.f32 %v1143, %v2973
      %v2975 = vpop.f32.mrf.mxu0
      %v2976 = vadd.f32 %v1147, %v2975
      %v2977 = vpop.f32.mrf.mxu0
      %v2978 = vadd.f32 %v1143, %v2977
      %v2979 = vpop.f32.mrf.mxu0
      %v2980 = vadd.f32 %v1147, %v2979
      %2981 = vmatprep.mubr.bf16.mxu0 %v771
      %2982 = vmatmul.mubr.bf16.gmra.mxu0 %v770
      %v2983 = vpop.f32.mrf.mxu0
      %v2984 = vadd.f32 %v1143, %v2983
      %v2985 = vpop.f32.mrf.mxu0
      %v2986 = vadd.f32 %v1147, %v2985
      %v2987 = vpop.f32.mrf.mxu0
      %v2988 = vadd.f32 %v1143, %v2987
      %v2989 = vpop.f32.mrf.mxu0
      %v2990 = vadd.f32 %v1147, %v2989
      %2991 = vmatprep.mubr.bf16.mxu0 %v782
      %2992 = vmatmul.mubr.bf16.gmra.mxu0 %v781
      %v2993 = vpop.f32.mrf.mxu0
      %v2994 = vadd.f32 %v1143, %v2993
      %v2995 = vpop.f32.mrf.mxu0
      %v2996 = vadd.f32 %v1147, %v2995
      %v2997 = vpop.f32.mrf.mxu0
      %v2998 = vadd.f32 %v1143, %v2997
      %v2999 = vpop.f32.mrf.mxu0
      %v3000 = vadd.f32 %v1147, %v2999
      %3001 = vmatprep.mubr.bf16.mxu0 %v793
      %3002 = vmatmul.mubr.bf16.gmra.mxu0 %v792
      %v3003 = vpop.f32.mrf.mxu0
      %v3004 = vadd.f32 %v1143, %v3003
      %v3005 = vpop.f32.mrf.mxu0
      %v3006 = vadd.f32 %v1147, %v3005
      %v3007 = vpop.f32.mrf.mxu0
      %v3008 = vadd.f32 %v1143, %v3007
      %v3009 = vpop.f32.mrf.mxu0
      %v3010 = vadd.f32 %v1147, %v3009
      %3011 = vmatprep.mubr.bf16.mxu0 %v804
      %3012 = vmatmul.mubr.bf16.gmra.mxu0 %v803
      %v3013 = vpop.f32.mrf.mxu0
      %v3014 = vadd.f32 %v1143, %v3013
      %v3015 = vpop.f32.mrf.mxu0
      %v3016 = vadd.f32 %v1147, %v3015
      %v3017 = vpop.f32.mrf.mxu0
      %v3018 = vadd.f32 %v1143, %v3017
      %v3019 = vpop.f32.mrf.mxu0
      %v3020 = vadd.f32 %v1147, %v3019
      %3021 = vdwg.mxu0
      %3022 = vmatprep.subr.bf16.mxu0 %v2225
      %3023 = vmatpush1.bf16.msra.mxu0 %v2224
      %3024 = vmatprep.subr.bf16.mxu0 %v2221
      %3025 = vmatpush1.bf16.msra.mxu0 %v2220
      %3026 = vmatprep.subr.bf16.mxu0 %v2217
      %3027 = vmatpush1.bf16.msra.mxu0 %v2216
      %3028 = vmatprep.subr.bf16.mxu0 %v2213
      %3029 = vmatpush1.bf16.msra.mxu0 %v2212
      %3030 = vmatprep.subr.bf16.mxu0 %v2209
      %3031 = vmatpush1.bf16.msra.mxu0 %v2208
      %3032 = vmatprep.subr.bf16.mxu0 %v2205
      %3033 = vmatpush1.bf16.msra.mxu0 %v2204
      %3034 = vmatprep.subr.bf16.mxu0 %v2201
      %3035 = vmatpush1.bf16.msra.mxu0 %v2200
      %3036 = vmatprep.subr.bf16.mxu0 %v2197
      %3037 = vmatpush1.bf16.msra.mxu0 %v2196
      %3038 = vmatprep.subr.bf16.mxu0 %v2257
      %3039 = vmatpush2.bf16.msra.mxu0 %v2256
      %3040 = vmatprep.subr.bf16.mxu0 %v2253
      %3041 = vmatpush2.bf16.msra.mxu0 %v2252
      %3042 = vmatprep.subr.bf16.mxu0 %v2249
      %3043 = vmatpush2.bf16.msra.mxu0 %v2248
      %3044 = vmatprep.subr.bf16.mxu0 %v2245
      %3045 = vmatpush2.bf16.msra.mxu0 %v2244
      %3046 = vmatprep.subr.bf16.mxu0 %v2241
      %3047 = vmatpush2.bf16.msra.mxu0 %v2240
      %3048 = vmatprep.subr.bf16.mxu0 %v2237
      %3049 = vmatpush2.bf16.msra.mxu0 %v2236
      %3050 = vmatprep.subr.bf16.mxu0 %v2233
      %3051 = vmatpush2.bf16.msra.mxu0 %v2232
      %3052 = vmatprep.subr.bf16.mxu0 %v2229
      %3053 = vmatpush2.bf16.msra.mxu0 %v2228
      %3054 = vmatprep.mubr.bf16.mxu0 %v641
      %3055 = vmatmul.mubr.bf16.gmra.mxu0 %v640
      %v3056 = vpop.f32.mrf.mxu0
      %v3057 = vadd.f32 %v2864, %v3056
      %v3058 = vpop.f32.mrf.mxu0
      %v3059 = vadd.f32 %v2866, %v3058
      %v3060 = vpop.f32.mrf.mxu0
      %v3061 = vadd.f32 %v2868, %v3060
      %v3062 = vpop.f32.mrf.mxu0
      %v3063 = vadd.f32 %v2870, %v3062
      %3064 = vmatprep.mubr.bf16.mxu0 %v652
      %3065 = vmatmul.mubr.bf16.gmra.mxu0 %v651
      %v3066 = vpop.f32.mrf.mxu0
      %v3067 = vadd.f32 %v2874, %v3066
      %v3068 = vpop.f32.mrf.mxu0
      %v3069 = vadd.f32 %v2876, %v3068
      %v3070 = vpop.f32.mrf.mxu0
      %v3071 = vadd.f32 %v2878, %v3070
      %v3072 = vpop.f32.mrf.mxu0
      %v3073 = vadd.f32 %v2880, %v3072
      %3074 = vmatprep.mubr.bf16.mxu0 %v663
      %3075 = vmatmul.mubr.bf16.gmra.mxu0 %v662
      %v3076 = vpop.f32.mrf.mxu0
      %v3077 = vadd.f32 %v2884, %v3076
      %v3078 = vpop.f32.mrf.mxu0
      %v3079 = vadd.f32 %v2886, %v3078
      %v3080 = vpop.f32.mrf.mxu0
      %v3081 = vadd.f32 %v2888, %v3080
      %v3082 = vpop.f32.mrf.mxu0
      %v3083 = vadd.f32 %v2890, %v3082
      %3084 = vmatprep.mubr.bf16.mxu0 %v674
      %3085 = vmatmul.mubr.bf16.gmra.mxu0 %v673
      %v3086 = vpop.f32.mrf.mxu0
      %v3087 = vadd.f32 %v2894, %v3086
      %v3088 = vpop.f32.mrf.mxu0
      %v3089 = vadd.f32 %v2896, %v3088
      %v3090 = vpop.f32.mrf.mxu0
      %v3091 = vadd.f32 %v2898, %v3090
      %v3092 = vpop.f32.mrf.mxu0
      %v3093 = vadd.f32 %v2900, %v3092
      %3094 = vmatprep.mubr.bf16.mxu0 %v685
      %3095 = vmatmul.mubr.bf16.gmra.mxu0 %v684
      %v3096 = vpop.f32.mrf.mxu0
      %v3097 = vadd.f32 %v2904, %v3096
      %v3098 = vpop.f32.mrf.mxu0
      %v3099 = vadd.f32 %v2906, %v3098
      %v3100 = vpop.f32.mrf.mxu0
      %v3101 = vadd.f32 %v2908, %v3100
      %v3102 = vpop.f32.mrf.mxu0
      %v3103 = vadd.f32 %v2910, %v3102
      %3104 = vmatprep.mubr.bf16.mxu0 %v696
      %3105 = vmatmul.mubr.bf16.gmra.mxu0 %v695
      %v3106 = vpop.f32.mrf.mxu0
      %v3107 = vadd.f32 %v2914, %v3106
      %v3108 = vpop.f32.mrf.mxu0
      %v3109 = vadd.f32 %v2916, %v3108
      %v3110 = vpop.f32.mrf.mxu0
      %v3111 = vadd.f32 %v2918, %v3110
      %v3112 = vpop.f32.mrf.mxu0
      %v3113 = vadd.f32 %v2920, %v3112
      %3114 = vmatprep.mubr.bf16.mxu0 %v707
      %3115 = vmatmul.mubr.bf16.gmra.mxu0 %v706
      %v3116 = vpop.f32.mrf.mxu0
      %v3117 = vadd.f32 %v2924, %v3116
      %v3118 = vpop.f32.mrf.mxu0
      %v3119 = vadd.f32 %v2926, %v3118
      %v3120 = vpop.f32.mrf.mxu0
      %v3121 = vadd.f32 %v2928, %v3120
      %v3122 = vpop.f32.mrf.mxu0
      %v3123 = vadd.f32 %v2930, %v3122
      %3124 = vmatprep.mubr.bf16.mxu0 %v718
      %3125 = vmatmul.mubr.bf16.gmra.mxu0 %v717
      %v3126 = vpop.f32.mrf.mxu0
      %v3127 = vadd.f32 %v2934, %v3126
      %v3128 = vpop.f32.mrf.mxu0
      %v3129 = vadd.f32 %v2936, %v3128
      %v3130 = vpop.f32.mrf.mxu0
      %v3131 = vadd.f32 %v2938, %v3130
      %v3132 = vpop.f32.mrf.mxu0
      %v3133 = vadd.f32 %v2940, %v3132
      %3134 = vmatprep.mubr.bf16.mxu0 %v729
      %3135 = vmatmul.mubr.bf16.gmra.mxu0 %v728
      %v3136 = vpop.f32.mrf.mxu0
      %v3137 = vadd.f32 %v2944, %v3136
      %v3138 = vpop.f32.mrf.mxu0
      %v3139 = vadd.f32 %v2946, %v3138
      %v3140 = vpop.f32.mrf.mxu0
      %v3141 = vadd.f32 %v2948, %v3140
      %v3142 = vpop.f32.mrf.mxu0
      %v3143 = vadd.f32 %v2950, %v3142
      %3144 = vmatprep.mubr.bf16.mxu0 %v740
      %3145 = vmatmul.mubr.bf16.gmra.mxu0 %v739
      %v3146 = vpop.f32.mrf.mxu0
      %v3147 = vadd.f32 %v2954, %v3146
      %v3148 = vpop.f32.mrf.mxu0
      %v3149 = vadd.f32 %v2956, %v3148
      %v3150 = vpop.f32.mrf.mxu0
      %v3151 = vadd.f32 %v2958, %v3150
      %v3152 = vpop.f32.mrf.mxu0
      %v3153 = vadd.f32 %v2960, %v3152
      %3154 = vmatprep.mubr.bf16.mxu0 %v751
      %3155 = vmatmul.mubr.bf16.gmra.mxu0 %v750
      %v3156 = vpop.f32.mrf.mxu0
      %v3157 = vadd.f32 %v2964, %v3156
      %v3158 = vpop.f32.mrf.mxu0
      %v3159 = vadd.f32 %v2966, %v3158
      %v3160 = vpop.f32.mrf.mxu0
      %v3161 = vadd.f32 %v2968, %v3160
      %v3162 = vpop.f32.mrf.mxu0
      %v3163 = vadd.f32 %v2970, %v3162
      %3164 = vmatprep.mubr.bf16.mxu0 %v762
      %3165 = vmatmul.mubr.bf16.gmra.mxu0 %v761
      %v3166 = vpop.f32.mrf.mxu0
      %v3167 = vadd.f32 %v2974, %v3166
      %v3168 = vpop.f32.mrf.mxu0
      %v3169 = vadd.f32 %v2976, %v3168
      %v3170 = vpop.f32.mrf.mxu0
      %v3171 = vadd.f32 %v2978, %v3170
      %v3172 = vpop.f32.mrf.mxu0
      %v3173 = vadd.f32 %v2980, %v3172
      %3174 = vmatprep.mubr.bf16.mxu0 %v773
      %3175 = vmatmul.mubr.bf16.gmra.mxu0 %v772
      %v3176 = vpop.f32.mrf.mxu0
      %v3177 = vadd.f32 %v2984, %v3176
      %v3178 = vpop.f32.mrf.mxu0
      %v3179 = vadd.f32 %v2986, %v3178
      %v3180 = vpop.f32.mrf.mxu0
      %v3181 = vadd.f32 %v2988, %v3180
      %v3182 = vpop.f32.mrf.mxu0
      %v3183 = vadd.f32 %v2990, %v3182
      %3184 = vmatprep.mubr.bf16.mxu0 %v784
      %3185 = vmatmul.mubr.bf16.gmra.mxu0 %v783
      %v3186 = vpop.f32.mrf.mxu0
      %v3187 = vadd.f32 %v2994, %v3186
      %v3188 = vpop.f32.mrf.mxu0
      %v3189 = vadd.f32 %v2996, %v3188
      %v3190 = vpop.f32.mrf.mxu0
      %v3191 = vadd.f32 %v2998, %v3190
      %v3192 = vpop.f32.mrf.mxu0
      %v3193 = vadd.f32 %v3000, %v3192
      %3194 = vmatprep.mubr.bf16.mxu0 %v795
      %3195 = vmatmul.mubr.bf16.gmra.mxu0 %v794
      %v3196 = vpop.f32.mrf.mxu0
      %v3197 = vadd.f32 %v3004, %v3196
      %v3198 = vpop.f32.mrf.mxu0
      %v3199 = vadd.f32 %v3006, %v3198
      %v3200 = vpop.f32.mrf.mxu0
      %v3201 = vadd.f32 %v3008, %v3200
      %v3202 = vpop.f32.mrf.mxu0
      %v3203 = vadd.f32 %v3010, %v3202
      %3204 = vmatprep.mubr.bf16.mxu0 %v806
      %3205 = vmatmul.mubr.bf16.gmra.mxu0 %v805
      %v3206 = vpop.f32.mrf.mxu0
      %v3207 = vadd.f32 %v3014, %v3206
      %v3208 = vpop.f32.mrf.mxu0
      %v3209 = vadd.f32 %v3016, %v3208
      %v3210 = vpop.f32.mrf.mxu0
      %v3211 = vadd.f32 %v3018, %v3210
      %v3212 = vpop.f32.mrf.mxu0
      %v3213 = vadd.f32 %v3020, %v3212
      %3214 = vdwg.mxu0
      %3215 = vmatprep.subr.bf16.mxu0 %v2289
      %3216 = vmatpush1.bf16.msra.mxu0 %v2288
      %3217 = vmatprep.subr.bf16.mxu0 %v2285
      %3218 = vmatpush1.bf16.msra.mxu0 %v2284
      %3219 = vmatprep.subr.bf16.mxu0 %v2281
      %3220 = vmatpush1.bf16.msra.mxu0 %v2280
      %3221 = vmatprep.subr.bf16.mxu0 %v2277
      %3222 = vmatpush1.bf16.msra.mxu0 %v2276
      %3223 = vmatprep.subr.bf16.mxu0 %v2273
      %3224 = vmatpush1.bf16.msra.mxu0 %v2272
      %3225 = vmatprep.subr.bf16.mxu0 %v2269
      %3226 = vmatpush1.bf16.msra.mxu0 %v2268
      %3227 = vmatprep.subr.bf16.mxu0 %v2265
      %3228 = vmatpush1.bf16.msra.mxu0 %v2264
      %3229 = vmatprep.subr.bf16.mxu0 %v2261
      %3230 = vmatpush1.bf16.msra.mxu0 %v2260
      %3231 = vmatprep.subr.bf16.mxu0 %v2321
      %3232 = vmatpush2.bf16.msra.mxu0 %v2320
      %3233 = vmatprep.subr.bf16.mxu0 %v2317
      %3234 = vmatpush2.bf16.msra.mxu0 %v2316
      %3235 = vmatprep.subr.bf16.mxu0 %v2313
      %3236 = vmatpush2.bf16.msra.mxu0 %v2312
      %3237 = vmatprep.subr.bf16.mxu0 %v2309
      %3238 = vmatpush2.bf16.msra.mxu0 %v2308
      %3239 = vmatprep.subr.bf16.mxu0 %v2305
      %3240 = vmatpush2.bf16.msra.mxu0 %v2304
      %3241 = vmatprep.subr.bf16.mxu0 %v2301
      %3242 = vmatpush2.bf16.msra.mxu0 %v2300
      %3243 = vmatprep.subr.bf16.mxu0 %v2297
      %3244 = vmatpush2.bf16.msra.mxu0 %v2296
      %3245 = vmatprep.subr.bf16.mxu0 %v2293
      %3246 = vmatpush2.bf16.msra.mxu0 %v2292
      %3247 = vmatprep.mubr.bf16.mxu0 %v643
      %3248 = vmatmul.mubr.bf16.gmra.mxu0 %v642
      %v3249 = vpop.f32.mrf.mxu0
      %v3250 = vadd.f32 %v3057, %v3249
      %v3251 = vpop.f32.mrf.mxu0
      %v3252 = vadd.f32 %v3059, %v3251
      %v3253 = vpop.f32.mrf.mxu0
      %v3254 = vadd.f32 %v3061, %v3253
      %v3255 = vpop.f32.mrf.mxu0
      %v3256 = vadd.f32 %v3063, %v3255
      %3257 = vmatprep.mubr.bf16.mxu0 %v654
      %3258 = vmatmul.mubr.bf16.gmra.mxu0 %v653
      %v3259 = vpop.f32.mrf.mxu0
      %v3260 = vadd.f32 %v3067, %v3259
      %v3261 = vpop.f32.mrf.mxu0
      %v3262 = vadd.f32 %v3069, %v3261
      %v3263 = vpop.f32.mrf.mxu0
      %v3264 = vadd.f32 %v3071, %v3263
      %v3265 = vpop.f32.mrf.mxu0
      %v3266 = vadd.f32 %v3073, %v3265
      %3267 = vmatprep.mubr.bf16.mxu0 %v665
      %3268 = vmatmul.mubr.bf16.gmra.mxu0 %v664
      %v3269 = vpop.f32.mrf.mxu0
      %v3270 = vadd.f32 %v3077, %v3269
      %v3271 = vpop.f32.mrf.mxu0
      %v3272 = vadd.f32 %v3079, %v3271
      %v3273 = vpop.f32.mrf.mxu0
      %v3274 = vadd.f32 %v3081, %v3273
      %v3275 = vpop.f32.mrf.mxu0
      %v3276 = vadd.f32 %v3083, %v3275
      %3277 = vmatprep.mubr.bf16.mxu0 %v676
      %3278 = vmatmul.mubr.bf16.gmra.mxu0 %v675
      %v3279 = vpop.f32.mrf.mxu0
      %v3280 = vadd.f32 %v3087, %v3279
      %v3281 = vpop.f32.mrf.mxu0
      %v3282 = vadd.f32 %v3089, %v3281
      %v3283 = vpop.f32.mrf.mxu0
      %v3284 = vadd.f32 %v3091, %v3283
      %v3285 = vpop.f32.mrf.mxu0
      %v3286 = vadd.f32 %v3093, %v3285
      %3287 = vmatprep.mubr.bf16.mxu0 %v687
      %3288 = vmatmul.mubr.bf16.gmra.mxu0 %v686
      %v3289 = vpop.f32.mrf.mxu0
      %v3290 = vadd.f32 %v3097, %v3289
      %v3291 = vpop.f32.mrf.mxu0
      %v3292 = vadd.f32 %v3099, %v3291
      %v3293 = vpop.f32.mrf.mxu0
      %v3294 = vadd.f32 %v3101, %v3293
      %v3295 = vpop.f32.mrf.mxu0
      %v3296 = vadd.f32 %v3103, %v3295
      %3297 = vmatprep.mubr.bf16.mxu0 %v698
      %3298 = vmatmul.mubr.bf16.gmra.mxu0 %v697
      %v3299 = vpop.f32.mrf.mxu0
      %v3300 = vadd.f32 %v3107, %v3299
      %v3301 = vpop.f32.mrf.mxu0
      %v3302 = vadd.f32 %v3109, %v3301
      %v3303 = vpop.f32.mrf.mxu0
      %v3304 = vadd.f32 %v3111, %v3303
      %v3305 = vpop.f32.mrf.mxu0
      %v3306 = vadd.f32 %v3113, %v3305
      %3307 = vmatprep.mubr.bf16.mxu0 %v709
      %3308 = vmatmul.mubr.bf16.gmra.mxu0 %v708
      %v3309 = vpop.f32.mrf.mxu0
      %v3310 = vadd.f32 %v3117, %v3309
      %v3311 = vpop.f32.mrf.mxu0
      %v3312 = vadd.f32 %v3119, %v3311
      %v3313 = vpop.f32.mrf.mxu0
      %v3314 = vadd.f32 %v3121, %v3313
      %v3315 = vpop.f32.mrf.mxu0
      %v3316 = vadd.f32 %v3123, %v3315
      %3317 = vmatprep.mubr.bf16.mxu0 %v720
      %3318 = vmatmul.mubr.bf16.gmra.mxu0 %v719
      %v3319 = vpop.f32.mrf.mxu0
      %v3320 = vadd.f32 %v3127, %v3319
      %v3321 = vpop.f32.mrf.mxu0
      %v3322 = vadd.f32 %v3129, %v3321
      %v3323 = vpop.f32.mrf.mxu0
      %v3324 = vadd.f32 %v3131, %v3323
      %v3325 = vpop.f32.mrf.mxu0
      %v3326 = vadd.f32 %v3133, %v3325
      %3327 = vmatprep.mubr.bf16.mxu0 %v731
      %3328 = vmatmul.mubr.bf16.gmra.mxu0 %v730
      %v3329 = vpop.f32.mrf.mxu0
      %v3330 = vadd.f32 %v3137, %v3329
      %v3331 = vpop.f32.mrf.mxu0
      %v3332 = vadd.f32 %v3139, %v3331
      %v3333 = vpop.f32.mrf.mxu0
      %v3334 = vadd.f32 %v3141, %v3333
      %v3335 = vpop.f32.mrf.mxu0
      %v3336 = vadd.f32 %v3143, %v3335
      %3337 = vmatprep.mubr.bf16.mxu0 %v742
      %3338 = vmatmul.mubr.bf16.gmra.mxu0 %v741
      %v3339 = vpop.f32.mrf.mxu0
      %v3340 = vadd.f32 %v3147, %v3339
      %v3341 = vpop.f32.mrf.mxu0
      %v3342 = vadd.f32 %v3149, %v3341
      %v3343 = vpop.f32.mrf.mxu0
      %v3344 = vadd.f32 %v3151, %v3343
      %v3345 = vpop.f32.mrf.mxu0
      %v3346 = vadd.f32 %v3153, %v3345
      %3347 = vmatprep.mubr.bf16.mxu0 %v753
      %3348 = vmatmul.mubr.bf16.gmra.mxu0 %v752
      %v3349 = vpop.f32.mrf.mxu0
      %v3350 = vadd.f32 %v3157, %v3349
      %v3351 = vpop.f32.mrf.mxu0
      %v3352 = vadd.f32 %v3159, %v3351
      %v3353 = vpop.f32.mrf.mxu0
      %v3354 = vadd.f32 %v3161, %v3353
      %v3355 = vpop.f32.mrf.mxu0
      %v3356 = vadd.f32 %v3163, %v3355
      %3357 = vmatprep.mubr.bf16.mxu0 %v764
      %3358 = vmatmul.mubr.bf16.gmra.mxu0 %v763
      %v3359 = vpop.f32.mrf.mxu0
      %v3360 = vadd.f32 %v3167, %v3359
      %v3361 = vpop.f32.mrf.mxu0
      %v3362 = vadd.f32 %v3169, %v3361
      %v3363 = vpop.f32.mrf.mxu0
      %v3364 = vadd.f32 %v3171, %v3363
      %v3365 = vpop.f32.mrf.mxu0
      %v3366 = vadd.f32 %v3173, %v3365
      %3367 = vmatprep.mubr.bf16.mxu0 %v775
      %3368 = vmatmul.mubr.bf16.gmra.mxu0 %v774
      %v3369 = vpop.f32.mrf.mxu0
      %v3370 = vadd.f32 %v3177, %v3369
      %v3371 = vpop.f32.mrf.mxu0
      %v3372 = vadd.f32 %v3179, %v3371
      %v3373 = vpop.f32.mrf.mxu0
      %v3374 = vadd.f32 %v3181, %v3373
      %v3375 = vpop.f32.mrf.mxu0
      %v3376 = vadd.f32 %v3183, %v3375
      %3377 = vmatprep.mubr.bf16.mxu0 %v786
      %3378 = vmatmul.mubr.bf16.gmra.mxu0 %v785
      %v3379 = vpop.f32.mrf.mxu0
      %v3380 = vadd.f32 %v3187, %v3379
      %v3381 = vpop.f32.mrf.mxu0
      %v3382 = vadd.f32 %v3189, %v3381
      %v3383 = vpop.f32.mrf.mxu0
      %v3384 = vadd.f32 %v3191, %v3383
      %v3385 = vpop.f32.mrf.mxu0
      %v3386 = vadd.f32 %v3193, %v3385
      %3387 = vmatprep.mubr.bf16.mxu0 %v797
      %3388 = vmatmul.mubr.bf16.gmra.mxu0 %v796
      %v3389 = vpop.f32.mrf.mxu0
      %v3390 = vadd.f32 %v3197, %v3389
      %v3391 = vpop.f32.mrf.mxu0
      %v3392 = vadd.f32 %v3199, %v3391
      %v3393 = vpop.f32.mrf.mxu0
      %v3394 = vadd.f32 %v3201, %v3393
      %v3395 = vpop.f32.mrf.mxu0
      %v3396 = vadd.f32 %v3203, %v3395
      %3397 = vmatprep.mubr.bf16.mxu0 %v808
      %3398 = vmatmul.mubr.bf16.gmra.mxu0 %v807
      %v3399 = vpop.f32.mrf.mxu0
      %v3400 = vadd.f32 %v3207, %v3399
      %v3401 = vpop.f32.mrf.mxu0
      %v3402 = vadd.f32 %v3209, %v3401
      %v3403 = vpop.f32.mrf.mxu0
      %v3404 = vadd.f32 %v3211, %v3403
      %v3405 = vpop.f32.mrf.mxu0
      %v3406 = vadd.f32 %v3213, %v3405
      %3407 = vdwg.mxu0
      %3408 = vmatprep.subr.bf16.mxu0 %v2353
      %3409 = vmatpush1.bf16.msra.mxu0 %v2352
      %3410 = vmatprep.subr.bf16.mxu0 %v2349
      %3411 = vmatpush1.bf16.msra.mxu0 %v2348
      %3412 = vmatprep.subr.bf16.mxu0 %v2345
      %3413 = vmatpush1.bf16.msra.mxu0 %v2344
      %3414 = vmatprep.subr.bf16.mxu0 %v2341
      %3415 = vmatpush1.bf16.msra.mxu0 %v2340
      %3416 = vmatprep.subr.bf16.mxu0 %v2337
      %3417 = vmatpush1.bf16.msra.mxu0 %v2336
      %3418 = vmatprep.subr.bf16.mxu0 %v2333
      %3419 = vmatpush1.bf16.msra.mxu0 %v2332
      %3420 = vmatprep.subr.bf16.mxu0 %v2329
      %3421 = vmatpush1.bf16.msra.mxu0 %v2328
      %3422 = vmatprep.subr.bf16.mxu0 %v2325
      %3423 = vmatpush1.bf16.msra.mxu0 %v2324
      %3424 = vmatprep.subr.bf16.mxu0 %v2385
      %3425 = vmatpush2.bf16.msra.mxu0 %v2384
      %3426 = vmatprep.subr.bf16.mxu0 %v2381
      %3427 = vmatpush2.bf16.msra.mxu0 %v2380
      %3428 = vmatprep.subr.bf16.mxu0 %v2377
      %3429 = vmatpush2.bf16.msra.mxu0 %v2376
      %3430 = vmatprep.subr.bf16.mxu0 %v2373
      %3431 = vmatpush2.bf16.msra.mxu0 %v2372
      %3432 = vmatprep.subr.bf16.mxu0 %v2369
      %3433 = vmatpush2.bf16.msra.mxu0 %v2368
      %3434 = vmatprep.subr.bf16.mxu0 %v2365
      %3435 = vmatpush2.bf16.msra.mxu0 %v2364
      %3436 = vmatprep.subr.bf16.mxu0 %v2361
      %3437 = vmatpush2.bf16.msra.mxu0 %v2360
      %3438 = vmatprep.subr.bf16.mxu0 %v2357
      %3439 = vmatpush2.bf16.msra.mxu0 %v2356
      %3440 = vmatprep.mubr.bf16.mxu0 %v645
      %3441 = vmatmul.mubr.bf16.gmra.mxu0 %v644
      %v3442 = vpop.f32.mrf.mxu0
      %v3443 = vadd.f32 %v3250, %v3442
      %v3444 = vpop.f32.mrf.mxu0
      %v3445 = vadd.f32 %v3252, %v3444
      %v3446 = vpop.f32.mrf.mxu0
      %v3447 = vadd.f32 %v3254, %v3446
      %v3448 = vpop.f32.mrf.mxu0
      %v3449 = vadd.f32 %v3256, %v3448
      %3450 = vmatprep.mubr.bf16.mxu0 %v656
      %3451 = vmatmul.mubr.bf16.gmra.mxu0 %v655
      %v3452 = vpop.f32.mrf.mxu0
      %v3453 = vadd.f32 %v3260, %v3452
      %v3454 = vpop.f32.mrf.mxu0
      %v3455 = vadd.f32 %v3262, %v3454
      %v3456 = vpop.f32.mrf.mxu0
      %v3457 = vadd.f32 %v3264, %v3456
      %v3458 = vpop.f32.mrf.mxu0
      %v3459 = vadd.f32 %v3266, %v3458
      %3460 = vmatprep.mubr.bf16.mxu0 %v667
      %3461 = vmatmul.mubr.bf16.gmra.mxu0 %v666
      %v3462 = vpop.f32.mrf.mxu0
      %v3463 = vadd.f32 %v3270, %v3462
      %v3464 = vpop.f32.mrf.mxu0
      %v3465 = vadd.f32 %v3272, %v3464
      %v3466 = vpop.f32.mrf.mxu0
      %v3467 = vadd.f32 %v3274, %v3466
      %v3468 = vpop.f32.mrf.mxu0
      %v3469 = vadd.f32 %v3276, %v3468
      %3470 = vmatprep.mubr.bf16.mxu0 %v678
      %3471 = vmatmul.mubr.bf16.gmra.mxu0 %v677
      %v3472 = vpop.f32.mrf.mxu0
      %v3473 = vadd.f32 %v3280, %v3472
      %v3474 = vpop.f32.mrf.mxu0
      %v3475 = vadd.f32 %v3282, %v3474
      %v3476 = vpop.f32.mrf.mxu0
      %v3477 = vadd.f32 %v3284, %v3476
      %v3478 = vpop.f32.mrf.mxu0
      %v3479 = vadd.f32 %v3286, %v3478
      %3480 = vmatprep.mubr.bf16.mxu0 %v689
      %3481 = vmatmul.mubr.bf16.gmra.mxu0 %v688
      %v3482 = vpop.f32.mrf.mxu0
      %v3483 = vadd.f32 %v3290, %v3482
      %v3484 = vpop.f32.mrf.mxu0
      %v3485 = vadd.f32 %v3292, %v3484
      %v3486 = vpop.f32.mrf.mxu0
      %v3487 = vadd.f32 %v3294, %v3486
      %v3488 = vpop.f32.mrf.mxu0
      %v3489 = vadd.f32 %v3296, %v3488
      %3490 = vmatprep.mubr.bf16.mxu0 %v700
      %3491 = vmatmul.mubr.bf16.gmra.mxu0 %v699
      %v3492 = vpop.f32.mrf.mxu0
      %v3493 = vadd.f32 %v3300, %v3492
      %v3494 = vpop.f32.mrf.mxu0
      %v3495 = vadd.f32 %v3302, %v3494
      %v3496 = vpop.f32.mrf.mxu0
      %v3497 = vadd.f32 %v3304, %v3496
      %v3498 = vpop.f32.mrf.mxu0
      %v3499 = vadd.f32 %v3306, %v3498
      %3500 = vmatprep.mubr.bf16.mxu0 %v711
      %3501 = vmatmul.mubr.bf16.gmra.mxu0 %v710
      %v3502 = vpop.f32.mrf.mxu0
      %v3503 = vadd.f32 %v3310, %v3502
      %v3504 = vpop.f32.mrf.mxu0
      %v3505 = vadd.f32 %v3312, %v3504
      %v3506 = vpop.f32.mrf.mxu0
      %v3507 = vadd.f32 %v3314, %v3506
      %v3508 = vpop.f32.mrf.mxu0
      %v3509 = vadd.f32 %v3316, %v3508
      %3510 = vmatprep.mubr.bf16.mxu0 %v722
      %3511 = vmatmul.mubr.bf16.gmra.mxu0 %v721
      %v3512 = vpop.f32.mrf.mxu0
      %v3513 = vadd.f32 %v3320, %v3512
      %v3514 = vpop.f32.mrf.mxu0
      %v3515 = vadd.f32 %v3322, %v3514
      %v3516 = vpop.f32.mrf.mxu0
      %v3517 = vadd.f32 %v3324, %v3516
      %v3518 = vpop.f32.mrf.mxu0
      %v3519 = vadd.f32 %v3326, %v3518
      %3520 = vmatprep.mubr.bf16.mxu0 %v733
      %3521 = vmatmul.mubr.bf16.gmra.mxu0 %v732
      %v3522 = vpop.f32.mrf.mxu0
      %v3523 = vadd.f32 %v3330, %v3522
      %v3524 = vpop.f32.mrf.mxu0
      %v3525 = vadd.f32 %v3332, %v3524
      %v3526 = vpop.f32.mrf.mxu0
      %v3527 = vadd.f32 %v3334, %v3526
      %v3528 = vpop.f32.mrf.mxu0
      %v3529 = vadd.f32 %v3336, %v3528
      %3530 = vmatprep.mubr.bf16.mxu0 %v744
      %3531 = vmatmul.mubr.bf16.gmra.mxu0 %v743
      %v3532 = vpop.f32.mrf.mxu0
      %v3533 = vadd.f32 %v3340, %v3532
      %v3534 = vpop.f32.mrf.mxu0
      %v3535 = vadd.f32 %v3342, %v3534
      %v3536 = vpop.f32.mrf.mxu0
      %v3537 = vadd.f32 %v3344, %v3536
      %v3538 = vpop.f32.mrf.mxu0
      %v3539 = vadd.f32 %v3346, %v3538
      %3540 = vmatprep.mubr.bf16.mxu0 %v755
      %3541 = vmatmul.mubr.bf16.gmra.mxu0 %v754
      %v3542 = vpop.f32.mrf.mxu0
      %v3543 = vadd.f32 %v3350, %v3542
      %v3544 = vpop.f32.mrf.mxu0
      %v3545 = vadd.f32 %v3352, %v3544
      %v3546 = vpop.f32.mrf.mxu0
      %v3547 = vadd.f32 %v3354, %v3546
      %v3548 = vpop.f32.mrf.mxu0
      %v3549 = vadd.f32 %v3356, %v3548
      %3550 = vmatprep.mubr.bf16.mxu0 %v766
      %3551 = vmatmul.mubr.bf16.gmra.mxu0 %v765
      %v3552 = vpop.f32.mrf.mxu0
      %v3553 = vadd.f32 %v3360, %v3552
      %v3554 = vpop.f32.mrf.mxu0
      %v3555 = vadd.f32 %v3362, %v3554
      %v3556 = vpop.f32.mrf.mxu0
      %v3557 = vadd.f32 %v3364, %v3556
      %v3558 = vpop.f32.mrf.mxu0
      %v3559 = vadd.f32 %v3366, %v3558
      %3560 = vmatprep.mubr.bf16.mxu0 %v777
      %3561 = vmatmul.mubr.bf16.gmra.mxu0 %v776
      %v3562 = vpop.f32.mrf.mxu0
      %v3563 = vadd.f32 %v3370, %v3562
      %v3564 = vpop.f32.mrf.mxu0
      %v3565 = vadd.f32 %v3372, %v3564
      %v3566 = vpop.f32.mrf.mxu0
      %v3567 = vadd.f32 %v3374, %v3566
      %v3568 = vpop.f32.mrf.mxu0
      %v3569 = vadd.f32 %v3376, %v3568
      %3570 = vmatprep.mubr.bf16.mxu0 %v788
      %3571 = vmatmul.mubr.bf16.gmra.mxu0 %v787
      %v3572 = vpop.f32.mrf.mxu0
      %v3573 = vadd.f32 %v3380, %v3572
      %v3574 = vpop.f32.mrf.mxu0
      %v3575 = vadd.f32 %v3382, %v3574
      %v3576 = vpop.f32.mrf.mxu0
      %v3577 = vadd.f32 %v3384, %v3576
      %v3578 = vpop.f32.mrf.mxu0
      %v3579 = vadd.f32 %v3386, %v3578
      %3580 = vmatprep.mubr.bf16.mxu0 %v799
      %3581 = vmatmul.mubr.bf16.gmra.mxu0 %v798
      %v3582 = vpop.f32.mrf.mxu0
      %v3583 = vadd.f32 %v3390, %v3582
      %v3584 = vpop.f32.mrf.mxu0
      %v3585 = vadd.f32 %v3392, %v3584
      %v3586 = vpop.f32.mrf.mxu0
      %v3587 = vadd.f32 %v3394, %v3586
      %v3588 = vpop.f32.mrf.mxu0
      %v3589 = vadd.f32 %v3396, %v3588
      %3590 = vmatprep.mubr.bf16.mxu0 %v810
      %3591 = vmatmul.mubr.bf16.gmra.mxu0 %v809
      %v3592 = vpop.f32.mrf.mxu0
      %v3593 = vadd.f32 %v3400, %v3592
      %v3594 = vpop.f32.mrf.mxu0
      %v3595 = vadd.f32 %v3402, %v3594
      %v3596 = vpop.f32.mrf.mxu0
      %v3597 = vadd.f32 %v3404, %v3596
      %v3598 = vpop.f32.mrf.mxu0
      %v3599 = vadd.f32 %v3406, %v3598
      %3600 = vdwg.mxu0
      %3601 = vmatprep.subr.bf16.mxu0 %v2417
      %3602 = vmatpush1.bf16.msra.mxu0 %v2416
      %3603 = vmatprep.subr.bf16.mxu0 %v2413
      %3604 = vmatpush1.bf16.msra.mxu0 %v2412
      %3605 = vmatprep.subr.bf16.mxu0 %v2409
      %3606 = vmatpush1.bf16.msra.mxu0 %v2408
      %3607 = vmatprep.subr.bf16.mxu0 %v2405
      %3608 = vmatpush1.bf16.msra.mxu0 %v2404
      %3609 = vmatprep.subr.bf16.mxu0 %v2401
      %3610 = vmatpush1.bf16.msra.mxu0 %v2400
      %3611 = vmatprep.subr.bf16.mxu0 %v2397
      %3612 = vmatpush1.bf16.msra.mxu0 %v2396
      %3613 = vmatprep.subr.bf16.mxu0 %v2393
      %3614 = vmatpush1.bf16.msra.mxu0 %v2392
      %3615 = vmatprep.subr.bf16.mxu0 %v2389
      %3616 = vmatpush1.bf16.msra.mxu0 %v2388
      %3617 = vmatprep.subr.bf16.mxu0 %v2449
      %3618 = vmatpush2.bf16.msra.mxu0 %v2448
      %3619 = vmatprep.subr.bf16.mxu0 %v2445
      %3620 = vmatpush2.bf16.msra.mxu0 %v2444
      %3621 = vmatprep.subr.bf16.mxu0 %v2441
      %3622 = vmatpush2.bf16.msra.mxu0 %v2440
      %3623 = vmatprep.subr.bf16.mxu0 %v2437
      %3624 = vmatpush2.bf16.msra.mxu0 %v2436
      %3625 = vmatprep.subr.bf16.mxu0 %v2433
      %3626 = vmatpush2.bf16.msra.mxu0 %v2432
      %3627 = vmatprep.subr.bf16.mxu0 %v2429
      %3628 = vmatpush2.bf16.msra.mxu0 %v2428
      %3629 = vmatprep.subr.bf16.mxu0 %v2425
      %3630 = vmatpush2.bf16.msra.mxu0 %v2424
      %3631 = vmatprep.subr.bf16.mxu0 %v2421
      %3632 = vmatpush2.bf16.msra.mxu0 %v2420
      %3633 = vmatprep.mubr.bf16.mxu0 %v647
      %3634 = vmatmul.mubr.bf16.gmra.mxu0 %v646
      %v3635 = vpop.f32.mrf.mxu0
      %v3636 = vadd.f32 %v3443, %v3635
      %v3637 = vpop.f32.mrf.mxu0
      %v3638 = vadd.f32 %v3445, %v3637
      %v3639 = vpop.f32.mrf.mxu0
      %v3640 = vadd.f32 %v3447, %v3639
      %v3641 = vpop.f32.mrf.mxu0
      %v3642 = vadd.f32 %v3449, %v3641
      %3643 = vmatprep.mubr.bf16.mxu0 %v658
      %3644 = vmatmul.mubr.bf16.gmra.mxu0 %v657
      %v3645 = vpop.f32.mrf.mxu0
      %v3646 = vadd.f32 %v3453, %v3645
      %v3647 = vpop.f32.mrf.mxu0
      %v3648 = vadd.f32 %v3455, %v3647
      %v3649 = vpop.f32.mrf.mxu0
      %v3650 = vadd.f32 %v3457, %v3649
      %v3651 = vpop.f32.mrf.mxu0
      %v3652 = vadd.f32 %v3459, %v3651
      %3653 = vmatprep.mubr.bf16.mxu0 %v669
      %3654 = vmatmul.mubr.bf16.gmra.mxu0 %v668
      %v3655 = vpop.f32.mrf.mxu0
      %v3656 = vadd.f32 %v3463, %v3655
      %v3657 = vpop.f32.mrf.mxu0
      %v3658 = vadd.f32 %v3465, %v3657
      %v3659 = vpop.f32.mrf.mxu0
      %v3660 = vadd.f32 %v3467, %v3659
      %v3661 = vpop.f32.mrf.mxu0
      %v3662 = vadd.f32 %v3469, %v3661
      %3663 = vmatprep.mubr.bf16.mxu0 %v680
      %3664 = vmatmul.mubr.bf16.gmra.mxu0 %v679
      %v3665 = vpop.f32.mrf.mxu0
      %v3666 = vadd.f32 %v3473, %v3665
      %v3667 = vpop.f32.mrf.mxu0
      %v3668 = vadd.f32 %v3475, %v3667
      %v3669 = vpop.f32.mrf.mxu0
      %v3670 = vadd.f32 %v3477, %v3669
      %v3671 = vpop.f32.mrf.mxu0
      %v3672 = vadd.f32 %v3479, %v3671
      %3673 = vmatprep.mubr.bf16.mxu0 %v691
      %3674 = vmatmul.mubr.bf16.gmra.mxu0 %v690
      %v3675 = vpop.f32.mrf.mxu0
      %v3676 = vadd.f32 %v3483, %v3675
      %v3677 = vpop.f32.mrf.mxu0
      %v3678 = vadd.f32 %v3485, %v3677
      %v3679 = vpop.f32.mrf.mxu0
      %v3680 = vadd.f32 %v3487, %v3679
      %v3681 = vpop.f32.mrf.mxu0
      %v3682 = vadd.f32 %v3489, %v3681
      %3683 = vmatprep.mubr.bf16.mxu0 %v702
      %3684 = vmatmul.mubr.bf16.gmra.mxu0 %v701
      %v3685 = vpop.f32.mrf.mxu0
      %v3686 = vadd.f32 %v3493, %v3685
      %v3687 = vpop.f32.mrf.mxu0
      %v3688 = vadd.f32 %v3495, %v3687
      %v3689 = vpop.f32.mrf.mxu0
      %v3690 = vadd.f32 %v3497, %v3689
      %v3691 = vpop.f32.mrf.mxu0
      %v3692 = vadd.f32 %v3499, %v3691
      %3693 = vmatprep.mubr.bf16.mxu0 %v713
      %3694 = vmatmul.mubr.bf16.gmra.mxu0 %v712
      %v3695 = vpop.f32.mrf.mxu0
      %v3696 = vadd.f32 %v3503, %v3695
      %v3697 = vpop.f32.mrf.mxu0
      %v3698 = vadd.f32 %v3505, %v3697
      %v3699 = vpop.f32.mrf.mxu0
      %v3700 = vadd.f32 %v3507, %v3699
      %v3701 = vpop.f32.mrf.mxu0
      %v3702 = vadd.f32 %v3509, %v3701
      %3703 = vmatprep.mubr.bf16.mxu0 %v724
      %3704 = vmatmul.mubr.bf16.gmra.mxu0 %v723
      %v3705 = vpop.f32.mrf.mxu0
      %v3706 = vadd.f32 %v3513, %v3705
      %v3707 = vpop.f32.mrf.mxu0
      %v3708 = vadd.f32 %v3515, %v3707
      %v3709 = vpop.f32.mrf.mxu0
      %v3710 = vadd.f32 %v3517, %v3709
      %v3711 = vpop.f32.mrf.mxu0
      %v3712 = vadd.f32 %v3519, %v3711
      %3713 = vmatprep.mubr.bf16.mxu0 %v735
      %3714 = vmatmul.mubr.bf16.gmra.mxu0 %v734
      %v3715 = vpop.f32.mrf.mxu0
      %v3716 = vadd.f32 %v3523, %v3715
      %v3717 = vpop.f32.mrf.mxu0
      %v3718 = vadd.f32 %v3525, %v3717
      %v3719 = vpop.f32.mrf.mxu0
      %v3720 = vadd.f32 %v3527, %v3719
      %v3721 = vpop.f32.mrf.mxu0
      %v3722 = vadd.f32 %v3529, %v3721
      %3723 = vmatprep.mubr.bf16.mxu0 %v746
      %3724 = vmatmul.mubr.bf16.gmra.mxu0 %v745
      %v3725 = vpop.f32.mrf.mxu0
      %v3726 = vadd.f32 %v3533, %v3725
      %v3727 = vpop.f32.mrf.mxu0
      %v3728 = vadd.f32 %v3535, %v3727
      %v3729 = vpop.f32.mrf.mxu0
      %v3730 = vadd.f32 %v3537, %v3729
      %v3731 = vpop.f32.mrf.mxu0
      %v3732 = vadd.f32 %v3539, %v3731
      %3733 = vmatprep.mubr.bf16.mxu0 %v757
      %3734 = vmatmul.mubr.bf16.gmra.mxu0 %v756
      %v3735 = vpop.f32.mrf.mxu0
      %v3736 = vadd.f32 %v3543, %v3735
      %v3737 = vpop.f32.mrf.mxu0
      %v3738 = vadd.f32 %v3545, %v3737
      %v3739 = vpop.f32.mrf.mxu0
      %v3740 = vadd.f32 %v3547, %v3739
      %v3741 = vpop.f32.mrf.mxu0
      %v3742 = vadd.f32 %v3549, %v3741
      %3743 = vmatprep.mubr.bf16.mxu0 %v768
      %3744 = vmatmul.mubr.bf16.gmra.mxu0 %v767
      %v3745 = vpop.f32.mrf.mxu0
      %v3746 = vadd.f32 %v3553, %v3745
      %v3747 = vpop.f32.mrf.mxu0
      %v3748 = vadd.f32 %v3555, %v3747
      %v3749 = vpop.f32.mrf.mxu0
      %v3750 = vadd.f32 %v3557, %v3749
      %v3751 = vpop.f32.mrf.mxu0
      %v3752 = vadd.f32 %v3559, %v3751
      %3753 = vmatprep.mubr.bf16.mxu0 %v779
      %3754 = vmatmul.mubr.bf16.gmra.mxu0 %v778
      %v3755 = vpop.f32.mrf.mxu0
      %v3756 = vadd.f32 %v3563, %v3755
      %v3757 = vpop.f32.mrf.mxu0
      %v3758 = vadd.f32 %v3565, %v3757
      %v3759 = vpop.f32.mrf.mxu0
      %v3760 = vadd.f32 %v3567, %v3759
      %v3761 = vpop.f32.mrf.mxu0
      %v3762 = vadd.f32 %v3569, %v3761
      %3763 = vmatprep.mubr.bf16.mxu0 %v790
      %3764 = vmatmul.mubr.bf16.gmra.mxu0 %v789
      %v3765 = vpop.f32.mrf.mxu0
      %v3766 = vadd.f32 %v3573, %v3765
      %v3767 = vpop.f32.mrf.mxu0
      %v3768 = vadd.f32 %v3575, %v3767
      %v3769 = vpop.f32.mrf.mxu0
      %v3770 = vadd.f32 %v3577, %v3769
      %v3771 = vpop.f32.mrf.mxu0
      %v3772 = vadd.f32 %v3579, %v3771
      %3773 = vmatprep.mubr.bf16.mxu0 %v801
      %3774 = vmatmul.mubr.bf16.gmra.mxu0 %v800
      %v3775 = vpop.f32.mrf.mxu0
      %v3776 = vadd.f32 %v3583, %v3775
      %v3777 = vpop.f32.mrf.mxu0
      %v3778 = vadd.f32 %v3585, %v3777
      %v3779 = vpop.f32.mrf.mxu0
      %v3780 = vadd.f32 %v3587, %v3779
      %v3781 = vpop.f32.mrf.mxu0
      %v3782 = vadd.f32 %v3589, %v3781
      %3783 = vmatprep.mubr.bf16.mxu0 %v812
      %3784 = vmatmul.mubr.bf16.gmra.mxu0 %v811
      %v3785 = vpop.f32.mrf.mxu0
      %v3786 = vadd.f32 %v3593, %v3785
      %v3787 = vpop.f32.mrf.mxu0
      %v3788 = vadd.f32 %v3595, %v3787
      %v3789 = vpop.f32.mrf.mxu0
      %v3790 = vadd.f32 %v3597, %v3789
      %v3791 = vpop.f32.mrf.mxu0
      %v3792 = vadd.f32 %v3599, %v3791
      %3793 = vdwg.mxu0
      %3794 = vmatprep.subr.bf16.mxu0 0
      %3795 = vmatpush1.bf16.msra.mxu0 0
      %3796 = vmatprep.subr.bf16.mxu0 0
      %3797 = vmatpush1.bf16.msra.mxu0 0
      %3798 = vmatprep.subr.bf16.mxu0 0
      %3799 = vmatpush1.bf16.msra.mxu0 0
      %3800 = vmatprep.subr.bf16.mxu0 0
      %3801 = vmatpush1.bf16.msra.mxu0 0
      %3802 = vmatprep.subr.bf16.mxu0 0
      %3803 = vmatpush1.bf16.msra.mxu0 0
      %3804 = vmatprep.subr.bf16.mxu0 0
      %3805 = vmatpush1.bf16.msra.mxu0 0
      %3806 = vmatprep.subr.bf16.mxu0 0
      %3807 = vmatpush1.bf16.msra.mxu0 0
      %3808 = vmatprep.subr.bf16.mxu0 %v2453
      %3809 = vmatpush1.bf16.msra.mxu0 %v2452
      %3810 = vmatprep.subr.bf16.mxu0 0
      %3811 = vmatpush2.bf16.msra.mxu0 0
      %3812 = vmatprep.subr.bf16.mxu0 0
      %3813 = vmatpush2.bf16.msra.mxu0 0
      %3814 = vmatprep.subr.bf16.mxu0 0
      %3815 = vmatpush2.bf16.msra.mxu0 0
      %3816 = vmatprep.subr.bf16.mxu0 0
      %3817 = vmatpush2.bf16.msra.mxu0 0
      %3818 = vmatprep.subr.bf16.mxu0 0
      %3819 = vmatpush2.bf16.msra.mxu0 0
      %3820 = vmatprep.subr.bf16.mxu0 0
      %3821 = vmatpush2.bf16.msra.mxu0 0
      %3822 = vmatprep.subr.bf16.mxu0 0
      %3823 = vmatpush2.bf16.msra.mxu0 0
      %3824 = vmatprep.subr.bf16.mxu0 0
      %3825 = vmatpush2.bf16.msra.mxu0 0
      %3826 = vmatprep.mubr.bf16.mxu0 0
      %3827 = vmatmul.mubr.bf16.gmra.mxu0 %v2782
      %v3828 = vpop.f32.mrf.mxu0
      %v3829 = vadd.f32 %v3636, %v3828
      %v3830 = vpop.f32.mrf.mxu0
      %v3831 = vadd.f32 %v3638, %v3830
      %v3832 = vpop.f32.mrf.mxu0
      %v3833 = vadd.f32 %v3640, %v3832
      %v3834 = vpop.f32.mrf.mxu0
      %v3835 = vadd.f32 %v3642, %v3834
      %3836 = vmatprep.mubr.bf16.mxu0 0
      %3837 = vmatmul.mubr.bf16.gmra.mxu0 %v2785
      %v3838 = vpop.f32.mrf.mxu0
      %v3839 = vadd.f32 %v3646, %v3838
      %v3840 = vpop.f32.mrf.mxu0
      %v3841 = vadd.f32 %v3648, %v3840
      %v3842 = vpop.f32.mrf.mxu0
      %v3843 = vadd.f32 %v3650, %v3842
      %v3844 = vpop.f32.mrf.mxu0
      %v3845 = vadd.f32 %v3652, %v3844
      %3846 = vmatprep.mubr.bf16.mxu0 0
      %3847 = vmatmul.mubr.bf16.gmra.mxu0 %v2788
      %v3848 = vpop.f32.mrf.mxu0
      %v3849 = vadd.f32 %v3656, %v3848
      %v3850 = vpop.f32.mrf.mxu0
      %v3851 = vadd.f32 %v3658, %v3850
      %v3852 = vpop.f32.mrf.mxu0
      %v3853 = vadd.f32 %v3660, %v3852
      %v3854 = vpop.f32.mrf.mxu0
      %v3855 = vadd.f32 %v3662, %v3854
      %3856 = vmatprep.mubr.bf16.mxu0 0
      %3857 = vmatmul.mubr.bf16.gmra.mxu0 %v2791
      %v3858 = vpop.f32.mrf.mxu0
      %v3859 = vadd.f32 %v3666, %v3858
      %v3860 = vpop.f32.mrf.mxu0
      %v3861 = vadd.f32 %v3668, %v3860
      %v3862 = vpop.f32.mrf.mxu0
      %v3863 = vadd.f32 %v3670, %v3862
      %v3864 = vpop.f32.mrf.mxu0
      %v3865 = vadd.f32 %v3672, %v3864
      %3866 = vmatprep.mubr.bf16.mxu0 0
      %3867 = vmatmul.mubr.bf16.gmra.mxu0 %v2794
      %v3868 = vpop.f32.mrf.mxu0
      %v3869 = vadd.f32 %v3676, %v3868
      %v3870 = vpop.f32.mrf.mxu0
      %v3871 = vadd.f32 %v3678, %v3870
      %v3872 = vpop.f32.mrf.mxu0
      %v3873 = vadd.f32 %v3680, %v3872
      %v3874 = vpop.f32.mrf.mxu0
      %v3875 = vadd.f32 %v3682, %v3874
      %3876 = vmatprep.mubr.bf16.mxu0 0
      %3877 = vmatmul.mubr.bf16.gmra.mxu0 %v2797
      %v3878 = vpop.f32.mrf.mxu0
      %v3879 = vadd.f32 %v3686, %v3878
      %v3880 = vpop.f32.mrf.mxu0
      %v3881 = vadd.f32 %v3688, %v3880
      %v3882 = vpop.f32.mrf.mxu0
      %v3883 = vadd.f32 %v3690, %v3882
      %v3884 = vpop.f32.mrf.mxu0
      %v3885 = vadd.f32 %v3692, %v3884
      %3886 = vmatprep.mubr.bf16.mxu0 0
      %3887 = vmatmul.mubr.bf16.gmra.mxu0 %v2800
      %v3888 = vpop.f32.mrf.mxu0
      %v3889 = vadd.f32 %v3696, %v3888
      %v3890 = vpop.f32.mrf.mxu0
      %v3891 = vadd.f32 %v3698, %v3890
      %v3892 = vpop.f32.mrf.mxu0
      %v3893 = vadd.f32 %v3700, %v3892
      %v3894 = vpop.f32.mrf.mxu0
      %v3895 = vadd.f32 %v3702, %v3894
      %3896 = vmatprep.mubr.bf16.mxu0 0
      %3897 = vmatmul.mubr.bf16.gmra.mxu0 %v2803
      %v3898 = vpop.f32.mrf.mxu0
      %v3899 = vadd.f32 %v3706, %v3898
      %v3900 = vpop.f32.mrf.mxu0
      %v3901 = vadd.f32 %v3708, %v3900
      %v3902 = vpop.f32.mrf.mxu0
      %v3903 = vadd.f32 %v3710, %v3902
      %v3904 = vpop.f32.mrf.mxu0
      %v3905 = vadd.f32 %v3712, %v3904
      %3906 = vmatprep.mubr.bf16.mxu0 0
      %3907 = vmatmul.mubr.bf16.gmra.mxu0 %v2806
      %v3908 = vpop.f32.mrf.mxu0
      %v3909 = vadd.f32 %v3716, %v3908
      %v3910 = vpop.f32.mrf.mxu0
      %v3911 = vadd.f32 %v3718, %v3910
      %v3912 = vpop.f32.mrf.mxu0
      %v3913 = vadd.f32 %v3720, %v3912
      %v3914 = vpop.f32.mrf.mxu0
      %v3915 = vadd.f32 %v3722, %v3914
      %3916 = vmatprep.mubr.bf16.mxu0 0
      %3917 = vmatmul.mubr.bf16.gmra.mxu0 %v2809
      %v3918 = vpop.f32.mrf.mxu0
      %v3919 = vadd.f32 %v3726, %v3918
      %v3920 = vpop.f32.mrf.mxu0
      %v3921 = vadd.f32 %v3728, %v3920
      %v3922 = vpop.f32.mrf.mxu0
      %v3923 = vadd.f32 %v3730, %v3922
      %v3924 = vpop.f32.mrf.mxu0
      %v3925 = vadd.f32 %v3732, %v3924
      %3926 = vmatprep.mubr.bf16.mxu0 0
      %3927 = vmatmul.mubr.bf16.gmra.mxu0 %v2812
      %v3928 = vpop.f32.mrf.mxu0
      %v3929 = vadd.f32 %v3736, %v3928
      %v3930 = vpop.f32.mrf.mxu0
      %v3931 = vadd.f32 %v3738, %v3930
      %v3932 = vpop.f32.mrf.mxu0
      %v3933 = vadd.f32 %v3740, %v3932
      %v3934 = vpop.f32.mrf.mxu0
      %v3935 = vadd.f32 %v3742, %v3934
      %3936 = vmatprep.mubr.bf16.mxu0 0
      %3937 = vmatmul.mubr.bf16.gmra.mxu0 %v2815
      %v3938 = vpop.f32.mrf.mxu0
      %v3939 = vadd.f32 %v3746, %v3938
      %v3940 = vpop.f32.mrf.mxu0
      %v3941 = vadd.f32 %v3748, %v3940
      %v3942 = vpop.f32.mrf.mxu0
      %v3943 = vadd.f32 %v3750, %v3942
      %v3944 = vpop.f32.mrf.mxu0
      %v3945 = vadd.f32 %v3752, %v3944
      %3946 = vmatprep.mubr.bf16.mxu0 0
      %3947 = vmatmul.mubr.bf16.gmra.mxu0 %v2818
      %v3948 = vpop.f32.mrf.mxu0
      %v3949 = vadd.f32 %v3756, %v3948
      %v3950 = vpop.f32.mrf.mxu0
      %v3951 = vadd.f32 %v3758, %v3950
      %v3952 = vpop.f32.mrf.mxu0
      %v3953 = vadd.f32 %v3760, %v3952
      %v3954 = vpop.f32.mrf.mxu0
      %v3955 = vadd.f32 %v3762, %v3954
      %3956 = vmatprep.mubr.bf16.mxu0 0
      %3957 = vmatmul.mubr.bf16.gmra.mxu0 %v2821
      %v3958 = vpop.f32.mrf.mxu0
      %v3959 = vadd.f32 %v3766, %v3958
      %v3960 = vpop.f32.mrf.mxu0
      %v3961 = vadd.f32 %v3768, %v3960
      %v3962 = vpop.f32.mrf.mxu0
      %v3963 = vadd.f32 %v3770, %v3962
      %v3964 = vpop.f32.mrf.mxu0
      %v3965 = vadd.f32 %v3772, %v3964
      %3966 = vmatprep.mubr.bf16.mxu0 0
      %3967 = vmatmul.mubr.bf16.gmra.mxu0 %v2824
      %v3968 = vpop.f32.mrf.mxu0
      %v3969 = vadd.f32 %v3776, %v3968
      %v3970 = vpop.f32.mrf.mxu0
      %v3971 = vadd.f32 %v3778, %v3970
      %v3972 = vpop.f32.mrf.mxu0
      %v3973 = vadd.f32 %v3780, %v3972
      %v3974 = vpop.f32.mrf.mxu0
      %v3975 = vadd.f32 %v3782, %v3974
      %3976 = vmatprep.mubr.bf16.mxu0 0
      %3977 = vmatmul.mubr.bf16.gmra.mxu0 %v2827
      %v3978 = vpop.f32.mrf.mxu0
      %v3979 = vadd.f32 %v3786, %v3978
      %v3980 = vpop.f32.mrf.mxu0
      %v3981 = vadd.f32 %v3788, %v3980
      %v3982 = vpop.f32.mrf.mxu0
      %v3983 = vadd.f32 %v3790, %v3982
      %v3984 = vpop.f32.mrf.mxu0
      %v3985 = vadd.f32 %v3792, %v3984
      %3986 = vdwg.mxu0
      %3987 = vmatprep.subr.bf16.mxu0 %v2163
      %3988 = vmatpush1.bf16.msra.mxu0 %v2162
      %3989 = vmatprep.subr.bf16.mxu0 %v2159
      %3990 = vmatpush1.bf16.msra.mxu0 %v2158
      %3991 = vmatprep.subr.bf16.mxu0 %v2155
      %3992 = vmatpush1.bf16.msra.mxu0 %v2154
      %3993 = vmatprep.subr.bf16.mxu0 %v2151
      %3994 = vmatpush1.bf16.msra.mxu0 %v2150
      %3995 = vmatprep.subr.bf16.mxu0 %v2147
      %3996 = vmatpush1.bf16.msra.mxu0 %v2146
      %3997 = vmatprep.subr.bf16.mxu0 %v2143
      %3998 = vmatpush1.bf16.msra.mxu0 %v2142
      %3999 = vmatprep.subr.bf16.mxu0 %v2139
      %4000 = vmatpush1.bf16.msra.mxu0 %v2138
      %4001 = vmatprep.subr.bf16.mxu0 %v2135
      %4002 = vmatpush1.bf16.msra.mxu0 %v2134
      %4003 = vmatprep.subr.bf16.mxu0 %v2195
      %4004 = vmatpush2.bf16.msra.mxu0 %v2194
      %4005 = vmatprep.subr.bf16.mxu0 %v2191
      %4006 = vmatpush2.bf16.msra.mxu0 %v2190
      %4007 = vmatprep.subr.bf16.mxu0 %v2187
      %4008 = vmatpush2.bf16.msra.mxu0 %v2186
      %4009 = vmatprep.subr.bf16.mxu0 %v2183
      %4010 = vmatpush2.bf16.msra.mxu0 %v2182
      %4011 = vmatprep.subr.bf16.mxu0 %v2179
      %4012 = vmatpush2.bf16.msra.mxu0 %v2178
      %4013 = vmatprep.subr.bf16.mxu0 %v2175
      %4014 = vmatpush2.bf16.msra.mxu0 %v2174
      %4015 = vmatprep.subr.bf16.mxu0 %v2171
      %4016 = vmatpush2.bf16.msra.mxu0 %v2170
      %4017 = vmatprep.subr.bf16.mxu0 %v2167
      %4018 = vmatpush2.bf16.msra.mxu0 %v2166
      %4019 = vmatprep.mubr.bf16.mxu0 %v639
      %4020 = vmatmul.mubr.bf16.gmra.mxu0 %v638
      %v4021 = vpop.f32.mrf.mxu0
      %v4022 = vadd.f32 %v1151, %v4021
      %v4023 = vpop.f32.mrf.mxu0
      %v4024 = vadd.f32 %v1155, %v4023
      %v4025 = vpop.f32.mrf.mxu0
      %v4026 = vadd.f32 %v1151, %v4025
      %v4027 = vpop.f32.mrf.mxu0
      %v4028 = vadd.f32 %v1155, %v4027
      %4029 = vmatprep.mubr.bf16.mxu0 %v650
      %4030 = vmatmul.mubr.bf16.gmra.mxu0 %v649
      %v4031 = vpop.f32.mrf.mxu0
      %v4032 = vadd.f32 %v1151, %v4031
      %v4033 = vpop.f32.mrf.mxu0
      %v4034 = vadd.f32 %v1155, %v4033
      %v4035 = vpop.f32.mrf.mxu0
      %v4036 = vadd.f32 %v1151, %v4035
      %v4037 = vpop.f32.mrf.mxu0
      %v4038 = vadd.f32 %v1155, %v4037
      %4039 = vmatprep.mubr.bf16.mxu0 %v661
      %4040 = vmatmul.mubr.bf16.gmra.mxu0 %v660
      %v4041 = vpop.f32.mrf.mxu0
      %v4042 = vadd.f32 %v1151, %v4041
      %v4043 = vpop.f32.mrf.mxu0
      %v4044 = vadd.f32 %v1155, %v4043
      %v4045 = vpop.f32.mrf.mxu0
      %v4046 = vadd.f32 %v1151, %v4045
      %v4047 = vpop.f32.mrf.mxu0
      %v4048 = vadd.f32 %v1155, %v4047
      %4049 = vmatprep.mubr.bf16.mxu0 %v672
      %4050 = vmatmul.mubr.bf16.gmra.mxu0 %v671
      %v4051 = vpop.f32.mrf.mxu0
      %v4052 = vadd.f32 %v1151, %v4051
      %v4053 = vpop.f32.mrf.mxu0
      %v4054 = vadd.f32 %v1155, %v4053
      %v4055 = vpop.f32.mrf.mxu0
      %v4056 = vadd.f32 %v1151, %v4055
      %v4057 = vpop.f32.mrf.mxu0
      %v4058 = vadd.f32 %v1155, %v4057
      %4059 = vmatprep.mubr.bf16.mxu0 %v683
      %4060 = vmatmul.mubr.bf16.gmra.mxu0 %v682
      %v4061 = vpop.f32.mrf.mxu0
      %v4062 = vadd.f32 %v1151, %v4061
      %v4063 = vpop.f32.mrf.mxu0
      %v4064 = vadd.f32 %v1155, %v4063
      %v4065 = vpop.f32.mrf.mxu0
      %v4066 = vadd.f32 %v1151, %v4065
      %v4067 = vpop.f32.mrf.mxu0
      %v4068 = vadd.f32 %v1155, %v4067
      %4069 = vmatprep.mubr.bf16.mxu0 %v694
      %4070 = vmatmul.mubr.bf16.gmra.mxu0 %v693
      %v4071 = vpop.f32.mrf.mxu0
      %v4072 = vadd.f32 %v1151, %v4071
      %v4073 = vpop.f32.mrf.mxu0
      %v4074 = vadd.f32 %v1155, %v4073
      %v4075 = vpop.f32.mrf.mxu0
      %v4076 = vadd.f32 %v1151, %v4075
      %v4077 = vpop.f32.mrf.mxu0
      %v4078 = vadd.f32 %v1155, %v4077
      %4079 = vmatprep.mubr.bf16.mxu0 %v705
      %4080 = vmatmul.mubr.bf16.gmra.mxu0 %v704
      %v4081 = vpop.f32.mrf.mxu0
      %v4082 = vadd.f32 %v1151, %v4081
      %v4083 = vpop.f32.mrf.mxu0
      %v4084 = vadd.f32 %v1155, %v4083
      %v4085 = vpop.f32.mrf.mxu0
      %v4086 = vadd.f32 %v1151, %v4085
      %v4087 = vpop.f32.mrf.mxu0
      %v4088 = vadd.f32 %v1155, %v4087
      %4089 = vmatprep.mubr.bf16.mxu0 %v716
      %4090 = vmatmul.mubr.bf16.gmra.mxu0 %v715
      %v4091 = vpop.f32.mrf.mxu0
      %v4092 = vadd.f32 %v1151, %v4091
      %v4093 = vpop.f32.mrf.mxu0
      %v4094 = vadd.f32 %v1155, %v4093
      %v4095 = vpop.f32.mrf.mxu0
      %v4096 = vadd.f32 %v1151, %v4095
      %v4097 = vpop.f32.mrf.mxu0
      %v4098 = vadd.f32 %v1155, %v4097
      %4099 = vmatprep.mubr.bf16.mxu0 %v727
      %4100 = vmatmul.mubr.bf16.gmra.mxu0 %v726
      %v4101 = vpop.f32.mrf.mxu0
      %v4102 = vadd.f32 %v1151, %v4101
      %v4103 = vpop.f32.mrf.mxu0
      %v4104 = vadd.f32 %v1155, %v4103
      %v4105 = vpop.f32.mrf.mxu0
      %v4106 = vadd.f32 %v1151, %v4105
      %v4107 = vpop.f32.mrf.mxu0
      %v4108 = vadd.f32 %v1155, %v4107
      %4109 = vmatprep.mubr.bf16.mxu0 %v738
      %4110 = vmatmul.mubr.bf16.gmra.mxu0 %v737
      %v4111 = vpop.f32.mrf.mxu0
      %v4112 = vadd.f32 %v1151, %v4111
      %v4113 = vpop.f32.mrf.mxu0
      %v4114 = vadd.f32 %v1155, %v4113
      %v4115 = vpop.f32.mrf.mxu0
      %v4116 = vadd.f32 %v1151, %v4115
      %v4117 = vpop.f32.mrf.mxu0
      %v4118 = vadd.f32 %v1155, %v4117
      %4119 = vmatprep.mubr.bf16.mxu0 %v749
      %4120 = vmatmul.mubr.bf16.gmra.mxu0 %v748
      %v4121 = vpop.f32.mrf.mxu0
      %v4122 = vadd.f32 %v1151, %v4121
      %v4123 = vpop.f32.mrf.mxu0
      %v4124 = vadd.f32 %v1155, %v4123
      %v4125 = vpop.f32.mrf.mxu0
      %v4126 = vadd.f32 %v1151, %v4125
      %v4127 = vpop.f32.mrf.mxu0
      %v4128 = vadd.f32 %v1155, %v4127
      %4129 = vmatprep.mubr.bf16.mxu0 %v760
      %4130 = vmatmul.mubr.bf16.gmra.mxu0 %v759
      %v4131 = vpop.f32.mrf.mxu0
      %v4132 = vadd.f32 %v1151, %v4131
      %v4133 = vpop.f32.mrf.mxu0
      %v4134 = vadd.f32 %v1155, %v4133
      %v4135 = vpop.f32.mrf.mxu0
      %v4136 = vadd.f32 %v1151, %v4135
      %v4137 = vpop.f32.mrf.mxu0
      %v4138 = vadd.f32 %v1155, %v4137
      %4139 = vmatprep.mubr.bf16.mxu0 %v771
      %4140 = vmatmul.mubr.bf16.gmra.mxu0 %v770
      %v4141 = vpop.f32.mrf.mxu0
      %v4142 = vadd.f32 %v1151, %v4141
      %v4143 = vpop.f32.mrf.mxu0
      %v4144 = vadd.f32 %v1155, %v4143
      %v4145 = vpop.f32.mrf.mxu0
      %v4146 = vadd.f32 %v1151, %v4145
      %v4147 = vpop.f32.mrf.mxu0
      %v4148 = vadd.f32 %v1155, %v4147
      %4149 = vmatprep.mubr.bf16.mxu0 %v782
      %4150 = vmatmul.mubr.bf16.gmra.mxu0 %v781
      %v4151 = vpop.f32.mrf.mxu0
      %v4152 = vadd.f32 %v1151, %v4151
      %v4153 = vpop.f32.mrf.mxu0
      %v4154 = vadd.f32 %v1155, %v4153
      %v4155 = vpop.f32.mrf.mxu0
      %v4156 = vadd.f32 %v1151, %v4155
      %v4157 = vpop.f32.mrf.mxu0
      %v4158 = vadd.f32 %v1155, %v4157
      %4159 = vmatprep.mubr.bf16.mxu0 %v793
      %4160 = vmatmul.mubr.bf16.gmra.mxu0 %v792
      %v4161 = vpop.f32.mrf.mxu0
      %v4162 = vadd.f32 %v1151, %v4161
      %v4163 = vpop.f32.mrf.mxu0
      %v4164 = vadd.f32 %v1155, %v4163
      %v4165 = vpop.f32.mrf.mxu0
      %v4166 = vadd.f32 %v1151, %v4165
      %v4167 = vpop.f32.mrf.mxu0
      %v4168 = vadd.f32 %v1155, %v4167
      %4169 = vmatprep.mubr.bf16.mxu0 %v804
      %4170 = vmatmul.mubr.bf16.gmra.mxu0 %v803
      %v4171 = vpop.f32.mrf.mxu0
      %v4172 = vadd.f32 %v1151, %v4171
      %v4173 = vpop.f32.mrf.mxu0
      %v4174 = vadd.f32 %v1155, %v4173
      %v4175 = vpop.f32.mrf.mxu0
      %v4176 = vadd.f32 %v1151, %v4175
      %v4177 = vpop.f32.mrf.mxu0
      %v4178 = vadd.f32 %v1155, %v4177
      %4179 = vdwg.mxu0
      %4180 = vmatprep.subr.bf16.mxu0 %v2227
      %4181 = vmatpush1.bf16.msra.mxu0 %v2226
      %4182 = vmatprep.subr.bf16.mxu0 %v2223
      %4183 = vmatpush1.bf16.msra.mxu0 %v2222
      %4184 = vmatprep.subr.bf16.mxu0 %v2219
      %4185 = vmatpush1.bf16.msra.mxu0 %v2218
      %4186 = vmatprep.subr.bf16.mxu0 %v2215
      %4187 = vmatpush1.bf16.msra.mxu0 %v2214
      %4188 = vmatprep.subr.bf16.mxu0 %v2211
      %4189 = vmatpush1.bf16.msra.mxu0 %v2210
      %4190 = vmatprep.subr.bf16.mxu0 %v2207
      %4191 = vmatpush1.bf16.msra.mxu0 %v2206
      %4192 = vmatprep.subr.bf16.mxu0 %v2203
      %4193 = vmatpush1.bf16.msra.mxu0 %v2202
      %4194 = vmatprep.subr.bf16.mxu0 %v2199
      %4195 = vmatpush1.bf16.msra.mxu0 %v2198
      %4196 = vmatprep.subr.bf16.mxu0 %v2259
      %4197 = vmatpush2.bf16.msra.mxu0 %v2258
      %4198 = vmatprep.subr.bf16.mxu0 %v2255
      %4199 = vmatpush2.bf16.msra.mxu0 %v2254
      %4200 = vmatprep.subr.bf16.mxu0 %v2251
      %4201 = vmatpush2.bf16.msra.mxu0 %v2250
      %4202 = vmatprep.subr.bf16.mxu0 %v2247
      %4203 = vmatpush2.bf16.msra.mxu0 %v2246
      %4204 = vmatprep.subr.bf16.mxu0 %v2243
      %4205 = vmatpush2.bf16.msra.mxu0 %v2242
      %4206 = vmatprep.subr.bf16.mxu0 %v2239
      %4207 = vmatpush2.bf16.msra.mxu0 %v2238
      %4208 = vmatprep.subr.bf16.mxu0 %v2235
      %4209 = vmatpush2.bf16.msra.mxu0 %v2234
      %4210 = vmatprep.subr.bf16.mxu0 %v2231
      %4211 = vmatpush2.bf16.msra.mxu0 %v2230
      %4212 = vmatprep.mubr.bf16.mxu0 %v641
      %4213 = vmatmul.mubr.bf16.gmra.mxu0 %v640
      %v4214 = vpop.f32.mrf.mxu0
      %v4215 = vadd.f32 %v4022, %v4214
      %v4216 = vpop.f32.mrf.mxu0
      %v4217 = vadd.f32 %v4024, %v4216
      %v4218 = vpop.f32.mrf.mxu0
      %v4219 = vadd.f32 %v4026, %v4218
      %v4220 = vpop.f32.mrf.mxu0
      %v4221 = vadd.f32 %v4028, %v4220
      %4222 = vmatprep.mubr.bf16.mxu0 %v652
      %4223 = vmatmul.mubr.bf16.gmra.mxu0 %v651
      %v4224 = vpop.f32.mrf.mxu0
      %v4225 = vadd.f32 %v4032, %v4224
      %v4226 = vpop.f32.mrf.mxu0
      %v4227 = vadd.f32 %v4034, %v4226
      %v4228 = vpop.f32.mrf.mxu0
      %v4229 = vadd.f32 %v4036, %v4228
      %v4230 = vpop.f32.mrf.mxu0
      %v4231 = vadd.f32 %v4038, %v4230
      %4232 = vmatprep.mubr.bf16.mxu0 %v663
      %4233 = vmatmul.mubr.bf16.gmra.mxu0 %v662
      %v4234 = vpop.f32.mrf.mxu0
      %v4235 = vadd.f32 %v4042, %v4234
      %v4236 = vpop.f32.mrf.mxu0
      %v4237 = vadd.f32 %v4044, %v4236
      %v4238 = vpop.f32.mrf.mxu0
      %v4239 = vadd.f32 %v4046, %v4238
      %v4240 = vpop.f32.mrf.mxu0
      %v4241 = vadd.f32 %v4048, %v4240
      %4242 = vmatprep.mubr.bf16.mxu0 %v674
      %4243 = vmatmul.mubr.bf16.gmra.mxu0 %v673
      %v4244 = vpop.f32.mrf.mxu0
      %v4245 = vadd.f32 %v4052, %v4244
      %v4246 = vpop.f32.mrf.mxu0
      %v4247 = vadd.f32 %v4054, %v4246
      %v4248 = vpop.f32.mrf.mxu0
      %v4249 = vadd.f32 %v4056, %v4248
      %v4250 = vpop.f32.mrf.mxu0
      %v4251 = vadd.f32 %v4058, %v4250
      %4252 = vmatprep.mubr.bf16.mxu0 %v685
      %4253 = vmatmul.mubr.bf16.gmra.mxu0 %v684
      %v4254 = vpop.f32.mrf.mxu0
      %v4255 = vadd.f32 %v4062, %v4254
      %v4256 = vpop.f32.mrf.mxu0
      %v4257 = vadd.f32 %v4064, %v4256
      %v4258 = vpop.f32.mrf.mxu0
      %v4259 = vadd.f32 %v4066, %v4258
      %v4260 = vpop.f32.mrf.mxu0
      %v4261 = vadd.f32 %v4068, %v4260
      %4262 = vmatprep.mubr.bf16.mxu0 %v696
      %4263 = vmatmul.mubr.bf16.gmra.mxu0 %v695
      %v4264 = vpop.f32.mrf.mxu0
      %v4265 = vadd.f32 %v4072, %v4264
      %v4266 = vpop.f32.mrf.mxu0
      %v4267 = vadd.f32 %v4074, %v4266
      %v4268 = vpop.f32.mrf.mxu0
      %v4269 = vadd.f32 %v4076, %v4268
      %v4270 = vpop.f32.mrf.mxu0
      %v4271 = vadd.f32 %v4078, %v4270
      %4272 = vmatprep.mubr.bf16.mxu0 %v707
      %4273 = vmatmul.mubr.bf16.gmra.mxu0 %v706
      %v4274 = vpop.f32.mrf.mxu0
      %v4275 = vadd.f32 %v4082, %v4274
      %v4276 = vpop.f32.mrf.mxu0
      %v4277 = vadd.f32 %v4084, %v4276
      %v4278 = vpop.f32.mrf.mxu0
      %v4279 = vadd.f32 %v4086, %v4278
      %v4280 = vpop.f32.mrf.mxu0
      %v4281 = vadd.f32 %v4088, %v4280
      %4282 = vmatprep.mubr.bf16.mxu0 %v718
      %4283 = vmatmul.mubr.bf16.gmra.mxu0 %v717
      %v4284 = vpop.f32.mrf.mxu0
      %v4285 = vadd.f32 %v4092, %v4284
      %v4286 = vpop.f32.mrf.mxu0
      %v4287 = vadd.f32 %v4094, %v4286
      %v4288 = vpop.f32.mrf.mxu0
      %v4289 = vadd.f32 %v4096, %v4288
      %v4290 = vpop.f32.mrf.mxu0
      %v4291 = vadd.f32 %v4098, %v4290
      %4292 = vmatprep.mubr.bf16.mxu0 %v729
      %4293 = vmatmul.mubr.bf16.gmra.mxu0 %v728
      %v4294 = vpop.f32.mrf.mxu0
      %v4295 = vadd.f32 %v4102, %v4294
      %v4296 = vpop.f32.mrf.mxu0
      %v4297 = vadd.f32 %v4104, %v4296
      %v4298 = vpop.f32.mrf.mxu0
      %v4299 = vadd.f32 %v4106, %v4298
      %v4300 = vpop.f32.mrf.mxu0
      %v4301 = vadd.f32 %v4108, %v4300
      %4302 = vmatprep.mubr.bf16.mxu0 %v740
      %4303 = vmatmul.mubr.bf16.gmra.mxu0 %v739
      %v4304 = vpop.f32.mrf.mxu0
      %v4305 = vadd.f32 %v4112, %v4304
      %v4306 = vpop.f32.mrf.mxu0
      %v4307 = vadd.f32 %v4114, %v4306
      %v4308 = vpop.f32.mrf.mxu0
      %v4309 = vadd.f32 %v4116, %v4308
      %v4310 = vpop.f32.mrf.mxu0
      %v4311 = vadd.f32 %v4118, %v4310
      %4312 = vmatprep.mubr.bf16.mxu0 %v751
      %4313 = vmatmul.mubr.bf16.gmra.mxu0 %v750
      %v4314 = vpop.f32.mrf.mxu0
      %v4315 = vadd.f32 %v4122, %v4314
      %v4316 = vpop.f32.mrf.mxu0
      %v4317 = vadd.f32 %v4124, %v4316
      %v4318 = vpop.f32.mrf.mxu0
      %v4319 = vadd.f32 %v4126, %v4318
      %v4320 = vpop.f32.mrf.mxu0
      %v4321 = vadd.f32 %v4128, %v4320
      %4322 = vmatprep.mubr.bf16.mxu0 %v762
      %4323 = vmatmul.mubr.bf16.gmra.mxu0 %v761
      %v4324 = vpop.f32.mrf.mxu0
      %v4325 = vadd.f32 %v4132, %v4324
      %v4326 = vpop.f32.mrf.mxu0
      %v4327 = vadd.f32 %v4134, %v4326
      %v4328 = vpop.f32.mrf.mxu0
      %v4329 = vadd.f32 %v4136, %v4328
      %v4330 = vpop.f32.mrf.mxu0
      %v4331 = vadd.f32 %v4138, %v4330
      %4332 = vmatprep.mubr.bf16.mxu0 %v773
      %4333 = vmatmul.mubr.bf16.gmra.mxu0 %v772
      %v4334 = vpop.f32.mrf.mxu0
      %v4335 = vadd.f32 %v4142, %v4334
      %v4336 = vpop.f32.mrf.mxu0
      %v4337 = vadd.f32 %v4144, %v4336
      %v4338 = vpop.f32.mrf.mxu0
      %v4339 = vadd.f32 %v4146, %v4338
      %v4340 = vpop.f32.mrf.mxu0
      %v4341 = vadd.f32 %v4148, %v4340
      %4342 = vmatprep.mubr.bf16.mxu0 %v784
      %4343 = vmatmul.mubr.bf16.gmra.mxu0 %v783
      %v4344 = vpop.f32.mrf.mxu0
      %v4345 = vadd.f32 %v4152, %v4344
      %v4346 = vpop.f32.mrf.mxu0
      %v4347 = vadd.f32 %v4154, %v4346
      %v4348 = vpop.f32.mrf.mxu0
      %v4349 = vadd.f32 %v4156, %v4348
      %v4350 = vpop.f32.mrf.mxu0
      %v4351 = vadd.f32 %v4158, %v4350
      %4352 = vmatprep.mubr.bf16.mxu0 %v795
      %4353 = vmatmul.mubr.bf16.gmra.mxu0 %v794
      %v4354 = vpop.f32.mrf.mxu0
      %v4355 = vadd.f32 %v4162, %v4354
      %v4356 = vpop.f32.mrf.mxu0
      %v4357 = vadd.f32 %v4164, %v4356
      %v4358 = vpop.f32.mrf.mxu0
      %v4359 = vadd.f32 %v4166, %v4358
      %v4360 = vpop.f32.mrf.mxu0
      %v4361 = vadd.f32 %v4168, %v4360
      %4362 = vmatprep.mubr.bf16.mxu0 %v806
      %4363 = vmatmul.mubr.bf16.gmra.mxu0 %v805
      %v4364 = vpop.f32.mrf.mxu0
      %v4365 = vadd.f32 %v4172, %v4364
      %v4366 = vpop.f32.mrf.mxu0
      %v4367 = vadd.f32 %v4174, %v4366
      %v4368 = vpop.f32.mrf.mxu0
      %v4369 = vadd.f32 %v4176, %v4368
      %v4370 = vpop.f32.mrf.mxu0
      %v4371 = vadd.f32 %v4178, %v4370
      %4372 = vdwg.mxu0
      %4373 = vmatprep.subr.bf16.mxu0 %v2291
      %4374 = vmatpush1.bf16.msra.mxu0 %v2290
      %4375 = vmatprep.subr.bf16.mxu0 %v2287
      %4376 = vmatpush1.bf16.msra.mxu0 %v2286
      %4377 = vmatprep.subr.bf16.mxu0 %v2283
      %4378 = vmatpush1.bf16.msra.mxu0 %v2282
      %4379 = vmatprep.subr.bf16.mxu0 %v2279
      %4380 = vmatpush1.bf16.msra.mxu0 %v2278
      %4381 = vmatprep.subr.bf16.mxu0 %v2275
      %4382 = vmatpush1.bf16.msra.mxu0 %v2274
      %4383 = vmatprep.subr.bf16.mxu0 %v2271
      %4384 = vmatpush1.bf16.msra.mxu0 %v2270
      %4385 = vmatprep.subr.bf16.mxu0 %v2267
      %4386 = vmatpush1.bf16.msra.mxu0 %v2266
      %4387 = vmatprep.subr.bf16.mxu0 %v2263
      %4388 = vmatpush1.bf16.msra.mxu0 %v2262
      %4389 = vmatprep.subr.bf16.mxu0 %v2323
      %4390 = vmatpush2.bf16.msra.mxu0 %v2322
      %4391 = vmatprep.subr.bf16.mxu0 %v2319
      %4392 = vmatpush2.bf16.msra.mxu0 %v2318
      %4393 = vmatprep.subr.bf16.mxu0 %v2315
      %4394 = vmatpush2.bf16.msra.mxu0 %v2314
      %4395 = vmatprep.subr.bf16.mxu0 %v2311
      %4396 = vmatpush2.bf16.msra.mxu0 %v2310
      %4397 = vmatprep.subr.bf16.mxu0 %v2307
      %4398 = vmatpush2.bf16.msra.mxu0 %v2306
      %4399 = vmatprep.subr.bf16.mxu0 %v2303
      %4400 = vmatpush2.bf16.msra.mxu0 %v2302
      %4401 = vmatprep.subr.bf16.mxu0 %v2299
      %4402 = vmatpush2.bf16.msra.mxu0 %v2298
      %4403 = vmatprep.subr.bf16.mxu0 %v2295
      %4404 = vmatpush2.bf16.msra.mxu0 %v2294
      %4405 = vmatprep.mubr.bf16.mxu0 %v643
      %4406 = vmatmul.mubr.bf16.gmra.mxu0 %v642
      %v4407 = vpop.f32.mrf.mxu0
      %v4408 = vadd.f32 %v4215, %v4407
      %v4409 = vpop.f32.mrf.mxu0
      %v4410 = vadd.f32 %v4217, %v4409
      %v4411 = vpop.f32.mrf.mxu0
      %v4412 = vadd.f32 %v4219, %v4411
      %v4413 = vpop.f32.mrf.mxu0
      %v4414 = vadd.f32 %v4221, %v4413
      %4415 = vmatprep.mubr.bf16.mxu0 %v654
      %4416 = vmatmul.mubr.bf16.gmra.mxu0 %v653
      %v4417 = vpop.f32.mrf.mxu0
      %v4418 = vadd.f32 %v4225, %v4417
      %v4419 = vpop.f32.mrf.mxu0
      %v4420 = vadd.f32 %v4227, %v4419
      %v4421 = vpop.f32.mrf.mxu0
      %v4422 = vadd.f32 %v4229, %v4421
      %v4423 = vpop.f32.mrf.mxu0
      %v4424 = vadd.f32 %v4231, %v4423
      %4425 = vmatprep.mubr.bf16.mxu0 %v665
      %4426 = vmatmul.mubr.bf16.gmra.mxu0 %v664
      %v4427 = vpop.f32.mrf.mxu0
      %v4428 = vadd.f32 %v4235, %v4427
      %v4429 = vpop.f32.mrf.mxu0
      %v4430 = vadd.f32 %v4237, %v4429
      %v4431 = vpop.f32.mrf.mxu0
      %v4432 = vadd.f32 %v4239, %v4431
      %v4433 = vpop.f32.mrf.mxu0
      %v4434 = vadd.f32 %v4241, %v4433
      %4435 = vmatprep.mubr.bf16.mxu0 %v676
      %4436 = vmatmul.mubr.bf16.gmra.mxu0 %v675
      %v4437 = vpop.f32.mrf.mxu0
      %v4438 = vadd.f32 %v4245, %v4437
      %v4439 = vpop.f32.mrf.mxu0
      %v4440 = vadd.f32 %v4247, %v4439
      %v4441 = vpop.f32.mrf.mxu0
      %v4442 = vadd.f32 %v4249, %v4441
      %v4443 = vpop.f32.mrf.mxu0
      %v4444 = vadd.f32 %v4251, %v4443
      %4445 = vmatprep.mubr.bf16.mxu0 %v687
      %4446 = vmatmul.mubr.bf16.gmra.mxu0 %v686
      %v4447 = vpop.f32.mrf.mxu0
      %v4448 = vadd.f32 %v4255, %v4447
      %v4449 = vpop.f32.mrf.mxu0
      %v4450 = vadd.f32 %v4257, %v4449
      %v4451 = vpop.f32.mrf.mxu0
      %v4452 = vadd.f32 %v4259, %v4451
      %v4453 = vpop.f32.mrf.mxu0
      %v4454 = vadd.f32 %v4261, %v4453
      %4455 = vmatprep.mubr.bf16.mxu0 %v698
      %4456 = vmatmul.mubr.bf16.gmra.mxu0 %v697
      %v4457 = vpop.f32.mrf.mxu0
      %v4458 = vadd.f32 %v4265, %v4457
      %v4459 = vpop.f32.mrf.mxu0
      %v4460 = vadd.f32 %v4267, %v4459
      %v4461 = vpop.f32.mrf.mxu0
      %v4462 = vadd.f32 %v4269, %v4461
      %v4463 = vpop.f32.mrf.mxu0
      %v4464 = vadd.f32 %v4271, %v4463
      %4465 = vmatprep.mubr.bf16.mxu0 %v709
      %4466 = vmatmul.mubr.bf16.gmra.mxu0 %v708
      %v4467 = vpop.f32.mrf.mxu0
      %v4468 = vadd.f32 %v4275, %v4467
      %v4469 = vpop.f32.mrf.mxu0
      %v4470 = vadd.f32 %v4277, %v4469
      %v4471 = vpop.f32.mrf.mxu0
      %v4472 = vadd.f32 %v4279, %v4471
      %v4473 = vpop.f32.mrf.mxu0
      %v4474 = vadd.f32 %v4281, %v4473
      %4475 = vmatprep.mubr.bf16.mxu0 %v720
      %4476 = vmatmul.mubr.bf16.gmra.mxu0 %v719
      %v4477 = vpop.f32.mrf.mxu0
      %v4478 = vadd.f32 %v4285, %v4477
      %v4479 = vpop.f32.mrf.mxu0
      %v4480 = vadd.f32 %v4287, %v4479
      %v4481 = vpop.f32.mrf.mxu0
      %v4482 = vadd.f32 %v4289, %v4481
      %v4483 = vpop.f32.mrf.mxu0
      %v4484 = vadd.f32 %v4291, %v4483
      %4485 = vmatprep.mubr.bf16.mxu0 %v731
      %4486 = vmatmul.mubr.bf16.gmra.mxu0 %v730
      %v4487 = vpop.f32.mrf.mxu0
      %v4488 = vadd.f32 %v4295, %v4487
      %v4489 = vpop.f32.mrf.mxu0
      %v4490 = vadd.f32 %v4297, %v4489
      %v4491 = vpop.f32.mrf.mxu0
      %v4492 = vadd.f32 %v4299, %v4491
      %v4493 = vpop.f32.mrf.mxu0
      %v4494 = vadd.f32 %v4301, %v4493
      %4495 = vmatprep.mubr.bf16.mxu0 %v742
      %4496 = vmatmul.mubr.bf16.gmra.mxu0 %v741
      %v4497 = vpop.f32.mrf.mxu0
      %v4498 = vadd.f32 %v4305, %v4497
      %v4499 = vpop.f32.mrf.mxu0
      %v4500 = vadd.f32 %v4307, %v4499
      %v4501 = vpop.f32.mrf.mxu0
      %v4502 = vadd.f32 %v4309, %v4501
      %v4503 = vpop.f32.mrf.mxu0
      %v4504 = vadd.f32 %v4311, %v4503
      %4505 = vmatprep.mubr.bf16.mxu0 %v753
      %4506 = vmatmul.mubr.bf16.gmra.mxu0 %v752
      %v4507 = vpop.f32.mrf.mxu0
      %v4508 = vadd.f32 %v4315, %v4507
      %v4509 = vpop.f32.mrf.mxu0
      %v4510 = vadd.f32 %v4317, %v4509
      %v4511 = vpop.f32.mrf.mxu0
      %v4512 = vadd.f32 %v4319, %v4511
      %v4513 = vpop.f32.mrf.mxu0
      %v4514 = vadd.f32 %v4321, %v4513
      %4515 = vmatprep.mubr.bf16.mxu0 %v764
      %4516 = vmatmul.mubr.bf16.gmra.mxu0 %v763
      %v4517 = vpop.f32.mrf.mxu0
      %v4518 = vadd.f32 %v4325, %v4517
      %v4519 = vpop.f32.mrf.mxu0
      %v4520 = vadd.f32 %v4327, %v4519
      %v4521 = vpop.f32.mrf.mxu0
      %v4522 = vadd.f32 %v4329, %v4521
      %v4523 = vpop.f32.mrf.mxu0
      %v4524 = vadd.f32 %v4331, %v4523
      %4525 = vmatprep.mubr.bf16.mxu0 %v775
      %4526 = vmatmul.mubr.bf16.gmra.mxu0 %v774
      %v4527 = vpop.f32.mrf.mxu0
      %v4528 = vadd.f32 %v4335, %v4527
      %v4529 = vpop.f32.mrf.mxu0
      %v4530 = vadd.f32 %v4337, %v4529
      %v4531 = vpop.f32.mrf.mxu0
      %v4532 = vadd.f32 %v4339, %v4531
      %v4533 = vpop.f32.mrf.mxu0
      %v4534 = vadd.f32 %v4341, %v4533
      %4535 = vmatprep.mubr.bf16.mxu0 %v786
      %4536 = vmatmul.mubr.bf16.gmra.mxu0 %v785
      %v4537 = vpop.f32.mrf.mxu0
      %v4538 = vadd.f32 %v4345, %v4537
      %v4539 = vpop.f32.mrf.mxu0
      %v4540 = vadd.f32 %v4347, %v4539
      %v4541 = vpop.f32.mrf.mxu0
      %v4542 = vadd.f32 %v4349, %v4541
      %v4543 = vpop.f32.mrf.mxu0
      %v4544 = vadd.f32 %v4351, %v4543
      %4545 = vmatprep.mubr.bf16.mxu0 %v797
      %4546 = vmatmul.mubr.bf16.gmra.mxu0 %v796
      %v4547 = vpop.f32.mrf.mxu0
      %v4548 = vadd.f32 %v4355, %v4547
      %v4549 = vpop.f32.mrf.mxu0
      %v4550 = vadd.f32 %v4357, %v4549
      %v4551 = vpop.f32.mrf.mxu0
      %v4552 = vadd.f32 %v4359, %v4551
      %v4553 = vpop.f32.mrf.mxu0
      %v4554 = vadd.f32 %v4361, %v4553
      %4555 = vmatprep.mubr.bf16.mxu0 %v808
      %4556 = vmatmul.mubr.bf16.gmra.mxu0 %v807
      %v4557 = vpop.f32.mrf.mxu0
      %v4558 = vadd.f32 %v4365, %v4557
      %v4559 = vpop.f32.mrf.mxu0
      %v4560 = vadd.f32 %v4367, %v4559
      %v4561 = vpop.f32.mrf.mxu0
      %v4562 = vadd.f32 %v4369, %v4561
      %v4563 = vpop.f32.mrf.mxu0
      %v4564 = vadd.f32 %v4371, %v4563
      %4565 = vdwg.mxu0
      %4566 = vmatprep.subr.bf16.mxu0 %v2355
      %4567 = vmatpush1.bf16.msra.mxu0 %v2354
      %4568 = vmatprep.subr.bf16.mxu0 %v2351
      %4569 = vmatpush1.bf16.msra.mxu0 %v2350
      %4570 = vmatprep.subr.bf16.mxu0 %v2347
      %4571 = vmatpush1.bf16.msra.mxu0 %v2346
      %4572 = vmatprep.subr.bf16.mxu0 %v2343
      %4573 = vmatpush1.bf16.msra.mxu0 %v2342
      %4574 = vmatprep.subr.bf16.mxu0 %v2339
      %4575 = vmatpush1.bf16.msra.mxu0 %v2338
      %4576 = vmatprep.subr.bf16.mxu0 %v2335
      %4577 = vmatpush1.bf16.msra.mxu0 %v2334
      %4578 = vmatprep.subr.bf16.mxu0 %v2331
      %4579 = vmatpush1.bf16.msra.mxu0 %v2330
      %4580 = vmatprep.subr.bf16.mxu0 %v2327
      %4581 = vmatpush1.bf16.msra.mxu0 %v2326
      %4582 = vmatprep.subr.bf16.mxu0 %v2387
      %4583 = vmatpush2.bf16.msra.mxu0 %v2386
      %4584 = vmatprep.subr.bf16.mxu0 %v2383
      %4585 = vmatpush2.bf16.msra.mxu0 %v2382
      %4586 = vmatprep.subr.bf16.mxu0 %v2379
      %4587 = vmatpush2.bf16.msra.mxu0 %v2378
      %4588 = vmatprep.subr.bf16.mxu0 %v2375
      %4589 = vmatpush2.bf16.msra.mxu0 %v2374
      %4590 = vmatprep.subr.bf16.mxu0 %v2371
      %4591 = vmatpush2.bf16.msra.mxu0 %v2370
      %4592 = vmatprep.subr.bf16.mxu0 %v2367
      %4593 = vmatpush2.bf16.msra.mxu0 %v2366
      %4594 = vmatprep.subr.bf16.mxu0 %v2363
      %4595 = vmatpush2.bf16.msra.mxu0 %v2362
      %4596 = vmatprep.subr.bf16.mxu0 %v2359
      %4597 = vmatpush2.bf16.msra.mxu0 %v2358
      %4598 = vmatprep.mubr.bf16.mxu0 %v645
      %4599 = vmatmul.mubr.bf16.gmra.mxu0 %v644
      %v4600 = vpop.f32.mrf.mxu0
      %v4601 = vadd.f32 %v4408, %v4600
      %v4602 = vpop.f32.mrf.mxu0
      %v4603 = vadd.f32 %v4410, %v4602
      %v4604 = vpop.f32.mrf.mxu0
      %v4605 = vadd.f32 %v4412, %v4604
      %v4606 = vpop.f32.mrf.mxu0
      %v4607 = vadd.f32 %v4414, %v4606
      %4608 = vmatprep.mubr.bf16.mxu0 %v656
      %4609 = vmatmul.mubr.bf16.gmra.mxu0 %v655
      %v4610 = vpop.f32.mrf.mxu0
      %v4611 = vadd.f32 %v4418, %v4610
      %v4612 = vpop.f32.mrf.mxu0
      %v4613 = vadd.f32 %v4420, %v4612
      %v4614 = vpop.f32.mrf.mxu0
      %v4615 = vadd.f32 %v4422, %v4614
      %v4616 = vpop.f32.mrf.mxu0
      %v4617 = vadd.f32 %v4424, %v4616
      %4618 = vmatprep.mubr.bf16.mxu0 %v667
      %4619 = vmatmul.mubr.bf16.gmra.mxu0 %v666
      %v4620 = vpop.f32.mrf.mxu0
      %v4621 = vadd.f32 %v4428, %v4620
      %v4622 = vpop.f32.mrf.mxu0
      %v4623 = vadd.f32 %v4430, %v4622
      %v4624 = vpop.f32.mrf.mxu0
      %v4625 = vadd.f32 %v4432, %v4624
      %v4626 = vpop.f32.mrf.mxu0
      %v4627 = vadd.f32 %v4434, %v4626
      %4628 = vmatprep.mubr.bf16.mxu0 %v678
      %4629 = vmatmul.mubr.bf16.gmra.mxu0 %v677
      %v4630 = vpop.f32.mrf.mxu0
      %v4631 = vadd.f32 %v4438, %v4630
      %v4632 = vpop.f32.mrf.mxu0
      %v4633 = vadd.f32 %v4440, %v4632
      %v4634 = vpop.f32.mrf.mxu0
      %v4635 = vadd.f32 %v4442, %v4634
      %v4636 = vpop.f32.mrf.mxu0
      %v4637 = vadd.f32 %v4444, %v4636
      %4638 = vmatprep.mubr.bf16.mxu0 %v689
      %4639 = vmatmul.mubr.bf16.gmra.mxu0 %v688
      %v4640 = vpop.f32.mrf.mxu0
      %v4641 = vadd.f32 %v4448, %v4640
      %v4642 = vpop.f32.mrf.mxu0
      %v4643 = vadd.f32 %v4450, %v4642
      %v4644 = vpop.f32.mrf.mxu0
      %v4645 = vadd.f32 %v4452, %v4644
      %v4646 = vpop.f32.mrf.mxu0
      %v4647 = vadd.f32 %v4454, %v4646
      %4648 = vmatprep.mubr.bf16.mxu0 %v700
      %4649 = vmatmul.mubr.bf16.gmra.mxu0 %v699
      %v4650 = vpop.f32.mrf.mxu0
      %v4651 = vadd.f32 %v4458, %v4650
      %v4652 = vpop.f32.mrf.mxu0
      %v4653 = vadd.f32 %v4460, %v4652
      %v4654 = vpop.f32.mrf.mxu0
      %v4655 = vadd.f32 %v4462, %v4654
      %v4656 = vpop.f32.mrf.mxu0
      %v4657 = vadd.f32 %v4464, %v4656
      %4658 = vmatprep.mubr.bf16.mxu0 %v711
      %4659 = vmatmul.mubr.bf16.gmra.mxu0 %v710
      %v4660 = vpop.f32.mrf.mxu0
      %v4661 = vadd.f32 %v4468, %v4660
      %v4662 = vpop.f32.mrf.mxu0
      %v4663 = vadd.f32 %v4470, %v4662
      %v4664 = vpop.f32.mrf.mxu0
      %v4665 = vadd.f32 %v4472, %v4664
      %v4666 = vpop.f32.mrf.mxu0
      %v4667 = vadd.f32 %v4474, %v4666
      %4668 = vmatprep.mubr.bf16.mxu0 %v722
      %4669 = vmatmul.mubr.bf16.gmra.mxu0 %v721
      %v4670 = vpop.f32.mrf.mxu0
      %v4671 = vadd.f32 %v4478, %v4670
      %v4672 = vpop.f32.mrf.mxu0
      %v4673 = vadd.f32 %v4480, %v4672
      %v4674 = vpop.f32.mrf.mxu0
      %v4675 = vadd.f32 %v4482, %v4674
      %v4676 = vpop.f32.mrf.mxu0
      %v4677 = vadd.f32 %v4484, %v4676
      %4678 = vmatprep.mubr.bf16.mxu0 %v733
      %4679 = vmatmul.mubr.bf16.gmra.mxu0 %v732
      %v4680 = vpop.f32.mrf.mxu0
      %v4681 = vadd.f32 %v4488, %v4680
      %v4682 = vpop.f32.mrf.mxu0
      %v4683 = vadd.f32 %v4490, %v4682
      %v4684 = vpop.f32.mrf.mxu0
      %v4685 = vadd.f32 %v4492, %v4684
      %v4686 = vpop.f32.mrf.mxu0
      %v4687 = vadd.f32 %v4494, %v4686
      %4688 = vmatprep.mubr.bf16.mxu0 %v744
      %4689 = vmatmul.mubr.bf16.gmra.mxu0 %v743
      %v4690 = vpop.f32.mrf.mxu0
      %v4691 = vadd.f32 %v4498, %v4690
      %v4692 = vpop.f32.mrf.mxu0
      %v4693 = vadd.f32 %v4500, %v4692
      %v4694 = vpop.f32.mrf.mxu0
      %v4695 = vadd.f32 %v4502, %v4694
      %v4696 = vpop.f32.mrf.mxu0
      %v4697 = vadd.f32 %v4504, %v4696
      %4698 = vmatprep.mubr.bf16.mxu0 %v755
      %4699 = vmatmul.mubr.bf16.gmra.mxu0 %v754
      %v4700 = vpop.f32.mrf.mxu0
      %v4701 = vadd.f32 %v4508, %v4700
      %v4702 = vpop.f32.mrf.mxu0
      %v4703 = vadd.f32 %v4510, %v4702
      %v4704 = vpop.f32.mrf.mxu0
      %v4705 = vadd.f32 %v4512, %v4704
      %v4706 = vpop.f32.mrf.mxu0
      %v4707 = vadd.f32 %v4514, %v4706
      %4708 = vmatprep.mubr.bf16.mxu0 %v766
      %4709 = vmatmul.mubr.bf16.gmra.mxu0 %v765
      %v4710 = vpop.f32.mrf.mxu0
      %v4711 = vadd.f32 %v4518, %v4710
      %v4712 = vpop.f32.mrf.mxu0
      %v4713 = vadd.f32 %v4520, %v4712
      %v4714 = vpop.f32.mrf.mxu0
      %v4715 = vadd.f32 %v4522, %v4714
      %v4716 = vpop.f32.mrf.mxu0
      %v4717 = vadd.f32 %v4524, %v4716
      %4718 = vmatprep.mubr.bf16.mxu0 %v777
      %4719 = vmatmul.mubr.bf16.gmra.mxu0 %v776
      %v4720 = vpop.f32.mrf.mxu0
      %v4721 = vadd.f32 %v4528, %v4720
      %v4722 = vpop.f32.mrf.mxu0
      %v4723 = vadd.f32 %v4530, %v4722
      %v4724 = vpop.f32.mrf.mxu0
      %v4725 = vadd.f32 %v4532, %v4724
      %v4726 = vpop.f32.mrf.mxu0
      %v4727 = vadd.f32 %v4534, %v4726
      %4728 = vmatprep.mubr.bf16.mxu0 %v788
      %4729 = vmatmul.mubr.bf16.gmra.mxu0 %v787
      %v4730 = vpop.f32.mrf.mxu0
      %v4731 = vadd.f32 %v4538, %v4730
      %v4732 = vpop.f32.mrf.mxu0
      %v4733 = vadd.f32 %v4540, %v4732
      %v4734 = vpop.f32.mrf.mxu0
      %v4735 = vadd.f32 %v4542, %v4734
      %v4736 = vpop.f32.mrf.mxu0
      %v4737 = vadd.f32 %v4544, %v4736
      %4738 = vmatprep.mubr.bf16.mxu0 %v799
      %4739 = vmatmul.mubr.bf16.gmra.mxu0 %v798
      %v4740 = vpop.f32.mrf.mxu0
      %v4741 = vadd.f32 %v4548, %v4740
      %v4742 = vpop.f32.mrf.mxu0
      %v4743 = vadd.f32 %v4550, %v4742
      %v4744 = vpop.f32.mrf.mxu0
      %v4745 = vadd.f32 %v4552, %v4744
      %v4746 = vpop.f32.mrf.mxu0
      %v4747 = vadd.f32 %v4554, %v4746
      %4748 = vmatprep.mubr.bf16.mxu0 %v810
      %4749 = vmatmul.mubr.bf16.gmra.mxu0 %v809
      %v4750 = vpop.f32.mrf.mxu0
      %v4751 = vadd.f32 %v4558, %v4750
      %v4752 = vpop.f32.mrf.mxu0
      %v4753 = vadd.f32 %v4560, %v4752
      %v4754 = vpop.f32.mrf.mxu0
      %v4755 = vadd.f32 %v4562, %v4754
      %v4756 = vpop.f32.mrf.mxu0
      %v4757 = vadd.f32 %v4564, %v4756
      %4758 = vdwg.mxu0
      %4759 = vmatprep.subr.bf16.mxu0 %v2419
      %4760 = vmatpush1.bf16.msra.mxu0 %v2418
      %4761 = vmatprep.subr.bf16.mxu0 %v2415
      %4762 = vmatpush1.bf16.msra.mxu0 %v2414
      %4763 = vmatprep.subr.bf16.mxu0 %v2411
      %4764 = vmatpush1.bf16.msra.mxu0 %v2410
      %4765 = vmatprep.subr.bf16.mxu0 %v2407
      %4766 = vmatpush1.bf16.msra.mxu0 %v2406
      %4767 = vmatprep.subr.bf16.mxu0 %v2403
      %4768 = vmatpush1.bf16.msra.mxu0 %v2402
      %4769 = vmatprep.subr.bf16.mxu0 %v2399
      %4770 = vmatpush1.bf16.msra.mxu0 %v2398
      %4771 = vmatprep.subr.bf16.mxu0 %v2395
      %4772 = vmatpush1.bf16.msra.mxu0 %v2394
      %4773 = vmatprep.subr.bf16.mxu0 %v2391
      %4774 = vmatpush1.bf16.msra.mxu0 %v2390
      %4775 = vmatprep.subr.bf16.mxu0 %v2451
      %4776 = vmatpush2.bf16.msra.mxu0 %v2450
      %4777 = vmatprep.subr.bf16.mxu0 %v2447
      %4778 = vmatpush2.bf16.msra.mxu0 %v2446
      %4779 = vmatprep.subr.bf16.mxu0 %v2443
      %4780 = vmatpush2.bf16.msra.mxu0 %v2442
      %4781 = vmatprep.subr.bf16.mxu0 %v2439
      %4782 = vmatpush2.bf16.msra.mxu0 %v2438
      %4783 = vmatprep.subr.bf16.mxu0 %v2435
      %4784 = vmatpush2.bf16.msra.mxu0 %v2434
      %4785 = vmatprep.subr.bf16.mxu0 %v2431
      %4786 = vmatpush2.bf16.msra.mxu0 %v2430
      %4787 = vmatprep.subr.bf16.mxu0 %v2427
      %4788 = vmatpush2.bf16.msra.mxu0 %v2426
      %4789 = vmatprep.subr.bf16.mxu0 %v2423
      %4790 = vmatpush2.bf16.msra.mxu0 %v2422
      %4791 = vmatprep.mubr.bf16.mxu0 %v647
      %4792 = vmatmul.mubr.bf16.gmra.mxu0 %v646
      %v4793 = vpop.f32.mrf.mxu0
      %v4794 = vadd.f32 %v4601, %v4793
      %v4795 = vpop.f32.mrf.mxu0
      %v4796 = vadd.f32 %v4603, %v4795
      %v4797 = vpop.f32.mrf.mxu0
      %v4798 = vadd.f32 %v4605, %v4797
      %v4799 = vpop.f32.mrf.mxu0
      %v4800 = vadd.f32 %v4607, %v4799
      %4801 = vmatprep.mubr.bf16.mxu0 %v658
      %4802 = vmatmul.mubr.bf16.gmra.mxu0 %v657
      %v4803 = vpop.f32.mrf.mxu0
      %v4804 = vadd.f32 %v4611, %v4803
      %v4805 = vpop.f32.mrf.mxu0
      %v4806 = vadd.f32 %v4613, %v4805
      %v4807 = vpop.f32.mrf.mxu0
      %v4808 = vadd.f32 %v4615, %v4807
      %v4809 = vpop.f32.mrf.mxu0
      %v4810 = vadd.f32 %v4617, %v4809
      %4811 = vmatprep.mubr.bf16.mxu0 %v669
      %4812 = vmatmul.mubr.bf16.gmra.mxu0 %v668
      %v4813 = vpop.f32.mrf.mxu0
      %v4814 = vadd.f32 %v4621, %v4813
      %v4815 = vpop.f32.mrf.mxu0
      %v4816 = vadd.f32 %v4623, %v4815
      %v4817 = vpop.f32.mrf.mxu0
      %v4818 = vadd.f32 %v4625, %v4817
      %v4819 = vpop.f32.mrf.mxu0
      %v4820 = vadd.f32 %v4627, %v4819
      %4821 = vmatprep.mubr.bf16.mxu0 %v680
      %4822 = vmatmul.mubr.bf16.gmra.mxu0 %v679
      %v4823 = vpop.f32.mrf.mxu0
      %v4824 = vadd.f32 %v4631, %v4823
      %v4825 = vpop.f32.mrf.mxu0
      %v4826 = vadd.f32 %v4633, %v4825
      %v4827 = vpop.f32.mrf.mxu0
      %v4828 = vadd.f32 %v4635, %v4827
      %v4829 = vpop.f32.mrf.mxu0
      %v4830 = vadd.f32 %v4637, %v4829
      %4831 = vmatprep.mubr.bf16.mxu0 %v691
      %4832 = vmatmul.mubr.bf16.gmra.mxu0 %v690
      %v4833 = vpop.f32.mrf.mxu0
      %v4834 = vadd.f32 %v4641, %v4833
      %v4835 = vpop.f32.mrf.mxu0
      %v4836 = vadd.f32 %v4643, %v4835
      %v4837 = vpop.f32.mrf.mxu0
      %v4838 = vadd.f32 %v4645, %v4837
      %v4839 = vpop.f32.mrf.mxu0
      %v4840 = vadd.f32 %v4647, %v4839
      %4841 = vmatprep.mubr.bf16.mxu0 %v702
      %4842 = vmatmul.mubr.bf16.gmra.mxu0 %v701
      %v4843 = vpop.f32.mrf.mxu0
      %v4844 = vadd.f32 %v4651, %v4843
      %v4845 = vpop.f32.mrf.mxu0
      %v4846 = vadd.f32 %v4653, %v4845
      %v4847 = vpop.f32.mrf.mxu0
      %v4848 = vadd.f32 %v4655, %v4847
      %v4849 = vpop.f32.mrf.mxu0
      %v4850 = vadd.f32 %v4657, %v4849
      %4851 = vmatprep.mubr.bf16.mxu0 %v713
      %4852 = vmatmul.mubr.bf16.gmra.mxu0 %v712
      %v4853 = vpop.f32.mrf.mxu0
      %v4854 = vadd.f32 %v4661, %v4853
      %v4855 = vpop.f32.mrf.mxu0
      %v4856 = vadd.f32 %v4663, %v4855
      %v4857 = vpop.f32.mrf.mxu0
      %v4858 = vadd.f32 %v4665, %v4857
      %v4859 = vpop.f32.mrf.mxu0
      %v4860 = vadd.f32 %v4667, %v4859
      %4861 = vmatprep.mubr.bf16.mxu0 %v724
      %4862 = vmatmul.mubr.bf16.gmra.mxu0 %v723
      %v4863 = vpop.f32.mrf.mxu0
      %v4864 = vadd.f32 %v4671, %v4863
      %v4865 = vpop.f32.mrf.mxu0
      %v4866 = vadd.f32 %v4673, %v4865
      %v4867 = vpop.f32.mrf.mxu0
      %v4868 = vadd.f32 %v4675, %v4867
      %v4869 = vpop.f32.mrf.mxu0
      %v4870 = vadd.f32 %v4677, %v4869
      %4871 = vmatprep.mubr.bf16.mxu0 %v735
      %4872 = vmatmul.mubr.bf16.gmra.mxu0 %v734
      %v4873 = vpop.f32.mrf.mxu0
      %v4874 = vadd.f32 %v4681, %v4873
      %v4875 = vpop.f32.mrf.mxu0
      %v4876 = vadd.f32 %v4683, %v4875
      %v4877 = vpop.f32.mrf.mxu0
      %v4878 = vadd.f32 %v4685, %v4877
      %v4879 = vpop.f32.mrf.mxu0
      %v4880 = vadd.f32 %v4687, %v4879
      %4881 = vmatprep.mubr.bf16.mxu0 %v746
      %4882 = vmatmul.mubr.bf16.gmra.mxu0 %v745
      %v4883 = vpop.f32.mrf.mxu0
      %v4884 = vadd.f32 %v4691, %v4883
      %v4885 = vpop.f32.mrf.mxu0
      %v4886 = vadd.f32 %v4693, %v4885
      %v4887 = vpop.f32.mrf.mxu0
      %v4888 = vadd.f32 %v4695, %v4887
      %v4889 = vpop.f32.mrf.mxu0
      %v4890 = vadd.f32 %v4697, %v4889
      %4891 = vmatprep.mubr.bf16.mxu0 %v757
      %4892 = vmatmul.mubr.bf16.gmra.mxu0 %v756
      %v4893 = vpop.f32.mrf.mxu0
      %v4894 = vadd.f32 %v4701, %v4893
      %v4895 = vpop.f32.mrf.mxu0
      %v4896 = vadd.f32 %v4703, %v4895
      %v4897 = vpop.f32.mrf.mxu0
      %v4898 = vadd.f32 %v4705, %v4897
      %v4899 = vpop.f32.mrf.mxu0
      %v4900 = vadd.f32 %v4707, %v4899
      %4901 = vmatprep.mubr.bf16.mxu0 %v768
      %4902 = vmatmul.mubr.bf16.gmra.mxu0 %v767
      %v4903 = vpop.f32.mrf.mxu0
      %v4904 = vadd.f32 %v4711, %v4903
      %v4905 = vpop.f32.mrf.mxu0
      %v4906 = vadd.f32 %v4713, %v4905
      %v4907 = vpop.f32.mrf.mxu0
      %v4908 = vadd.f32 %v4715, %v4907
      %v4909 = vpop.f32.mrf.mxu0
      %v4910 = vadd.f32 %v4717, %v4909
      %4911 = vmatprep.mubr.bf16.mxu0 %v779
      %4912 = vmatmul.mubr.bf16.gmra.mxu0 %v778
      %v4913 = vpop.f32.mrf.mxu0
      %v4914 = vadd.f32 %v4721, %v4913
      %v4915 = vpop.f32.mrf.mxu0
      %v4916 = vadd.f32 %v4723, %v4915
      %v4917 = vpop.f32.mrf.mxu0
      %v4918 = vadd.f32 %v4725, %v4917
      %v4919 = vpop.f32.mrf.mxu0
      %v4920 = vadd.f32 %v4727, %v4919
      %4921 = vmatprep.mubr.bf16.mxu0 %v790
      %4922 = vmatmul.mubr.bf16.gmra.mxu0 %v789
      %v4923 = vpop.f32.mrf.mxu0
      %v4924 = vadd.f32 %v4731, %v4923
      %v4925 = vpop.f32.mrf.mxu0
      %v4926 = vadd.f32 %v4733, %v4925
      %v4927 = vpop.f32.mrf.mxu0
      %v4928 = vadd.f32 %v4735, %v4927
      %v4929 = vpop.f32.mrf.mxu0
      %v4930 = vadd.f32 %v4737, %v4929
      %4931 = vmatprep.mubr.bf16.mxu0 %v801
      %4932 = vmatmul.mubr.bf16.gmra.mxu0 %v800
      %v4933 = vpop.f32.mrf.mxu0
      %v4934 = vadd.f32 %v4741, %v4933
      %v4935 = vpop.f32.mrf.mxu0
      %v4936 = vadd.f32 %v4743, %v4935
      %v4937 = vpop.f32.mrf.mxu0
      %v4938 = vadd.f32 %v4745, %v4937
      %v4939 = vpop.f32.mrf.mxu0
      %v4940 = vadd.f32 %v4747, %v4939
      %4941 = vmatprep.mubr.bf16.mxu0 %v812
      %4942 = vmatmul.mubr.bf16.gmra.mxu0 %v811
      %v4943 = vpop.f32.mrf.mxu0
      %v4944 = vadd.f32 %v4751, %v4943
      %v4945 = vpop.f32.mrf.mxu0
      %v4946 = vadd.f32 %v4753, %v4945
      %v4947 = vpop.f32.mrf.mxu0
      %v4948 = vadd.f32 %v4755, %v4947
      %v4949 = vpop.f32.mrf.mxu0
      %v4950 = vadd.f32 %v4757, %v4949
      %4951 = vdwg.mxu0
      %4952 = vmatprep.subr.bf16.mxu0 0
      %4953 = vmatpush1.bf16.msra.mxu0 0
      %4954 = vmatprep.subr.bf16.mxu0 0
      %4955 = vmatpush1.bf16.msra.mxu0 0
      %4956 = vmatprep.subr.bf16.mxu0 0
      %4957 = vmatpush1.bf16.msra.mxu0 0
      %4958 = vmatprep.subr.bf16.mxu0 0
      %4959 = vmatpush1.bf16.msra.mxu0 0
      %4960 = vmatprep.subr.bf16.mxu0 0
      %4961 = vmatpush1.bf16.msra.mxu0 0
      %4962 = vmatprep.subr.bf16.mxu0 0
      %4963 = vmatpush1.bf16.msra.mxu0 0
      %4964 = vmatprep.subr.bf16.mxu0 0
      %4965 = vmatpush1.bf16.msra.mxu0 0
      %4966 = vmatprep.subr.bf16.mxu0 %v2455
      %4967 = vmatpush1.bf16.msra.mxu0 %v2454
      %4968 = vmatprep.subr.bf16.mxu0 0
      %4969 = vmatpush2.bf16.msra.mxu0 0
      %4970 = vmatprep.subr.bf16.mxu0 0
      %4971 = vmatpush2.bf16.msra.mxu0 0
      %4972 = vmatprep.subr.bf16.mxu0 0
      %4973 = vmatpush2.bf16.msra.mxu0 0
      %4974 = vmatprep.subr.bf16.mxu0 0
      %4975 = vmatpush2.bf16.msra.mxu0 0
      %4976 = vmatprep.subr.bf16.mxu0 0
      %4977 = vmatpush2.bf16.msra.mxu0 0
      %4978 = vmatprep.subr.bf16.mxu0 0
      %4979 = vmatpush2.bf16.msra.mxu0 0
      %4980 = vmatprep.subr.bf16.mxu0 0
      %4981 = vmatpush2.bf16.msra.mxu0 0
      %4982 = vmatprep.subr.bf16.mxu0 0
      %4983 = vmatpush2.bf16.msra.mxu0 0
      %4984 = vmatprep.mubr.bf16.mxu0 0
      %4985 = vmatmul.mubr.bf16.gmra.mxu0 %v2782
      %v4986 = vpop.f32.mrf.mxu0
      %v4987 = vadd.f32 %v4794, %v4986
      %v4988 = vpop.f32.mrf.mxu0
      %v4989 = vadd.f32 %v4796, %v4988
      %v4990 = vpop.f32.mrf.mxu0
      %v4991 = vadd.f32 %v4798, %v4990
      %v4992 = vpop.f32.mrf.mxu0
      %v4993 = vadd.f32 %v4800, %v4992
      %4994 = vmatprep.mubr.bf16.mxu0 0
      %4995 = vmatmul.mubr.bf16.gmra.mxu0 %v2785
      %v4996 = vpop.f32.mrf.mxu0
      %v4997 = vadd.f32 %v4804, %v4996
      %v4998 = vpop.f32.mrf.mxu0
      %v4999 = vadd.f32 %v4806, %v4998
      %v5000 = vpop.f32.mrf.mxu0
      %v5001 = vadd.f32 %v4808, %v5000
      %v5002 = vpop.f32.mrf.mxu0
      %v5003 = vadd.f32 %v4810, %v5002
      %5004 = vmatprep.mubr.bf16.mxu0 0
      %5005 = vmatmul.mubr.bf16.gmra.mxu0 %v2788
      %v5006 = vpop.f32.mrf.mxu0
      %v5007 = vadd.f32 %v4814, %v5006
      %v5008 = vpop.f32.mrf.mxu0
      %v5009 = vadd.f32 %v4816, %v5008
      %v5010 = vpop.f32.mrf.mxu0
      %v5011 = vadd.f32 %v4818, %v5010
      %v5012 = vpop.f32.mrf.mxu0
      %v5013 = vadd.f32 %v4820, %v5012
      %5014 = vmatprep.mubr.bf16.mxu0 0
      %5015 = vmatmul.mubr.bf16.gmra.mxu0 %v2791
      %v5016 = vpop.f32.mrf.mxu0
      %v5017 = vadd.f32 %v4824, %v5016
      %v5018 = vpop.f32.mrf.mxu0
      %v5019 = vadd.f32 %v4826, %v5018
      %v5020 = vpop.f32.mrf.mxu0
      %v5021 = vadd.f32 %v4828, %v5020
      %v5022 = vpop.f32.mrf.mxu0
      %v5023 = vadd.f32 %v4830, %v5022
      %5024 = vmatprep.mubr.bf16.mxu0 0
      %5025 = vmatmul.mubr.bf16.gmra.mxu0 %v2794
      %v5026 = vpop.f32.mrf.mxu0
      %v5027 = vadd.f32 %v4834, %v5026
      %v5028 = vpop.f32.mrf.mxu0
      %v5029 = vadd.f32 %v4836, %v5028
      %v5030 = vpop.f32.mrf.mxu0
      %v5031 = vadd.f32 %v4838, %v5030
      %v5032 = vpop.f32.mrf.mxu0
      %v5033 = vadd.f32 %v4840, %v5032
      %5034 = vmatprep.mubr.bf16.mxu0 0
      %5035 = vmatmul.mubr.bf16.gmra.mxu0 %v2797
      %v5036 = vpop.f32.mrf.mxu0
      %v5037 = vadd.f32 %v4844, %v5036
      %v5038 = vpop.f32.mrf.mxu0
      %v5039 = vadd.f32 %v4846, %v5038
      %v5040 = vpop.f32.mrf.mxu0
      %v5041 = vadd.f32 %v4848, %v5040
      %v5042 = vpop.f32.mrf.mxu0
      %v5043 = vadd.f32 %v4850, %v5042
      %5044 = vmatprep.mubr.bf16.mxu0 0
      %5045 = vmatmul.mubr.bf16.gmra.mxu0 %v2800
      %v5046 = vpop.f32.mrf.mxu0
      %v5047 = vadd.f32 %v4854, %v5046
      %v5048 = vpop.f32.mrf.mxu0
      %v5049 = vadd.f32 %v4856, %v5048
      %v5050 = vpop.f32.mrf.mxu0
      %v5051 = vadd.f32 %v4858, %v5050
      %v5052 = vpop.f32.mrf.mxu0
      %v5053 = vadd.f32 %v4860, %v5052
      %5054 = vmatprep.mubr.bf16.mxu0 0
      %5055 = vmatmul.mubr.bf16.gmra.mxu0 %v2803
      %v5056 = vpop.f32.mrf.mxu0
      %v5057 = vadd.f32 %v4864, %v5056
      %v5058 = vpop.f32.mrf.mxu0
      %v5059 = vadd.f32 %v4866, %v5058
      %v5060 = vpop.f32.mrf.mxu0
      %v5061 = vadd.f32 %v4868, %v5060
      %v5062 = vpop.f32.mrf.mxu0
      %v5063 = vadd.f32 %v4870, %v5062
      %5064 = vmatprep.mubr.bf16.mxu0 0
      %5065 = vmatmul.mubr.bf16.gmra.mxu0 %v2806
      %v5066 = vpop.f32.mrf.mxu0
      %v5067 = vadd.f32 %v4874, %v5066
      %v5068 = vpop.f32.mrf.mxu0
      %v5069 = vadd.f32 %v4876, %v5068
      %v5070 = vpop.f32.mrf.mxu0
      %v5071 = vadd.f32 %v4878, %v5070
      %v5072 = vpop.f32.mrf.mxu0
      %v5073 = vadd.f32 %v4880, %v5072
      %5074 = vmatprep.mubr.bf16.mxu0 0
      %5075 = vmatmul.mubr.bf16.gmra.mxu0 %v2809
      %v5076 = vpop.f32.mrf.mxu0
      %v5077 = vadd.f32 %v4884, %v5076
      %v5078 = vpop.f32.mrf.mxu0
      %v5079 = vadd.f32 %v4886, %v5078
      %v5080 = vpop.f32.mrf.mxu0
      %v5081 = vadd.f32 %v4888, %v5080
      %v5082 = vpop.f32.mrf.mxu0
      %v5083 = vadd.f32 %v4890, %v5082
      %5084 = vmatprep.mubr.bf16.mxu0 0
      %5085 = vmatmul.mubr.bf16.gmra.mxu0 %v2812
      %v5086 = vpop.f32.mrf.mxu0
      %v5087 = vadd.f32 %v4894, %v5086
      %v5088 = vpop.f32.mrf.mxu0
      %v5089 = vadd.f32 %v4896, %v5088
      %v5090 = vpop.f32.mrf.mxu0
      %v5091 = vadd.f32 %v4898, %v5090
      %v5092 = vpop.f32.mrf.mxu0
      %v5093 = vadd.f32 %v4900, %v5092
      %5094 = vmatprep.mubr.bf16.mxu0 0
      %5095 = vmatmul.mubr.bf16.gmra.mxu0 %v2815
      %v5096 = vpop.f32.mrf.mxu0
      %v5097 = vadd.f32 %v4904, %v5096
      %v5098 = vpop.f32.mrf.mxu0
      %v5099 = vadd.f32 %v4906, %v5098
      %v5100 = vpop.f32.mrf.mxu0
      %v5101 = vadd.f32 %v4908, %v5100
      %v5102 = vpop.f32.mrf.mxu0
      %v5103 = vadd.f32 %v4910, %v5102
      %5104 = vmatprep.mubr.bf16.mxu0 0
      %5105 = vmatmul.mubr.bf16.gmra.mxu0 %v2818
      %v5106 = vpop.f32.mrf.mxu0
      %v5107 = vadd.f32 %v4914, %v5106
      %v5108 = vpop.f32.mrf.mxu0
      %v5109 = vadd.f32 %v4916, %v5108
      %v5110 = vpop.f32.mrf.mxu0
      %v5111 = vadd.f32 %v4918, %v5110
      %v5112 = vpop.f32.mrf.mxu0
      %v5113 = vadd.f32 %v4920, %v5112
      %5114 = vmatprep.mubr.bf16.mxu0 0
      %5115 = vmatmul.mubr.bf16.gmra.mxu0 %v2821
      %v5116 = vpop.f32.mrf.mxu0
      %v5117 = vadd.f32 %v4924, %v5116
      %v5118 = vpop.f32.mrf.mxu0
      %v5119 = vadd.f32 %v4926, %v5118
      %v5120 = vpop.f32.mrf.mxu0
      %v5121 = vadd.f32 %v4928, %v5120
      %v5122 = vpop.f32.mrf.mxu0
      %v5123 = vadd.f32 %v4930, %v5122
      %5124 = vmatprep.mubr.bf16.mxu0 0
      %5125 = vmatmul.mubr.bf16.gmra.mxu0 %v2824
      %v5126 = vpop.f32.mrf.mxu0
      %v5127 = vadd.f32 %v4934, %v5126
      %v5128 = vpop.f32.mrf.mxu0
      %v5129 = vadd.f32 %v4936, %v5128
      %v5130 = vpop.f32.mrf.mxu0
      %v5131 = vadd.f32 %v4938, %v5130
      %v5132 = vpop.f32.mrf.mxu0
      %v5133 = vadd.f32 %v4940, %v5132
      %5134 = vmatprep.mubr.bf16.mxu0 0
      %5135 = vmatmul.mubr.bf16.gmra.mxu0 %v2827
      %v5136 = vpop.f32.mrf.mxu0
      %v5137 = vadd.f32 %v4944, %v5136
      %v5138 = vpop.f32.mrf.mxu0
      %v5139 = vadd.f32 %v4946, %v5138
      %v5140 = vpop.f32.mrf.mxu0
      %v5141 = vadd.f32 %v4948, %v5140
      %v5142 = vpop.f32.mrf.mxu0
      %v5143 = vadd.f32 %v4950, %v5142
      %5144 = vdwg.mxu0
      %v5145 = vmax.f32 %v3829, 0.0
      %v5146 = vmax.f32 %v3831, 0.0
      %v5147 = vmax.f32 %v4987, 0.0
      %v5148 = vmax.f32 %v4989, 0.0
      %v5149 = vmax.f32 %v3833, 0.0
      %v5150 = vmax.f32 %v3835, 0.0
      %v5151 = vmax.f32 %v4991, 0.0
      %v5152 = vmax.f32 %v4993, 0.0
      %v5153 = vmax.f32 %v3839, 0.0
      %v5154 = vmax.f32 %v3841, 0.0
      %v5155 = vmax.f32 %v4997, 0.0
      %v5156 = vmax.f32 %v4999, 0.0
      %v5157 = vmax.f32 %v3843, 0.0
      %v5158 = vmax.f32 %v3845, 0.0
      %v5159 = vmax.f32 %v5001, 0.0
      %v5160 = vmax.f32 %v5003, 0.0
      %v5161 = vmax.f32 %v3849, 0.0
      %v5162 = vmax.f32 %v3851, 0.0
      %v5163 = vmax.f32 %v5007, 0.0
      %v5164 = vmax.f32 %v5009, 0.0
      %v5165 = vmax.f32 %v3853, 0.0
      %v5166 = vmax.f32 %v3855, 0.0
      %v5167 = vmax.f32 %v5011, 0.0
      %v5168 = vmax.f32 %v5013, 0.0
      %v5169 = vmax.f32 %v3859, 0.0
      %v5170 = vmax.f32 %v3861, 0.0
      %v5171 = vmax.f32 %v5017, 0.0
      %v5172 = vmax.f32 %v5019, 0.0
      %v5173 = vmax.f32 %v3863, 0.0
      %v5174 = vmax.f32 %v3865, 0.0
      %v5175 = vmax.f32 %v5021, 0.0
      %v5176 = vmax.f32 %v5023, 0.0
      %v5177 = vmax.f32 %v3869, 0.0
      %v5178 = vmax.f32 %v3871, 0.0
      %v5179 = vmax.f32 %v5027, 0.0
      %v5180 = vmax.f32 %v5029, 0.0
      %v5181 = vmax.f32 %v3873, 0.0
      %v5182 = vmax.f32 %v3875, 0.0
      %v5183 = vmax.f32 %v5031, 0.0
      %v5184 = vmax.f32 %v5033, 0.0
      %v5185 = vmax.f32 %v3879, 0.0
      %v5186 = vmax.f32 %v3881, 0.0
      %v5187 = vmax.f32 %v5037, 0.0
      %v5188 = vmax.f32 %v5039, 0.0
      %v5189 = vmax.f32 %v3883, 0.0
      %v5190 = vmax.f32 %v3885, 0.0
      %v5191 = vmax.f32 %v5041, 0.0
      %v5192 = vmax.f32 %v5043, 0.0
      %v5193 = vmax.f32 %v3889, 0.0
      %v5194 = vmax.f32 %v3891, 0.0
      %v5195 = vmax.f32 %v5047, 0.0
      %v5196 = vmax.f32 %v5049, 0.0
      %v5197 = vmax.f32 %v3893, 0.0
      %v5198 = vmax.f32 %v3895, 0.0
      %v5199 = vmax.f32 %v5051, 0.0
      %v5200 = vmax.f32 %v5053, 0.0
      %v5201 = vmax.f32 %v3899, 0.0
      %v5202 = vmax.f32 %v3901, 0.0
      %v5203 = vmax.f32 %v5057, 0.0
      %v5204 = vmax.f32 %v5059, 0.0
      %v5205 = vmax.f32 %v3903, 0.0
      %v5206 = vmax.f32 %v3905, 0.0
      %v5207 = vmax.f32 %v5061, 0.0
      %v5208 = vmax.f32 %v5063, 0.0
      %v5209 = vmax.f32 %v3909, 0.0
      %v5210 = vmax.f32 %v3911, 0.0
      %v5211 = vmax.f32 %v5067, 0.0
      %v5212 = vmax.f32 %v5069, 0.0
      %v5213 = vmax.f32 %v3913, 0.0
      %v5214 = vmax.f32 %v3915, 0.0
      %v5215 = vmax.f32 %v5071, 0.0
      %v5216 = vmax.f32 %v5073, 0.0
      %v5217 = vmax.f32 %v3919, 0.0
      %v5218 = vmax.f32 %v3921, 0.0
      %v5219 = vmax.f32 %v5077, 0.0
      %v5220 = vmax.f32 %v5079, 0.0
      %v5221 = vmax.f32 %v3923, 0.0
      %v5222 = vmax.f32 %v3925, 0.0
      %v5223 = vmax.f32 %v5081, 0.0
      %v5224 = vmax.f32 %v5083, 0.0
      %v5225 = vmax.f32 %v3929, 0.0
      %v5226 = vmax.f32 %v3931, 0.0
      %v5227 = vmax.f32 %v5087, 0.0
      %v5228 = vmax.f32 %v5089, 0.0
      %v5229 = vmax.f32 %v3933, 0.0
      %v5230 = vmax.f32 %v3935, 0.0
      %v5231 = vmax.f32 %v5091, 0.0
      %v5232 = vmax.f32 %v5093, 0.0
      %v5233 = vmax.f32 %v3939, 0.0
      %v5234 = vmax.f32 %v3941, 0.0
      %v5235 = vmax.f32 %v5097, 0.0
      %v5236 = vmax.f32 %v5099, 0.0
      %v5237 = vmax.f32 %v3943, 0.0
      %v5238 = vmax.f32 %v3945, 0.0
      %v5239 = vmax.f32 %v5101, 0.0
      %v5240 = vmax.f32 %v5103, 0.0
      %v5241 = vmax.f32 %v3949, 0.0
      %v5242 = vmax.f32 %v3951, 0.0
      %v5243 = vmax.f32 %v5107, 0.0
      %v5244 = vmax.f32 %v5109, 0.0
      %v5245 = vmax.f32 %v3953, 0.0
      %v5246 = vmax.f32 %v3955, 0.0
      %v5247 = vmax.f32 %v5111, 0.0
      %v5248 = vmax.f32 %v5113, 0.0
      %v5249 = vmax.f32 %v3959, 0.0
      %v5250 = vmax.f32 %v3961, 0.0
      %v5251 = vmax.f32 %v5117, 0.0
      %v5252 = vmax.f32 %v5119, 0.0
      %v5253 = vmax.f32 %v3963, 0.0
      %v5254 = vmax.f32 %v3965, 0.0
      %v5255 = vmax.f32 %v5121, 0.0
      %v5256 = vmax.f32 %v5123, 0.0
      %v5257 = vmax.f32 %v3969, 0.0
      %v5258 = vmax.f32 %v3971, 0.0
      %v5259 = vmax.f32 %v5127, 0.0
      %v5260 = vmax.f32 %v5129, 0.0
      %v5261 = vmax.f32 %v3973, 0.0
      %v5262 = vmax.f32 %v3975, 0.0
      %v5263 = vmax.f32 %v5131, 0.0
      %v5264 = vmax.f32 %v5133, 0.0
      %v5265 = vmax.f32 %v3979, 0.0
      %v5266 = vmax.f32 %v3981, 0.0
      %v5267 = vmax.f32 %v5137, 0.0
      %v5268 = vmax.f32 %v5139, 0.0
      %v5269 = vmax.f32 %v3983, 0.0
      %v5270 = vmax.f32 %v3985, 0.0
      %v5271 = vmax.f32 %v5141, 0.0
      %v5272 = vmax.f32 %v5143, 0.0
      %v5273 = vpack.c.bf16 %v5149, %v5145
      %v5274 = vpack.c.bf16 %v5150, %v5146
      %v5275 = vpack.c.bf16 %v5151, %v5147
      %v5276 = vpack.c.bf16 %v5152, %v5148
      %v5277 = vpack.c.bf16 %v5157, %v5153
      %v5278 = vpack.c.bf16 %v5158, %v5154
      %v5279 = vpack.c.bf16 %v5159, %v5155
      %v5280 = vpack.c.bf16 %v5160, %v5156
      %v5281 = vpack.c.bf16 %v5165, %v5161
      %v5282 = vpack.c.bf16 %v5166, %v5162
      %v5283 = vpack.c.bf16 %v5167, %v5163
      %v5284 = vpack.c.bf16 %v5168, %v5164
      %v5285 = vpack.c.bf16 %v5173, %v5169
      %v5286 = vpack.c.bf16 %v5174, %v5170
      %v5287 = vpack.c.bf16 %v5175, %v5171
      %v5288 = vpack.c.bf16 %v5176, %v5172
      %v5289 = vpack.c.bf16 %v5181, %v5177
      %v5290 = vpack.c.bf16 %v5182, %v5178
      %v5291 = vpack.c.bf16 %v5183, %v5179
      %v5292 = vpack.c.bf16 %v5184, %v5180
      %v5293 = vpack.c.bf16 %v5189, %v5185
      %v5294 = vpack.c.bf16 %v5190, %v5186
      %v5295 = vpack.c.bf16 %v5191, %v5187
      %v5296 = vpack.c.bf16 %v5192, %v5188
      %v5297 = vpack.c.bf16 %v5197, %v5193
      %v5298 = vpack.c.bf16 %v5198, %v5194
      %v5299 = vpack.c.bf16 %v5199, %v5195
      %v5300 = vpack.c.bf16 %v5200, %v5196
      %v5301 = vpack.c.bf16 %v5205, %v5201
      %v5302 = vpack.c.bf16 %v5206, %v5202
      %v5303 = vpack.c.bf16 %v5207, %v5203
      %v5304 = vpack.c.bf16 %v5208, %v5204
      %v5305 = vpack.c.bf16 %v5213, %v5209
      %v5306 = vpack.c.bf16 %v5214, %v5210
      %v5307 = vpack.c.bf16 %v5215, %v5211
      %v5308 = vpack.c.bf16 %v5216, %v5212
      %v5309 = vpack.c.bf16 %v5221, %v5217
      %v5310 = vpack.c.bf16 %v5222, %v5218
      %v5311 = vpack.c.bf16 %v5223, %v5219
      %v5312 = vpack.c.bf16 %v5224, %v5220
      %v5313 = vpack.c.bf16 %v5229, %v5225
      %v5314 = vpack.c.bf16 %v5230, %v5226
      %v5315 = vpack.c.bf16 %v5231, %v5227
      %v5316 = vpack.c.bf16 %v5232, %v5228
      %v5317 = vpack.c.bf16 %v5237, %v5233
      %v5318 = vpack.c.bf16 %v5238, %v5234
      %v5319 = vpack.c.bf16 %v5239, %v5235
      %v5320 = vpack.c.bf16 %v5240, %v5236
      %v5321 = vpack.c.bf16 %v5245, %v5241
      %v5322 = vpack.c.bf16 %v5246, %v5242
      %v5323 = vpack.c.bf16 %v5247, %v5243
      %v5324 = vpack.c.bf16 %v5248, %v5244
      %v5325 = vpack.c.bf16 %v5253, %v5249
      %v5326 = vpack.c.bf16 %v5254, %v5250
      %v5327 = vpack.c.bf16 %v5255, %v5251
      %v5328 = vpack.c.bf16 %v5256, %v5252
      %v5329 = vpack.c.bf16 %v5261, %v5257
      %v5330 = vpack.c.bf16 %v5262, %v5258
      %v5331 = vpack.c.bf16 %v5263, %v5259
      %v5332 = vpack.c.bf16 %v5264, %v5260
      %v5333 = vpack.c.bf16 %v5269, %v5265
      %v5334 = vpack.c.bf16 %v5270, %v5266
      %v5335 = vpack.c.bf16 %v5271, %v5267
      %v5336 = vpack.c.bf16 %v5272, %v5268
      %v5337 = vld [vmem:[%s3] sm:$0xff]
      %v5338 = vld [vmem:[%s3 + $0x8] sm:$0xff]
      %v5339 = vld [vmem:[%s3 + $0x10] sm:$0xff]
      %v5340 = vld [vmem:[%s3 + $0x18] sm:$0xff]
      %v5341 = vld [vmem:[%s3 + $0x20] sm:$0xff]
      %v5342 = vld [vmem:[%s3 + $0x28] sm:$0xff]
      %v5343 = vld [vmem:[%s3 + $0x30] sm:$0xff]
      %v5344 = vld [vmem:[%s3 + $0x38] sm:$0xff]
      %v5345 = vld [vmem:[%s3 + $0x40] sm:$0xff]
      %v5346 = vld [vmem:[%s3 + $0x48] sm:$0xff]
      %v5347 = vld [vmem:[%s3 + $0x50] sm:$0xff]
      %v5348 = vld [vmem:[%s3 + $0x58] sm:$0xff]
      %v5349 = vld [vmem:[%s3 + $0x60] sm:$0xff]
      %v5350 = vld [vmem:[%s3 + $0x68] sm:$0xff]
      %v5351 = vld [vmem:[%s3 + $0x70] sm:$0xff]
      %v5352 = vld [vmem:[%s3 + $0x78] sm:$0xff]
      %v5353 = vld [vmem:[%s3 + $0x80] sm:$0xff]
      %v5354 = vld [vmem:[%s3 + $0x88] sm:$0xff]
      %v5355 = vld [vmem:[%s3 + $0x90] sm:$0xff]
      %v5356 = vld [vmem:[%s3 + $0x98] sm:$0xff]
      %v5357 = vld [vmem:[%s3 + $0xa0] sm:$0xff]
      %v5358 = vld [vmem:[%s3 + $0xa8] sm:$0xff]
      %v5359 = vld [vmem:[%s3 + $0xb0] sm:$0xff]
      %v5360 = vld [vmem:[%s3 + $0xb8] sm:$0xff]
      %v5361 = vld [vmem:[%s3 + $0xc0] sm:$0xff]
      %v5362 = vld [vmem:[%s3 + $0xc8] sm:$0xff]
      %v5363 = vld [vmem:[%s3 + $0xd0] sm:$0xff]
      %v5364 = vld [vmem:[%s3 + $0xd8] sm:$0xff]
      %v5365 = vld [vmem:[%s3 + $0xe0] sm:$0xff]
      %v5366 = vld [vmem:[%s3 + $0xe8] sm:$0xff]
      %v5367 = vld [vmem:[%s3 + $0xf0] sm:$0xff]
      %v5368 = vld [vmem:[%s3 + $0xf8] sm:$0xff]
      %v5369 = vld [vmem:[%s3 + $0x100] sm:$0xff]
      %v5370 = vld [vmem:[%s3 + $0x108] sm:$0xff]
      %v5371 = vld [vmem:[%s3 + $0x110] sm:$0xff]
      %v5372 = vld [vmem:[%s3 + $0x118] sm:$0xff]
      %v5373 = vld [vmem:[%s3 + $0x120] sm:$0xff]
      %v5374 = vld [vmem:[%s3 + $0x128] sm:$0xff]
      %v5375 = vld [vmem:[%s3 + $0x130] sm:$0xff]
      %v5376 = vld [vmem:[%s3 + $0x138] sm:$0xff]
      %v5377 = vld [vmem:[%s3 + $0x140] sm:$0xff]
      %v5378 = vld [vmem:[%s3 + $0x148] sm:$0xff]
      %v5379 = vld [vmem:[%s3 + $0x150] sm:$0xff]
      %v5380 = vld [vmem:[%s3 + $0x158] sm:$0xff]
      %v5381 = vld [vmem:[%s3 + $0x160] sm:$0xff]
      %v5382 = vld [vmem:[%s3 + $0x168] sm:$0xff]
      %v5383 = vld [vmem:[%s3 + $0x170] sm:$0xff]
      %v5384 = vld [vmem:[%s3 + $0x178] sm:$0xff]
      %v5385 = vld [vmem:[%s3 + $0x180] sm:$0xff]
      %v5386 = vld [vmem:[%s3 + $0x188] sm:$0xff]
      %v5387 = vld [vmem:[%s3 + $0x190] sm:$0xff]
      %v5388 = vld [vmem:[%s3 + $0x198] sm:$0xff]
      %v5389 = vld [vmem:[%s3 + $0x1a0] sm:$0xff]
      %v5390 = vld [vmem:[%s3 + $0x1a8] sm:$0xff]
      %v5391 = vld [vmem:[%s3 + $0x1b0] sm:$0xff]
      %v5392 = vld [vmem:[%s3 + $0x1b8] sm:$0xff]
      %v5393 = vld [vmem:[%s3 + $0x1c0] sm:$0xff]
      %v5394 = vld [vmem:[%s3 + $0x1c8] sm:$0xff]
      %v5395 = vld [vmem:[%s3 + $0x1d0] sm:$0xff]
      %v5396 = vld [vmem:[%s3 + $0x1d8] sm:$0xff]
      %v5397 = vld [vmem:[%s3 + $0x1e0] sm:$0xff]
      %v5398 = vld [vmem:[%s3 + $0x1e8] sm:$0xff]
      %v5399 = vld [vmem:[%s3 + $0x1f0] sm:$0xff]
      %v5400 = vld [vmem:[%s3 + $0x1f8] sm:$0xff]
      %v5401 = vld [vmem:[%s4] sm:$0x3]
      %v5403 = vlaneseq
      %v5404 = vshrl.u32 %v5403, 7
      %v5405 = vsub.s32 0, %v5404
      %v5406 = vrot.slane %v5401, %v5405
      %v5407 = vlaneseq
      %v5408 = vshrl.u32 %v5407, 7
      %v5409 = vsub.s32 1, %v5408
      %v5410 = vrot.slane %v5401, %v5409
      %v5477 = vunpack.c.l.b16 %v5337
      %v5478 = vunpack.c.h.b16 %v5337
      %v5479 = vunpack.c.l.b16 %v5338
      %v5480 = vunpack.c.h.b16 %v5338
      %v5481 = vunpack.c.l.b16 %v5339
      %v5482 = vunpack.c.h.b16 %v5339
      %v5483 = vunpack.c.l.b16 %v5340
      %v5484 = vunpack.c.h.b16 %v5340
      %v5485 = vunpack.c.l.b16 %v5341
      %v5486 = vunpack.c.h.b16 %v5341
      %v5487 = vunpack.c.l.b16 %v5342
      %v5488 = vunpack.c.h.b16 %v5342
      %v5489 = vunpack.c.l.b16 %v5343
      %v5490 = vunpack.c.h.b16 %v5343
      %v5491 = vunpack.c.l.b16 %v5344
      %v5492 = vunpack.c.h.b16 %v5344
      %v5493 = vunpack.c.l.b16 %v5345
      %v5494 = vunpack.c.h.b16 %v5345
      %v5495 = vunpack.c.l.b16 %v5346
      %v5496 = vunpack.c.h.b16 %v5346
      %v5497 = vunpack.c.l.b16 %v5347
      %v5498 = vunpack.c.h.b16 %v5347
      %v5499 = vunpack.c.l.b16 %v5348
      %v5500 = vunpack.c.h.b16 %v5348
      %v5501 = vunpack.c.l.b16 %v5349
      %v5502 = vunpack.c.h.b16 %v5349
      %v5503 = vunpack.c.l.b16 %v5350
      %v5504 = vunpack.c.h.b16 %v5350
      %v5505 = vunpack.c.l.b16 %v5351
      %v5506 = vunpack.c.h.b16 %v5351
      %v5507 = vunpack.c.l.b16 %v5352
      %v5508 = vunpack.c.h.b16 %v5352
      %v5509 = vunpack.c.l.b16 %v5353
      %v5510 = vunpack.c.h.b16 %v5353
      %v5511 = vunpack.c.l.b16 %v5354
      %v5512 = vunpack.c.h.b16 %v5354
      %v5513 = vunpack.c.l.b16 %v5355
      %v5514 = vunpack.c.h.b16 %v5355
      %v5515 = vunpack.c.l.b16 %v5356
      %v5516 = vunpack.c.h.b16 %v5356
      %v5517 = vunpack.c.l.b16 %v5357
      %v5518 = vunpack.c.h.b16 %v5357
      %v5519 = vunpack.c.l.b16 %v5358
      %v5520 = vunpack.c.h.b16 %v5358
      %v5521 = vunpack.c.l.b16 %v5359
      %v5522 = vunpack.c.h.b16 %v5359
      %v5523 = vunpack.c.l.b16 %v5360
      %v5524 = vunpack.c.h.b16 %v5360
      %v5525 = vunpack.c.l.b16 %v5361
      %v5526 = vunpack.c.h.b16 %v5361
      %v5527 = vunpack.c.l.b16 %v5362
      %v5528 = vunpack.c.h.b16 %v5362
      %v5529 = vunpack.c.l.b16 %v5363
      %v5530 = vunpack.c.h.b16 %v5363
      %v5531 = vunpack.c.l.b16 %v5364
      %v5532 = vunpack.c.h.b16 %v5364
      %v5533 = vunpack.c.l.b16 %v5365
      %v5534 = vunpack.c.h.b16 %v5365
      %v5535 = vunpack.c.l.b16 %v5366
      %v5536 = vunpack.c.h.b16 %v5366
      %v5537 = vunpack.c.l.b16 %v5367
      %v5538 = vunpack.c.h.b16 %v5367
      %v5539 = vunpack.c.l.b16 %v5368
      %v5540 = vunpack.c.h.b16 %v5368
      %v5541 = vunpack.c.l.b16 %v5369
      %v5542 = vunpack.c.h.b16 %v5369
      %v5543 = vunpack.c.l.b16 %v5370
      %v5544 = vunpack.c.h.b16 %v5370
      %v5545 = vunpack.c.l.b16 %v5371
      %v5546 = vunpack.c.h.b16 %v5371
      %v5547 = vunpack.c.l.b16 %v5372
      %v5548 = vunpack.c.h.b16 %v5372
      %v5549 = vunpack.c.l.b16 %v5373
      %v5550 = vunpack.c.h.b16 %v5373
      %v5551 = vunpack.c.l.b16 %v5374
      %v5552 = vunpack.c.h.b16 %v5374
      %v5553 = vunpack.c.l.b16 %v5375
      %v5554 = vunpack.c.h.b16 %v5375
      %v5555 = vunpack.c.l.b16 %v5376
      %v5556 = vunpack.c.h.b16 %v5376
      %v5557 = vunpack.c.l.b16 %v5377
      %v5558 = vunpack.c.h.b16 %v5377
      %v5559 = vunpack.c.l.b16 %v5378
      %v5560 = vunpack.c.h.b16 %v5378
      %v5561 = vunpack.c.l.b16 %v5379
      %v5562 = vunpack.c.h.b16 %v5379
      %v5563 = vunpack.c.l.b16 %v5380
      %v5564 = vunpack.c.h.b16 %v5380
      %v5565 = vunpack.c.l.b16 %v5381
      %v5566 = vunpack.c.h.b16 %v5381
      %v5567 = vunpack.c.l.b16 %v5382
      %v5568 = vunpack.c.h.b16 %v5382
      %v5569 = vunpack.c.l.b16 %v5383
      %v5570 = vunpack.c.h.b16 %v5383
      %v5571 = vunpack.c.l.b16 %v5384
      %v5572 = vunpack.c.h.b16 %v5384
      %v5573 = vunpack.c.l.b16 %v5385
      %v5574 = vunpack.c.h.b16 %v5385
      %v5575 = vunpack.c.l.b16 %v5386
      %v5576 = vunpack.c.h.b16 %v5386
      %v5577 = vunpack.c.l.b16 %v5387
      %v5578 = vunpack.c.h.b16 %v5387
      %v5579 = vunpack.c.l.b16 %v5388
      %v5580 = vunpack.c.h.b16 %v5388
      %v5581 = vunpack.c.l.b16 %v5389
      %v5582 = vunpack.c.h.b16 %v5389
      %v5583 = vunpack.c.l.b16 %v5390
      %v5584 = vunpack.c.h.b16 %v5390
      %v5585 = vunpack.c.l.b16 %v5391
      %v5586 = vunpack.c.h.b16 %v5391
      %v5587 = vunpack.c.l.b16 %v5392
      %v5588 = vunpack.c.h.b16 %v5392
      %v5589 = vunpack.c.l.b16 %v5393
      %v5590 = vunpack.c.h.b16 %v5393
      %v5591 = vunpack.c.l.b16 %v5394
      %v5592 = vunpack.c.h.b16 %v5394
      %v5593 = vunpack.c.l.b16 %v5395
      %v5594 = vunpack.c.h.b16 %v5395
      %v5595 = vunpack.c.l.b16 %v5396
      %v5596 = vunpack.c.h.b16 %v5396
      %v5597 = vunpack.c.l.b16 %v5397
      %v5598 = vunpack.c.h.b16 %v5397
      %v5599 = vunpack.c.l.b16 %v5398
      %v5600 = vunpack.c.h.b16 %v5398
      %v5601 = vunpack.c.l.b16 %v5399
      %v5602 = vunpack.c.h.b16 %v5399
      %v5603 = vunpack.c.l.b16 %v5400
      %v5604 = vunpack.c.h.b16 %v5400
      %v5605 = vpack.c.b16 %v5479, %v5477
      %v5606 = vpack.c.b16 %v5480, %v5478
      %v5607 = vpack.c.b16 %v5483, %v5481
      %v5608 = vpack.c.b16 %v5484, %v5482
      %v5609 = vpack.c.b16 %v5487, %v5485
      %v5610 = vpack.c.b16 %v5488, %v5486
      %v5611 = vpack.c.b16 %v5491, %v5489
      %v5612 = vpack.c.b16 %v5492, %v5490
      %v5613 = vpack.c.b16 %v5495, %v5493
      %v5614 = vpack.c.b16 %v5496, %v5494
      %v5615 = vpack.c.b16 %v5499, %v5497
      %v5616 = vpack.c.b16 %v5500, %v5498
      %v5617 = vpack.c.b16 %v5503, %v5501
      %v5618 = vpack.c.b16 %v5504, %v5502
      %v5619 = vpack.c.b16 %v5507, %v5505
      %v5620 = vpack.c.b16 %v5508, %v5506
      %v5621 = vpack.c.b16 %v5511, %v5509
      %v5622 = vpack.c.b16 %v5512, %v5510
      %v5623 = vpack.c.b16 %v5515, %v5513
      %v5624 = vpack.c.b16 %v5516, %v5514
      %v5625 = vpack.c.b16 %v5519, %v5517
      %v5626 = vpack.c.b16 %v5520, %v5518
      %v5627 = vpack.c.b16 %v5523, %v5521
      %v5628 = vpack.c.b16 %v5524, %v5522
      %v5629 = vpack.c.b16 %v5527, %v5525
      %v5630 = vpack.c.b16 %v5528, %v5526
      %v5631 = vpack.c.b16 %v5531, %v5529
      %v5632 = vpack.c.b16 %v5532, %v5530
      %v5633 = vpack.c.b16 %v5535, %v5533
      %v5634 = vpack.c.b16 %v5536, %v5534
      %v5635 = vpack.c.b16 %v5539, %v5537
      %v5636 = vpack.c.b16 %v5540, %v5538
      %v5637 = vpack.c.b16 %v5543, %v5541
      %v5638 = vpack.c.b16 %v5544, %v5542
      %v5639 = vpack.c.b16 %v5547, %v5545
      %v5640 = vpack.c.b16 %v5548, %v5546
      %v5641 = vpack.c.b16 %v5551, %v5549
      %v5642 = vpack.c.b16 %v5552, %v5550
      %v5643 = vpack.c.b16 %v5555, %v5553
      %v5644 = vpack.c.b16 %v5556, %v5554
      %v5645 = vpack.c.b16 %v5559, %v5557
      %v5646 = vpack.c.b16 %v5560, %v5558
      %v5647 = vpack.c.b16 %v5563, %v5561
      %v5648 = vpack.c.b16 %v5564, %v5562
      %v5649 = vpack.c.b16 %v5567, %v5565
      %v5650 = vpack.c.b16 %v5568, %v5566
      %v5651 = vpack.c.b16 %v5571, %v5569
      %v5652 = vpack.c.b16 %v5572, %v5570
      %v5653 = vpack.c.b16 %v5575, %v5573
      %v5654 = vpack.c.b16 %v5576, %v5574
      %v5655 = vpack.c.b16 %v5579, %v5577
      %v5656 = vpack.c.b16 %v5580, %v5578
      %v5657 = vpack.c.b16 %v5583, %v5581
      %v5658 = vpack.c.b16 %v5584, %v5582
      %v5659 = vpack.c.b16 %v5587, %v5585
      %v5660 = vpack.c.b16 %v5588, %v5586
      %v5661 = vpack.c.b16 %v5591, %v5589
      %v5662 = vpack.c.b16 %v5592, %v5590
      %v5663 = vpack.c.b16 %v5595, %v5593
      %v5664 = vpack.c.b16 %v5596, %v5594
      %v5665 = vpack.c.b16 %v5599, %v5597
      %v5666 = vpack.c.b16 %v5600, %v5598
      %v5667 = vpack.c.b16 %v5603, %v5601
      %v5668 = vpack.c.b16 %v5604, %v5602
      %5733 = vmatprep.subr.bf16.mxu0 %v5620
      %5734 = vmatpush1.bf16.msra.mxu0 %v5619
      %5735 = vmatprep.subr.bf16.mxu0 %v5618
      %5736 = vmatpush1.bf16.msra.mxu0 %v5617
      %5737 = vmatprep.subr.bf16.mxu0 %v5616
      %5738 = vmatpush1.bf16.msra.mxu0 %v5615
      %5739 = vmatprep.subr.bf16.mxu0 %v5614
      %5740 = vmatpush1.bf16.msra.mxu0 %v5613
      %5741 = vmatprep.subr.bf16.mxu0 %v5612
      %5742 = vmatpush1.bf16.msra.mxu0 %v5611
      %5743 = vmatprep.subr.bf16.mxu0 %v5610
      %5744 = vmatpush1.bf16.msra.mxu0 %v5609
      %5745 = vmatprep.subr.bf16.mxu0 %v5608
      %5746 = vmatpush1.bf16.msra.mxu0 %v5607
      %5747 = vmatprep.subr.bf16.mxu0 %v5606
      %5748 = vmatpush1.bf16.msra.mxu0 %v5605
      %5749 = vmatprep.subr.bf16.mxu0 %v5636
      %5750 = vmatpush2.bf16.msra.mxu0 %v5635
      %5751 = vmatprep.subr.bf16.mxu0 %v5634
      %5752 = vmatpush2.bf16.msra.mxu0 %v5633
      %5753 = vmatprep.subr.bf16.mxu0 %v5632
      %5754 = vmatpush2.bf16.msra.mxu0 %v5631
      %5755 = vmatprep.subr.bf16.mxu0 %v5630
      %5756 = vmatpush2.bf16.msra.mxu0 %v5629
      %5757 = vmatprep.subr.bf16.mxu0 %v5628
      %5758 = vmatpush2.bf16.msra.mxu0 %v5627
      %5759 = vmatprep.subr.bf16.mxu0 %v5626
      %5760 = vmatpush2.bf16.msra.mxu0 %v5625
      %5761 = vmatprep.subr.bf16.mxu0 %v5624
      %5762 = vmatpush2.bf16.msra.mxu0 %v5623
      %5763 = vmatprep.subr.bf16.mxu0 %v5622
      %5764 = vmatpush2.bf16.msra.mxu0 %v5621
      %5765 = vmatprep.mubr.bf16.mxu0 %v5274
      %5766 = vmatmul.mubr.bf16.gmra.mxu0 %v5273
      %v5767 = vpop.f32.mrf.mxu0
      %v5768 = vadd.f32 %v5406, %v5767
      %v5769 = vpop.f32.mrf.mxu0
      %v5770 = vadd.f32 %v5410, %v5769
      %v5771 = vpop.f32.mrf.mxu0
      %v5772 = vadd.f32 %v5406, %v5771
      %v5773 = vpop.f32.mrf.mxu0
      %v5774 = vadd.f32 %v5410, %v5773
      %5775 = vmatprep.mubr.bf16.mxu0 %v5278
      %5776 = vmatmul.mubr.bf16.gmra.mxu0 %v5277
      %v5777 = vpop.f32.mrf.mxu0
      %v5778 = vadd.f32 %v5406, %v5777
      %v5779 = vpop.f32.mrf.mxu0
      %v5780 = vadd.f32 %v5410, %v5779
      %v5781 = vpop.f32.mrf.mxu0
      %v5782 = vadd.f32 %v5406, %v5781
      %v5783 = vpop.f32.mrf.mxu0
      %v5784 = vadd.f32 %v5410, %v5783
      %5785 = vmatprep.mubr.bf16.mxu0 %v5282
      %5786 = vmatmul.mubr.bf16.gmra.mxu0 %v5281
      %v5787 = vpop.f32.mrf.mxu0
      %v5788 = vadd.f32 %v5406, %v5787
      %v5789 = vpop.f32.mrf.mxu0
      %v5790 = vadd.f32 %v5410, %v5789
      %v5791 = vpop.f32.mrf.mxu0
      %v5792 = vadd.f32 %v5406, %v5791
      %v5793 = vpop.f32.mrf.mxu0
      %v5794 = vadd.f32 %v5410, %v5793
      %5795 = vmatprep.mubr.bf16.mxu0 %v5286
      %5796 = vmatmul.mubr.bf16.gmra.mxu0 %v5285
      %v5797 = vpop.f32.mrf.mxu0
      %v5798 = vadd.f32 %v5406, %v5797
      %v5799 = vpop.f32.mrf.mxu0
      %v5800 = vadd.f32 %v5410, %v5799
      %v5801 = vpop.f32.mrf.mxu0
      %v5802 = vadd.f32 %v5406, %v5801
      %v5803 = vpop.f32.mrf.mxu0
      %v5804 = vadd.f32 %v5410, %v5803
      %5805 = vmatprep.mubr.bf16.mxu0 %v5290
      %5806 = vmatmul.mubr.bf16.gmra.mxu0 %v5289
      %v5807 = vpop.f32.mrf.mxu0
      %v5808 = vadd.f32 %v5406, %v5807
      %v5809 = vpop.f32.mrf.mxu0
      %v5810 = vadd.f32 %v5410, %v5809
      %v5811 = vpop.f32.mrf.mxu0
      %v5812 = vadd.f32 %v5406, %v5811
      %v5813 = vpop.f32.mrf.mxu0
      %v5814 = vadd.f32 %v5410, %v5813
      %5815 = vmatprep.mubr.bf16.mxu0 %v5294
      %5816 = vmatmul.mubr.bf16.gmra.mxu0 %v5293
      %v5817 = vpop.f32.mrf.mxu0
      %v5818 = vadd.f32 %v5406, %v5817
      %v5819 = vpop.f32.mrf.mxu0
      %v5820 = vadd.f32 %v5410, %v5819
      %v5821 = vpop.f32.mrf.mxu0
      %v5822 = vadd.f32 %v5406, %v5821
      %v5823 = vpop.f32.mrf.mxu0
      %v5824 = vadd.f32 %v5410, %v5823
      %5825 = vmatprep.mubr.bf16.mxu0 %v5298
      %5826 = vmatmul.mubr.bf16.gmra.mxu0 %v5297
      %v5827 = vpop.f32.mrf.mxu0
      %v5828 = vadd.f32 %v5406, %v5827
      %v5829 = vpop.f32.mrf.mxu0
      %v5830 = vadd.f32 %v5410, %v5829
      %v5831 = vpop.f32.mrf.mxu0
      %v5832 = vadd.f32 %v5406, %v5831
      %v5833 = vpop.f32.mrf.mxu0
      %v5834 = vadd.f32 %v5410, %v5833
      %5835 = vmatprep.mubr.bf16.mxu0 %v5302
      %5836 = vmatmul.mubr.bf16.gmra.mxu0 %v5301
      %v5837 = vpop.f32.mrf.mxu0
      %v5838 = vadd.f32 %v5406, %v5837
      %v5839 = vpop.f32.mrf.mxu0
      %v5840 = vadd.f32 %v5410, %v5839
      %v5841 = vpop.f32.mrf.mxu0
      %v5842 = vadd.f32 %v5406, %v5841
      %v5843 = vpop.f32.mrf.mxu0
      %v5844 = vadd.f32 %v5410, %v5843
      %5845 = vmatprep.mubr.bf16.mxu0 %v5306
      %5846 = vmatmul.mubr.bf16.gmra.mxu0 %v5305
      %v5847 = vpop.f32.mrf.mxu0
      %v5848 = vadd.f32 %v5406, %v5847
      %v5849 = vpop.f32.mrf.mxu0
      %v5850 = vadd.f32 %v5410, %v5849
      %v5851 = vpop.f32.mrf.mxu0
      %v5852 = vadd.f32 %v5406, %v5851
      %v5853 = vpop.f32.mrf.mxu0
      %v5854 = vadd.f32 %v5410, %v5853
      %5855 = vmatprep.mubr.bf16.mxu0 %v5310
      %5856 = vmatmul.mubr.bf16.gmra.mxu0 %v5309
      %v5857 = vpop.f32.mrf.mxu0
      %v5858 = vadd.f32 %v5406, %v5857
      %v5859 = vpop.f32.mrf.mxu0
      %v5860 = vadd.f32 %v5410, %v5859
      %v5861 = vpop.f32.mrf.mxu0
      %v5862 = vadd.f32 %v5406, %v5861
      %v5863 = vpop.f32.mrf.mxu0
      %v5864 = vadd.f32 %v5410, %v5863
      %5865 = vmatprep.mubr.bf16.mxu0 %v5314
      %5866 = vmatmul.mubr.bf16.gmra.mxu0 %v5313
      %v5867 = vpop.f32.mrf.mxu0
      %v5868 = vadd.f32 %v5406, %v5867
      %v5869 = vpop.f32.mrf.mxu0
      %v5870 = vadd.f32 %v5410, %v5869
      %v5871 = vpop.f32.mrf.mxu0
      %v5872 = vadd.f32 %v5406, %v5871
      %v5873 = vpop.f32.mrf.mxu0
      %v5874 = vadd.f32 %v5410, %v5873
      %5875 = vmatprep.mubr.bf16.mxu0 %v5318
      %5876 = vmatmul.mubr.bf16.gmra.mxu0 %v5317
      %v5877 = vpop.f32.mrf.mxu0
      %v5878 = vadd.f32 %v5406, %v5877
      %v5879 = vpop.f32.mrf.mxu0
      %v5880 = vadd.f32 %v5410, %v5879
      %v5881 = vpop.f32.mrf.mxu0
      %v5882 = vadd.f32 %v5406, %v5881
      %v5883 = vpop.f32.mrf.mxu0
      %v5884 = vadd.f32 %v5410, %v5883
      %5885 = vmatprep.mubr.bf16.mxu0 %v5322
      %5886 = vmatmul.mubr.bf16.gmra.mxu0 %v5321
      %v5887 = vpop.f32.mrf.mxu0
      %v5888 = vadd.f32 %v5406, %v5887
      %v5889 = vpop.f32.mrf.mxu0
      %v5890 = vadd.f32 %v5410, %v5889
      %v5891 = vpop.f32.mrf.mxu0
      %v5892 = vadd.f32 %v5406, %v5891
      %v5893 = vpop.f32.mrf.mxu0
      %v5894 = vadd.f32 %v5410, %v5893
      %5895 = vmatprep.mubr.bf16.mxu0 %v5326
      %5896 = vmatmul.mubr.bf16.gmra.mxu0 %v5325
      %v5897 = vpop.f32.mrf.mxu0
      %v5898 = vadd.f32 %v5406, %v5897
      %v5899 = vpop.f32.mrf.mxu0
      %v5900 = vadd.f32 %v5410, %v5899
      %v5901 = vpop.f32.mrf.mxu0
      %v5902 = vadd.f32 %v5406, %v5901
      %v5903 = vpop.f32.mrf.mxu0
      %v5904 = vadd.f32 %v5410, %v5903
      %5905 = vmatprep.mubr.bf16.mxu0 %v5330
      %5906 = vmatmul.mubr.bf16.gmra.mxu0 %v5329
      %v5907 = vpop.f32.mrf.mxu0
      %v5908 = vadd.f32 %v5406, %v5907
      %v5909 = vpop.f32.mrf.mxu0
      %v5910 = vadd.f32 %v5410, %v5909
      %v5911 = vpop.f32.mrf.mxu0
      %v5912 = vadd.f32 %v5406, %v5911
      %v5913 = vpop.f32.mrf.mxu0
      %v5914 = vadd.f32 %v5410, %v5913
      %5915 = vmatprep.mubr.bf16.mxu0 %v5334
      %5916 = vmatmul.mubr.bf16.gmra.mxu0 %v5333
      %v5917 = vpop.f32.mrf.mxu0
      %v5918 = vadd.f32 %v5406, %v5917
      %v5919 = vpop.f32.mrf.mxu0
      %v5920 = vadd.f32 %v5410, %v5919
      %v5921 = vpop.f32.mrf.mxu0
      %v5922 = vadd.f32 %v5406, %v5921
      %v5923 = vpop.f32.mrf.mxu0
      %v5924 = vadd.f32 %v5410, %v5923
      %5925 = vdwg.mxu0
      %5926 = vmatprep.subr.bf16.mxu0 %v5652
      %5927 = vmatpush1.bf16.msra.mxu0 %v5651
      %5928 = vmatprep.subr.bf16.mxu0 %v5650
      %5929 = vmatpush1.bf16.msra.mxu0 %v5649
      %5930 = vmatprep.subr.bf16.mxu0 %v5648
      %5931 = vmatpush1.bf16.msra.mxu0 %v5647
      %5932 = vmatprep.subr.bf16.mxu0 %v5646
      %5933 = vmatpush1.bf16.msra.mxu0 %v5645
      %5934 = vmatprep.subr.bf16.mxu0 %v5644
      %5935 = vmatpush1.bf16.msra.mxu0 %v5643
      %5936 = vmatprep.subr.bf16.mxu0 %v5642
      %5937 = vmatpush1.bf16.msra.mxu0 %v5641
      %5938 = vmatprep.subr.bf16.mxu0 %v5640
      %5939 = vmatpush1.bf16.msra.mxu0 %v5639
      %5940 = vmatprep.subr.bf16.mxu0 %v5638
      %5941 = vmatpush1.bf16.msra.mxu0 %v5637
      %5942 = vmatprep.subr.bf16.mxu0 %v5668
      %5943 = vmatpush2.bf16.msra.mxu0 %v5667
      %5944 = vmatprep.subr.bf16.mxu0 %v5666
      %5945 = vmatpush2.bf16.msra.mxu0 %v5665
      %5946 = vmatprep.subr.bf16.mxu0 %v5664
      %5947 = vmatpush2.bf16.msra.mxu0 %v5663
      %5948 = vmatprep.subr.bf16.mxu0 %v5662
      %5949 = vmatpush2.bf16.msra.mxu0 %v5661
      %5950 = vmatprep.subr.bf16.mxu0 %v5660
      %5951 = vmatpush2.bf16.msra.mxu0 %v5659
      %5952 = vmatprep.subr.bf16.mxu0 %v5658
      %5953 = vmatpush2.bf16.msra.mxu0 %v5657
      %5954 = vmatprep.subr.bf16.mxu0 %v5656
      %5955 = vmatpush2.bf16.msra.mxu0 %v5655
      %5956 = vmatprep.subr.bf16.mxu0 %v5654
      %5957 = vmatpush2.bf16.msra.mxu0 %v5653
      %5958 = vmatprep.mubr.bf16.mxu0 %v5276
      %5959 = vmatmul.mubr.bf16.gmra.mxu0 %v5275
      %v5960 = vpop.f32.mrf.mxu0
      %v5961 = vadd.f32 %v5768, %v5960
      %v5962 = vpop.f32.mrf.mxu0
      %v5963 = vadd.f32 %v5770, %v5962
      %v5964 = vpop.f32.mrf.mxu0
      %v5965 = vadd.f32 %v5772, %v5964
      %v5966 = vpop.f32.mrf.mxu0
      %v5967 = vadd.f32 %v5774, %v5966
      %5968 = vmatprep.mubr.bf16.mxu0 %v5280
      %5969 = vmatmul.mubr.bf16.gmra.mxu0 %v5279
      %v5970 = vpop.f32.mrf.mxu0
      %v5971 = vadd.f32 %v5778, %v5970
      %v5972 = vpop.f32.mrf.mxu0
      %v5973 = vadd.f32 %v5780, %v5972
      %v5974 = vpop.f32.mrf.mxu0
      %v5975 = vadd.f32 %v5782, %v5974
      %v5976 = vpop.f32.mrf.mxu0
      %v5977 = vadd.f32 %v5784, %v5976
      %5978 = vmatprep.mubr.bf16.mxu0 %v5284
      %5979 = vmatmul.mubr.bf16.gmra.mxu0 %v5283
      %v5980 = vpop.f32.mrf.mxu0
      %v5981 = vadd.f32 %v5788, %v5980
      %v5982 = vpop.f32.mrf.mxu0
      %v5983 = vadd.f32 %v5790, %v5982
      %v5984 = vpop.f32.mrf.mxu0
      %v5985 = vadd.f32 %v5792, %v5984
      %v5986 = vpop.f32.mrf.mxu0
      %v5987 = vadd.f32 %v5794, %v5986
      %5988 = vmatprep.mubr.bf16.mxu0 %v5288
      %5989 = vmatmul.mubr.bf16.gmra.mxu0 %v5287
      %v5990 = vpop.f32.mrf.mxu0
      %v5991 = vadd.f32 %v5798, %v5990
      %v5992 = vpop.f32.mrf.mxu0
      %v5993 = vadd.f32 %v5800, %v5992
      %v5994 = vpop.f32.mrf.mxu0
      %v5995 = vadd.f32 %v5802, %v5994
      %v5996 = vpop.f32.mrf.mxu0
      %v5997 = vadd.f32 %v5804, %v5996
      %5998 = vmatprep.mubr.bf16.mxu0 %v5292
      %5999 = vmatmul.mubr.bf16.gmra.mxu0 %v5291
      %v6000 = vpop.f32.mrf.mxu0
      %v6001 = vadd.f32 %v5808, %v6000
      %v6002 = vpop.f32.mrf.mxu0
      %v6003 = vadd.f32 %v5810, %v6002
      %v6004 = vpop.f32.mrf.mxu0
      %v6005 = vadd.f32 %v5812, %v6004
      %v6006 = vpop.f32.mrf.mxu0
      %v6007 = vadd.f32 %v5814, %v6006
      %6008 = vmatprep.mubr.bf16.mxu0 %v5296
      %6009 = vmatmul.mubr.bf16.gmra.mxu0 %v5295
      %v6010 = vpop.f32.mrf.mxu0
      %v6011 = vadd.f32 %v5818, %v6010
      %v6012 = vpop.f32.mrf.mxu0
      %v6013 = vadd.f32 %v5820, %v6012
      %v6014 = vpop.f32.mrf.mxu0
      %v6015 = vadd.f32 %v5822, %v6014
      %v6016 = vpop.f32.mrf.mxu0
      %v6017 = vadd.f32 %v5824, %v6016
      %6018 = vmatprep.mubr.bf16.mxu0 %v5300
      %6019 = vmatmul.mubr.bf16.gmra.mxu0 %v5299
      %v6020 = vpop.f32.mrf.mxu0
      %v6021 = vadd.f32 %v5828, %v6020
      %v6022 = vpop.f32.mrf.mxu0
      %v6023 = vadd.f32 %v5830, %v6022
      %v6024 = vpop.f32.mrf.mxu0
      %v6025 = vadd.f32 %v5832, %v6024
      %v6026 = vpop.f32.mrf.mxu0
      %v6027 = vadd.f32 %v5834, %v6026
      %6028 = vmatprep.mubr.bf16.mxu0 %v5304
      %6029 = vmatmul.mubr.bf16.gmra.mxu0 %v5303
      %v6030 = vpop.f32.mrf.mxu0
      %v6031 = vadd.f32 %v5838, %v6030
      %v6032 = vpop.f32.mrf.mxu0
      %v6033 = vadd.f32 %v5840, %v6032
      %v6034 = vpop.f32.mrf.mxu0
      %v6035 = vadd.f32 %v5842, %v6034
      %v6036 = vpop.f32.mrf.mxu0
      %v6037 = vadd.f32 %v5844, %v6036
      %6038 = vmatprep.mubr.bf16.mxu0 %v5308
      %6039 = vmatmul.mubr.bf16.gmra.mxu0 %v5307
      %v6040 = vpop.f32.mrf.mxu0
      %v6041 = vadd.f32 %v5848, %v6040
      %v6042 = vpop.f32.mrf.mxu0
      %v6043 = vadd.f32 %v5850, %v6042
      %v6044 = vpop.f32.mrf.mxu0
      %v6045 = vadd.f32 %v5852, %v6044
      %v6046 = vpop.f32.mrf.mxu0
      %v6047 = vadd.f32 %v5854, %v6046
      %6048 = vmatprep.mubr.bf16.mxu0 %v5312
      %6049 = vmatmul.mubr.bf16.gmra.mxu0 %v5311
      %v6050 = vpop.f32.mrf.mxu0
      %v6051 = vadd.f32 %v5858, %v6050
      %v6052 = vpop.f32.mrf.mxu0
      %v6053 = vadd.f32 %v5860, %v6052
      %v6054 = vpop.f32.mrf.mxu0
      %v6055 = vadd.f32 %v5862, %v6054
      %v6056 = vpop.f32.mrf.mxu0
      %v6057 = vadd.f32 %v5864, %v6056
      %6058 = vmatprep.mubr.bf16.mxu0 %v5316
      %6059 = vmatmul.mubr.bf16.gmra.mxu0 %v5315
      %v6060 = vpop.f32.mrf.mxu0
      %v6061 = vadd.f32 %v5868, %v6060
      %v6062 = vpop.f32.mrf.mxu0
      %v6063 = vadd.f32 %v5870, %v6062
      %v6064 = vpop.f32.mrf.mxu0
      %v6065 = vadd.f32 %v5872, %v6064
      %v6066 = vpop.f32.mrf.mxu0
      %v6067 = vadd.f32 %v5874, %v6066
      %6068 = vmatprep.mubr.bf16.mxu0 %v5320
      %6069 = vmatmul.mubr.bf16.gmra.mxu0 %v5319
      %v6070 = vpop.f32.mrf.mxu0
      %v6071 = vadd.f32 %v5878, %v6070
      %v6072 = vpop.f32.mrf.mxu0
      %v6073 = vadd.f32 %v5880, %v6072
      %v6074 = vpop.f32.mrf.mxu0
      %v6075 = vadd.f32 %v5882, %v6074
      %v6076 = vpop.f32.mrf.mxu0
      %v6077 = vadd.f32 %v5884, %v6076
      %6078 = vmatprep.mubr.bf16.mxu0 %v5324
      %6079 = vmatmul.mubr.bf16.gmra.mxu0 %v5323
      %v6080 = vpop.f32.mrf.mxu0
      %v6081 = vadd.f32 %v5888, %v6080
      %v6082 = vpop.f32.mrf.mxu0
      %v6083 = vadd.f32 %v5890, %v6082
      %v6084 = vpop.f32.mrf.mxu0
      %v6085 = vadd.f32 %v5892, %v6084
      %v6086 = vpop.f32.mrf.mxu0
      %v6087 = vadd.f32 %v5894, %v6086
      %6088 = vmatprep.mubr.bf16.mxu0 %v5328
      %6089 = vmatmul.mubr.bf16.gmra.mxu0 %v5327
      %v6090 = vpop.f32.mrf.mxu0
      %v6091 = vadd.f32 %v5898, %v6090
      %v6092 = vpop.f32.mrf.mxu0
      %v6093 = vadd.f32 %v5900, %v6092
      %v6094 = vpop.f32.mrf.mxu0
      %v6095 = vadd.f32 %v5902, %v6094
      %v6096 = vpop.f32.mrf.mxu0
      %v6097 = vadd.f32 %v5904, %v6096
      %6098 = vmatprep.mubr.bf16.mxu0 %v5332
      %6099 = vmatmul.mubr.bf16.gmra.mxu0 %v5331
      %v6100 = vpop.f32.mrf.mxu0
      %v6101 = vadd.f32 %v5908, %v6100
      %v6102 = vpop.f32.mrf.mxu0
      %v6103 = vadd.f32 %v5910, %v6102
      %v6104 = vpop.f32.mrf.mxu0
      %v6105 = vadd.f32 %v5912, %v6104
      %v6106 = vpop.f32.mrf.mxu0
      %v6107 = vadd.f32 %v5914, %v6106
      %6108 = vmatprep.mubr.bf16.mxu0 %v5336
      %6109 = vmatmul.mubr.bf16.gmra.mxu0 %v5335
      %v6110 = vpop.f32.mrf.mxu0
      %v6111 = vadd.f32 %v5918, %v6110
      %v6112 = vpop.f32.mrf.mxu0
      %v6113 = vadd.f32 %v5920, %v6112
      %v6114 = vpop.f32.mrf.mxu0
      %v6115 = vadd.f32 %v5922, %v6114
      %v6116 = vpop.f32.mrf.mxu0
      %v6117 = vadd.f32 %v5924, %v6116
      %6118 = vdwg.mxu0
      %v6119 = vmax.f32 %v5961, 0.0
      %v6120 = vmax.f32 %v5963, 0.0
      %v6121 = vmax.f32 %v5965, 0.0
      %v6122 = vmax.f32 %v5967, 0.0
      %v6123 = vmax.f32 %v5971, 0.0
      %v6124 = vmax.f32 %v5973, 0.0
      %v6125 = vmax.f32 %v5975, 0.0
      %v6126 = vmax.f32 %v5977, 0.0
      %v6127 = vmax.f32 %v5981, 0.0
      %v6128 = vmax.f32 %v5983, 0.0
      %v6129 = vmax.f32 %v5985, 0.0
      %v6130 = vmax.f32 %v5987, 0.0
      %v6131 = vmax.f32 %v5991, 0.0
      %v6132 = vmax.f32 %v5993, 0.0
      %v6133 = vmax.f32 %v5995, 0.0
      %v6134 = vmax.f32 %v5997, 0.0
      %v6135 = vmax.f32 %v6001, 0.0
      %v6136 = vmax.f32 %v6003, 0.0
      %v6137 = vmax.f32 %v6005, 0.0
      %v6138 = vmax.f32 %v6007, 0.0
      %v6139 = vmax.f32 %v6011, 0.0
      %v6140 = vmax.f32 %v6013, 0.0
      %v6141 = vmax.f32 %v6015, 0.0
      %v6142 = vmax.f32 %v6017, 0.0
      %v6143 = vmax.f32 %v6021, 0.0
      %v6144 = vmax.f32 %v6023, 0.0
      %v6145 = vmax.f32 %v6025, 0.0
      %v6146 = vmax.f32 %v6027, 0.0
      %v6147 = vmax.f32 %v6031, 0.0
      %v6148 = vmax.f32 %v6033, 0.0
      %v6149 = vmax.f32 %v6035, 0.0
      %v6150 = vmax.f32 %v6037, 0.0
      %v6151 = vmax.f32 %v6041, 0.0
      %v6152 = vmax.f32 %v6043, 0.0
      %v6153 = vmax.f32 %v6045, 0.0
      %v6154 = vmax.f32 %v6047, 0.0
      %v6155 = vmax.f32 %v6051, 0.0
      %v6156 = vmax.f32 %v6053, 0.0
      %v6157 = vmax.f32 %v6055, 0.0
      %v6158 = vmax.f32 %v6057, 0.0
      %v6159 = vmax.f32 %v6061, 0.0
      %v6160 = vmax.f32 %v6063, 0.0
      %v6161 = vmax.f32 %v6065, 0.0
      %v6162 = vmax.f32 %v6067, 0.0
      %v6163 = vmax.f32 %v6071, 0.0
      %v6164 = vmax.f32 %v6073, 0.0
      %v6165 = vmax.f32 %v6075, 0.0
      %v6166 = vmax.f32 %v6077, 0.0
      %v6167 = vmax.f32 %v6081, 0.0
      %v6168 = vmax.f32 %v6083, 0.0
      %v6169 = vmax.f32 %v6085, 0.0
      %v6170 = vmax.f32 %v6087, 0.0
      %v6171 = vmax.f32 %v6091, 0.0
      %v6172 = vmax.f32 %v6093, 0.0
      %v6173 = vmax.f32 %v6095, 0.0
      %v6174 = vmax.f32 %v6097, 0.0
      %v6175 = vmax.f32 %v6101, 0.0
      %v6176 = vmax.f32 %v6103, 0.0
      %v6177 = vmax.f32 %v6105, 0.0
      %v6178 = vmax.f32 %v6107, 0.0
      %v6179 = vmax.f32 %v6111, 0.0
      %v6180 = vmax.f32 %v6113, 0.0
      %v6181 = vmax.f32 %v6115, 0.0
      %v6182 = vmax.f32 %v6117, 0.0
      %v6183 = vpack.c.bf16 %v6121, %v6119
      %v6184 = vpack.c.bf16 %v6122, %v6120
      %v6185 = vpack.c.bf16 %v6125, %v6123
      %v6186 = vpack.c.bf16 %v6126, %v6124
      %v6187 = vpack.c.bf16 %v6129, %v6127
      %v6188 = vpack.c.bf16 %v6130, %v6128
      %v6189 = vpack.c.bf16 %v6133, %v6131
      %v6190 = vpack.c.bf16 %v6134, %v6132
      %v6191 = vpack.c.bf16 %v6137, %v6135
      %v6192 = vpack.c.bf16 %v6138, %v6136
      %v6193 = vpack.c.bf16 %v6141, %v6139
      %v6194 = vpack.c.bf16 %v6142, %v6140
      %v6195 = vpack.c.bf16 %v6145, %v6143
      %v6196 = vpack.c.bf16 %v6146, %v6144
      %v6197 = vpack.c.bf16 %v6149, %v6147
      %v6198 = vpack.c.bf16 %v6150, %v6148
      %v6199 = vpack.c.bf16 %v6153, %v6151
      %v6200 = vpack.c.bf16 %v6154, %v6152
      %v6201 = vpack.c.bf16 %v6157, %v6155
      %v6202 = vpack.c.bf16 %v6158, %v6156
      %v6203 = vpack.c.bf16 %v6161, %v6159
      %v6204 = vpack.c.bf16 %v6162, %v6160
      %v6205 = vpack.c.bf16 %v6165, %v6163
      %v6206 = vpack.c.bf16 %v6166, %v6164
      %v6207 = vpack.c.bf16 %v6169, %v6167
      %v6208 = vpack.c.bf16 %v6170, %v6168
      %v6209 = vpack.c.bf16 %v6173, %v6171
      %v6210 = vpack.c.bf16 %v6174, %v6172
      %v6211 = vpack.c.bf16 %v6177, %v6175
      %v6212 = vpack.c.bf16 %v6178, %v6176
      %v6213 = vpack.c.bf16 %v6181, %v6179
      %v6214 = vpack.c.bf16 %v6182, %v6180
      %v6215 = vld [vmem:[%s5] sm:$0xf]
      %v6216 = vld [vmem:[%s5 + $0x4] sm:$0xf]
      %v6217 = vld [vmem:[%s5 + $0x8] sm:$0xf]
      %v6218 = vld [vmem:[%s5 + $0xc] sm:$0xf]
      %v6219 = vld [vmem:[%s5 + $0x10] sm:$0xf]
      %v6220 = vld [vmem:[%s5 + $0x14] sm:$0xf]
      %v6221 = vld [vmem:[%s5 + $0x18] sm:$0xf]
      %v6222 = vld [vmem:[%s5 + $0x1c] sm:$0xf]
      %v6223 = vld [vmem:[%s5 + $0x20] sm:$0xf]
      %v6224 = vld [vmem:[%s5 + $0x24] sm:$0xf]
      %v6225 = vld [vmem:[%s5 + $0x28] sm:$0xf]
      %v6226 = vld [vmem:[%s5 + $0x2c] sm:$0xf]
      %v6227 = vld [vmem:[%s5 + $0x30] sm:$0xf]
      %v6228 = vld [vmem:[%s5 + $0x34] sm:$0xf]
      %v6229 = vld [vmem:[%s5 + $0x38] sm:$0xf]
      %v6230 = vld [vmem:[%s5 + $0x3c] sm:$0xf]
      %v6231 = vld [vmem:[%s5 + $0x40] sm:$0xf]
      %v6232 = vld [vmem:[%s5 + $0x44] sm:$0xf]
      %v6233 = vld [vmem:[%s5 + $0x48] sm:$0xf]
      %v6234 = vld [vmem:[%s5 + $0x4c] sm:$0xf]
      %v6235 = vld [vmem:[%s5 + $0x50] sm:$0xf]
      %v6236 = vld [vmem:[%s5 + $0x54] sm:$0xf]
      %v6237 = vld [vmem:[%s5 + $0x58] sm:$0xf]
      %v6238 = vld [vmem:[%s5 + $0x5c] sm:$0xf]
      %v6239 = vld [vmem:[%s5 + $0x60] sm:$0xf]
      %v6240 = vld [vmem:[%s5 + $0x64] sm:$0xf]
      %v6241 = vld [vmem:[%s5 + $0x68] sm:$0xf]
      %v6242 = vld [vmem:[%s5 + $0x6c] sm:$0xf]
      %v6243 = vld [vmem:[%s5 + $0x70] sm:$0xf]
      %v6244 = vld [vmem:[%s5 + $0x74] sm:$0xf]
      %v6245 = vld [vmem:[%s5 + $0x78] sm:$0xf]
      %v6246 = vld [vmem:[%s5 + $0x7c] sm:$0xf]
      %v6247 = vld [vmem:[%s6] sm:$0x1]
      %v6249 = vlaneseq
      %v6250 = vshrl.u32 %v6249, 7
      %v6251 = vsub.s32 0, %v6250
      %v6252 = vrot.slane %v6247, %v6251
      %v6286 = vunpack.c.l.b16 %v6215
      %v6287 = vunpack.c.l.b16 %v6216
      %v6288 = vunpack.c.l.b16 %v6217
      %v6289 = vunpack.c.l.b16 %v6218
      %v6290 = vunpack.c.l.b16 %v6219
      %v6291 = vunpack.c.l.b16 %v6220
      %v6292 = vunpack.c.l.b16 %v6221
      %v6293 = vunpack.c.l.b16 %v6222
      %v6294 = vunpack.c.l.b16 %v6223
      %v6295 = vunpack.c.l.b16 %v6224
      %v6296 = vunpack.c.l.b16 %v6225
      %v6297 = vunpack.c.l.b16 %v6226
      %v6298 = vunpack.c.l.b16 %v6227
      %v6299 = vunpack.c.l.b16 %v6228
      %v6300 = vunpack.c.l.b16 %v6229
      %v6301 = vunpack.c.l.b16 %v6230
      %v6302 = vunpack.c.l.b16 %v6231
      %v6303 = vunpack.c.l.b16 %v6232
      %v6304 = vunpack.c.l.b16 %v6233
      %v6305 = vunpack.c.l.b16 %v6234
      %v6306 = vunpack.c.l.b16 %v6235
      %v6307 = vunpack.c.l.b16 %v6236
      %v6308 = vunpack.c.l.b16 %v6237
      %v6309 = vunpack.c.l.b16 %v6238
      %v6310 = vunpack.c.l.b16 %v6239
      %v6311 = vunpack.c.l.b16 %v6240
      %v6312 = vunpack.c.l.b16 %v6241
      %v6313 = vunpack.c.l.b16 %v6242
      %v6314 = vunpack.c.l.b16 %v6243
      %v6315 = vunpack.c.l.b16 %v6244
      %v6316 = vunpack.c.l.b16 %v6245
      %v6317 = vunpack.c.l.b16 %v6246
      %v6318 = vpack.c.b16 %v6287, %v6286
      %v6319 = vpack.c.b16 %v6289, %v6288
      %v6320 = vpack.c.b16 %v6291, %v6290
      %v6321 = vpack.c.b16 %v6293, %v6292
      %v6322 = vpack.c.b16 %v6295, %v6294
      %v6323 = vpack.c.b16 %v6297, %v6296
      %v6324 = vpack.c.b16 %v6299, %v6298
      %v6325 = vpack.c.b16 %v6301, %v6300
      %v6326 = vpack.c.b16 %v6303, %v6302
      %v6327 = vpack.c.b16 %v6305, %v6304
      %v6328 = vpack.c.b16 %v6307, %v6306
      %v6329 = vpack.c.b16 %v6309, %v6308
      %v6330 = vpack.c.b16 %v6311, %v6310
      %v6331 = vpack.c.b16 %v6313, %v6312
      %v6332 = vpack.c.b16 %v6315, %v6314
      %v6333 = vpack.c.b16 %v6317, %v6316
      %6350 = vmatprep.subr.bf16.mxu0 0
      %6351 = vmatpush1.bf16.msra.mxu0 %v6325
      %6352 = vmatprep.subr.bf16.mxu0 0
      %6353 = vmatpush1.bf16.msra.mxu0 %v6324
      %6354 = vmatprep.subr.bf16.mxu0 0
      %6355 = vmatpush1.bf16.msra.mxu0 %v6323
      %6356 = vmatprep.subr.bf16.mxu0 0
      %6357 = vmatpush1.bf16.msra.mxu0 %v6322
      %6358 = vmatprep.subr.bf16.mxu0 0
      %6359 = vmatpush1.bf16.msra.mxu0 %v6321
      %6360 = vmatprep.subr.bf16.mxu0 0
      %6361 = vmatpush1.bf16.msra.mxu0 %v6320
      %6362 = vmatprep.subr.bf16.mxu0 0
      %6363 = vmatpush1.bf16.msra.mxu0 %v6319
      %6364 = vmatprep.subr.bf16.mxu0 0
      %6365 = vmatpush1.bf16.msra.mxu0 %v6318
      %6366 = vmatprep.subr.bf16.mxu0 0
      %6367 = vmatpush2.bf16.msra.mxu0 %v6333
      %6368 = vmatprep.subr.bf16.mxu0 0
      %6369 = vmatpush2.bf16.msra.mxu0 %v6332
      %6370 = vmatprep.subr.bf16.mxu0 0
      %6371 = vmatpush2.bf16.msra.mxu0 %v6331
      %6372 = vmatprep.subr.bf16.mxu0 0
      %6373 = vmatpush2.bf16.msra.mxu0 %v6330
      %6374 = vmatprep.subr.bf16.mxu0 0
      %6375 = vmatpush2.bf16.msra.mxu0 %v6329
      %6376 = vmatprep.subr.bf16.mxu0 0
      %6377 = vmatpush2.bf16.msra.mxu0 %v6328
      %6378 = vmatprep.subr.bf16.mxu0 0
      %6379 = vmatpush2.bf16.msra.mxu0 %v6327
      %6380 = vmatprep.subr.bf16.mxu0 0
      %6381 = vmatpush2.bf16.msra.mxu0 %v6326
      %6382 = vmatprep.mubr.bf16.mxu0 %v6184
      %6383 = vmatmul.mubr.bf16.gmra.mxu0 %v6183
      %v6384 = vpop.f32.mrf.mxu0
      %v6385 = vadd.f32 %v6252, %v6384
      %v6386 = vpop.f32.mrf.mxu0
      %v6387 = vpop.f32.mrf.mxu0
      %v6388 = vadd.f32 %v6252, %v6387
      %v6389 = vpop.f32.mrf.mxu0
      %6390 = vmatprep.mubr.bf16.mxu0 %v6186
      %6391 = vmatmul.mubr.bf16.gmra.mxu0 %v6185
      %v6392 = vpop.f32.mrf.mxu0
      %v6393 = vadd.f32 %v6252, %v6392
      %v6394 = vpop.f32.mrf.mxu0
      %v6395 = vpop.f32.mrf.mxu0
      %v6396 = vadd.f32 %v6252, %v6395
      %v6397 = vpop.f32.mrf.mxu0
      %6398 = vmatprep.mubr.bf16.mxu0 %v6188
      %6399 = vmatmul.mubr.bf16.gmra.mxu0 %v6187
      %v6400 = vpop.f32.mrf.mxu0
      %v6401 = vadd.f32 %v6252, %v6400
      %v6402 = vpop.f32.mrf.mxu0
      %v6403 = vpop.f32.mrf.mxu0
      %v6404 = vadd.f32 %v6252, %v6403
      %v6405 = vpop.f32.mrf.mxu0
      %6406 = vmatprep.mubr.bf16.mxu0 %v6190
      %6407 = vmatmul.mubr.bf16.gmra.mxu0 %v6189
      %v6408 = vpop.f32.mrf.mxu0
      %v6409 = vadd.f32 %v6252, %v6408
      %v6410 = vpop.f32.mrf.mxu0
      %v6411 = vpop.f32.mrf.mxu0
      %v6412 = vadd.f32 %v6252, %v6411
      %v6413 = vpop.f32.mrf.mxu0
      %6414 = vmatprep.mubr.bf16.mxu0 %v6192
      %6415 = vmatmul.mubr.bf16.gmra.mxu0 %v6191
      %v6416 = vpop.f32.mrf.mxu0
      %v6417 = vadd.f32 %v6252, %v6416
      %v6418 = vpop.f32.mrf.mxu0
      %v6419 = vpop.f32.mrf.mxu0
      %v6420 = vadd.f32 %v6252, %v6419
      %v6421 = vpop.f32.mrf.mxu0
      %6422 = vmatprep.mubr.bf16.mxu0 %v6194
      %6423 = vmatmul.mubr.bf16.gmra.mxu0 %v6193
      %v6424 = vpop.f32.mrf.mxu0
      %v6425 = vadd.f32 %v6252, %v6424
      %v6426 = vpop.f32.mrf.mxu0
      %v6427 = vpop.f32.mrf.mxu0
      %v6428 = vadd.f32 %v6252, %v6427
      %v6429 = vpop.f32.mrf.mxu0
      %6430 = vmatprep.mubr.bf16.mxu0 %v6196
      %6431 = vmatmul.mubr.bf16.gmra.mxu0 %v6195
      %v6432 = vpop.f32.mrf.mxu0
      %v6433 = vadd.f32 %v6252, %v6432
      %v6434 = vpop.f32.mrf.mxu0
      %v6435 = vpop.f32.mrf.mxu0
      %v6436 = vadd.f32 %v6252, %v6435
      %v6437 = vpop.f32.mrf.mxu0
      %6438 = vmatprep.mubr.bf16.mxu0 %v6198
      %6439 = vmatmul.mubr.bf16.gmra.mxu0 %v6197
      %v6440 = vpop.f32.mrf.mxu0
      %v6441 = vadd.f32 %v6252, %v6440
      %v6442 = vpop.f32.mrf.mxu0
      %v6443 = vpop.f32.mrf.mxu0
      %v6444 = vadd.f32 %v6252, %v6443
      %v6445 = vpop.f32.mrf.mxu0
      %6446 = vmatprep.mubr.bf16.mxu0 %v6200
      %6447 = vmatmul.mubr.bf16.gmra.mxu0 %v6199
      %v6448 = vpop.f32.mrf.mxu0
      %v6449 = vadd.f32 %v6252, %v6448
      %v6450 = vpop.f32.mrf.mxu0
      %v6451 = vpop.f32.mrf.mxu0
      %v6452 = vadd.f32 %v6252, %v6451
      %v6453 = vpop.f32.mrf.mxu0
      %6454 = vmatprep.mubr.bf16.mxu0 %v6202
      %6455 = vmatmul.mubr.bf16.gmra.mxu0 %v6201
      %v6456 = vpop.f32.mrf.mxu0
      %v6457 = vadd.f32 %v6252, %v6456
      %v6458 = vpop.f32.mrf.mxu0
      %v6459 = vpop.f32.mrf.mxu0
      %v6460 = vadd.f32 %v6252, %v6459
      %v6461 = vpop.f32.mrf.mxu0
      %6462 = vmatprep.mubr.bf16.mxu0 %v6204
      %6463 = vmatmul.mubr.bf16.gmra.mxu0 %v6203
      %v6464 = vpop.f32.mrf.mxu0
      %v6465 = vadd.f32 %v6252, %v6464
      %v6466 = vpop.f32.mrf.mxu0
      %v6467 = vpop.f32.mrf.mxu0
      %v6468 = vadd.f32 %v6252, %v6467
      %v6469 = vpop.f32.mrf.mxu0
      %6470 = vmatprep.mubr.bf16.mxu0 %v6206
      %6471 = vmatmul.mubr.bf16.gmra.mxu0 %v6205
      %v6472 = vpop.f32.mrf.mxu0
      %v6473 = vadd.f32 %v6252, %v6472
      %v6474 = vpop.f32.mrf.mxu0
      %v6475 = vpop.f32.mrf.mxu0
      %v6476 = vadd.f32 %v6252, %v6475
      %v6477 = vpop.f32.mrf.mxu0
      %6478 = vmatprep.mubr.bf16.mxu0 %v6208
      %6479 = vmatmul.mubr.bf16.gmra.mxu0 %v6207
      %v6480 = vpop.f32.mrf.mxu0
      %v6481 = vadd.f32 %v6252, %v6480
      %v6482 = vpop.f32.mrf.mxu0
      %v6483 = vpop.f32.mrf.mxu0
      %v6484 = vadd.f32 %v6252, %v6483
      %v6485 = vpop.f32.mrf.mxu0
      %6486 = vmatprep.mubr.bf16.mxu0 %v6210
      %6487 = vmatmul.mubr.bf16.gmra.mxu0 %v6209
      %v6488 = vpop.f32.mrf.mxu0
      %v6489 = vadd.f32 %v6252, %v6488
      %v6490 = vpop.f32.mrf.mxu0
      %v6491 = vpop.f32.mrf.mxu0
      %v6492 = vadd.f32 %v6252, %v6491
      %v6493 = vpop.f32.mrf.mxu0
      %6494 = vmatprep.mubr.bf16.mxu0 %v6212
      %6495 = vmatmul.mubr.bf16.gmra.mxu0 %v6211
      %v6496 = vpop.f32.mrf.mxu0
      %v6497 = vadd.f32 %v6252, %v6496
      %v6498 = vpop.f32.mrf.mxu0
      %v6499 = vpop.f32.mrf.mxu0
      %v6500 = vadd.f32 %v6252, %v6499
      %v6501 = vpop.f32.mrf.mxu0
      %6502 = vmatprep.mubr.bf16.mxu0 %v6214
      %6503 = vmatmul.mubr.bf16.gmra.mxu0 %v6213
      %v6504 = vpop.f32.mrf.mxu0
      %v6505 = vadd.f32 %v6252, %v6504
      %v6506 = vpop.f32.mrf.mxu0
      %v6507 = vpop.f32.mrf.mxu0
      %v6508 = vadd.f32 %v6252, %v6507
      %v6509 = vpop.f32.mrf.mxu0
      %6510 = vdwg.mxu0
      %6511 = vst [vmem:[%s283] sm:$0xff] %v6385
      %6512 = vst [vmem:[%s283 + $0x8] sm:$0xff] %v6388
      %6513 = vst [vmem:[%s283 + $0x10] sm:$0xff] %v6393
      %6514 = vst [vmem:[%s283 + $0x18] sm:$0xff] %v6396
      %6515 = vst [vmem:[%s283 + $0x20] sm:$0xff] %v6401
      %6516 = vst [vmem:[%s283 + $0x28] sm:$0xff] %v6404
      %6517 = vst [vmem:[%s283 + $0x30] sm:$0xff] %v6409
      %6518 = vst [vmem:[%s283 + $0x38] sm:$0xff] %v6412
      %6519 = vst [vmem:[%s283 + $0x40] sm:$0xff] %v6417
      %6520 = vst [vmem:[%s283 + $0x48] sm:$0xff] %v6420
      %6521 = vst [vmem:[%s283 + $0x50] sm:$0xff] %v6425
      %6522 = vst [vmem:[%s283 + $0x58] sm:$0xff] %v6428
      %6523 = vst [vmem:[%s283 + $0x60] sm:$0xff] %v6433
      %6524 = vst [vmem:[%s283 + $0x68] sm:$0xff] %v6436
      %6525 = vst [vmem:[%s283 + $0x70] sm:$0xff] %v6441
      %6526 = vst [vmem:[%s283 + $0x78] sm:$0xff] %v6444
      %6527 = vst [vmem:[%s283 + $0x80] sm:$0xff] %v6449
      %6528 = vst [vmem:[%s283 + $0x88] sm:$0xff] %v6452
      %6529 = vst [vmem:[%s283 + $0x90] sm:$0xff] %v6457
      %6530 = vst [vmem:[%s283 + $0x98] sm:$0xff] %v6460
      %6531 = vst [vmem:[%s283 + $0xa0] sm:$0xff] %v6465
      %6532 = vst [vmem:[%s283 + $0xa8] sm:$0xff] %v6468
      %6533 = vst [vmem:[%s283 + $0xb0] sm:$0xff] %v6473
      %6534 = vst [vmem:[%s283 + $0xb8] sm:$0xff] %v6476
      %6535 = vst [vmem:[%s283 + $0xc0] sm:$0xff] %v6481
      %6536 = vst [vmem:[%s283 + $0xc8] sm:$0xff] %v6484
      %6537 = vst [vmem:[%s283 + $0xd0] sm:$0xff] %v6489
      %6538 = vst [vmem:[%s283 + $0xd8] sm:$0xff] %v6492
      %6539 = vst [vmem:[%s283 + $0xe0] sm:$0xff] %v6497
      %6540 = vst [vmem:[%s283 + $0xe8] sm:$0xff] %v6500
      %6541 = vst [vmem:[%s283 + $0xf0] sm:$0xff] %v6505
      %6542 = vst [vmem:[%s283 + $0xf8] sm:$0xff] %v6508
      %s6543 = smul.u32 32, %s18
      %p6544 = scmp.lt.s32.totalorder %s6543, 63
      %s6545 = scalar_select %p6544, %s6543, 63
      %s6546 = smul.addr %s6545, 8
      %s6547 = scalar_lea.vmem %s7, %s6546
      // Predicated region
      $region49: #{mlp_forward.1} parent=47 // pred_check
        %p6548 = pneg %p188
      $region50: #{mlp_forward.1} parent=47 // pred_check_branch
        %6550 = sbr.rel (%p6548) target = $region52
      $region51: #{mlp_forward.1} parent=47 // pred_region
        %s6551 = smul.u32 32, %s18
      $region52: #{mlp_forward.1} parent=47 // pred_fallthru
        _
    $region48: #{mlp_forward.1} parent=5 // pred_fallthru
      _
    %p6552 = scmp.le.s32.totalorder 2, %s13
    // Predicated region
    $region53: #{mlp_forward.1} parent=5 // pred_check
      %p6553 = pneg %p6552
    $region54: #{mlp_forward.1} parent=5 // pred_check_branch
      %6555 = sbr.rel (%p6553) target = $region56
    $region55: #{mlp_forward.1} parent=5 // pred_region
      %s6556 = ssub.s32 %s13, 2
      // Predicated region
      $region57: #{mlp_forward.1} parent=55 // pred_check
        %p6557 = pneg %p194
      $region58: #{mlp_forward.1} parent=55 // pred_check_branch
        %6559 = sbr.rel (%p6557) target = $region60
      $region59: #{mlp_forward.1} parent=55 // pred_region
        %s6560 = smul.u32 32, %s19
        %p6561 = scmp.lt.s32.totalorder %s6560, 63
        %s6562 = scalar_select %p6561, %s6560, 63
        %s6563 = smul.addr %s6562, 8
        %s6564 = scalar_lea.vmem %s7, %s6563
      $region60: #{mlp_forward.1} parent=55 // pred_fallthru
        _
    $region56: #{mlp_forward.1} parent=5 // pred_fallthru
      _
  $region6: #{mlp_forward.1} parent=0 // loop_footer
    %s17 = sadd.s32 1, %s13
  $region7: #{mlp_forward.1} parent=0 // loop_footer_branch
    %12 = sbr.rel target = $region3
  $region8: #{mlp_forward.1} parent=0 // loop_exit
    _

</llo_original>
